<compile_context>
chip_gen: v7x
topology: tpu7x:2x2x1
jax: 0.10.0
libtpu: 0.0.40
codegen_flags: <defaults>
</compile_context>

<pallas_src>
import functools

import jax
import jax.numpy as jnp
import numpy as np
from jax import lax
from jax.experimental import pallas as pl
from jax.experimental.pallas import tpu as pltpu


# ----------------------------------------------------------------------------
# Kernel
# ----------------------------------------------------------------------------
def _robust_inference_kernel(z_ref, x_ref, base_ref, g_ref, w_ref,
                             rec_ref, small_ref, *, rec_dtype):
    """One (VAE-block, S-tile) grid step.

    z_ref     : (St, L+1)      bf16  latent tile (ones column folded in)
    x_ref     : (B, Pp)        f32/bf16  flattened (padded) inputs
    base_ref  : (B, St)        f32   ||x_b||^2 + 0.5*beta*||z_s||^2 (hoisted)
    g_ref     : (St, SLAB)     f32   gather payload: z in lanes 1..L, else 0
    w_ref     : (Vb, L+1, Pp)  bf16  decoder weights (bias row folded in)
    rec_ref   : (Vb, B, Pp)    f32   out: best reconstruction (running)
    small_ref : (Vb, B, SLAB)  f32   out: lane 0 = min loss, lanes 1..L = mu
    """
    v_blk, B, Pp = rec_ref.shape
    St = base_ref.shape[1]
    SLAB = small_ref.shape[2]

    is_first = pl.program_id(1) == 0           # first S tile of this VAE block

    f32 = jnp.float32
    f32_mode = jnp.dtype(rec_dtype) == jnp.dtype(f32)
    prec = lax.Precision.HIGHEST if f32_mode else lax.Precision.DEFAULT

    # Loop-invariant operands, loaded / built once per grid step.
    z_mat = z_ref[...]
    x = x_ref[...]
    base = base_ref[...]
    g = g_ref[...]
    iota = lax.broadcasted_iota(jnp.int32, (B, St), 1)
    lane = lax.broadcasted_iota(jnp.int32, (B, SLAB), 1)

    def per_vae(v, carry):
        # ---- decode this VAE: (St, L+1) @ (L+1, Pp) on the MXU (f32 acc) ---
        pre_act = jnp.dot(z_mat, w_ref[v], preferred_element_type=f32)
        rec = jax.nn.sigmoid(pre_act.astype(rec_dtype))              # (St, Pp)

        # samplewise VAE loss (logvar == 0):
        #   ||x_b - rec_s||^2 + 0.5*beta*||z_s||^2
        # = base(b, s) - 2<x_b, rec_s> + ||rec_s||^2
        xr = lax.dot_general(x, rec, (((1,), (1,)), ((), ())),
                             precision=prec,
                             preferred_element_type=f32)             # (B, St)
        recf = rec.astype(f32)
        r_sq = jnp.sum(recf * recf, axis=1)[None, :]                 # (1, St)  XLU
        loss = base - 2.0 * xr + r_sq                                # (B, St)

        # per-tile min / argmin over samples; gather via one-hot matmul.
        # TODO(synk): for very large S tiles switch these one-hot gathers to
        #             per-batch-row dynamic reads of a VMEM rec scratch.
        tile_min = jnp.min(loss, axis=1, keepdims=True)              # (B, 1)
        idx = jnp.min(jnp.where(loss <= tile_min, iota, St),
                      axis=1, keepdims=True)
        idx = jnp.minimum(idx, St - 1)      # stay in range even for NaN rows
        onehot = (iota == idx)                                       # (B, St)
        rec_best = jnp.dot(onehot.astype(rec.dtype), rec,
                           precision=prec,
                           preferred_element_type=f32)               # (B, Pp)
        mu_slab = jnp.dot(onehot.astype(f32), g,
                          precision=lax.Precision.HIGHEST,
                          preferred_element_type=f32)                # (B, SLAB)
        small_tile = jnp.where(lane == 0, tile_min, mu_slab)         # (B, SLAB)

        # Running min across S tiles; the output blocks of this VAE block stay
        # resident in VMEM across the whole "arbitrary" sample axis.
        prev = small_ref[v]                                          # (B, SLAB)
        prev_min = jnp.where(is_first, jnp.inf, prev[:, 0:1])        # (B, 1)
        better = jnp.logical_not(tile_min >= prev_min)               # (B, 1)
        rec_ref[v] = jnp.where(better, rec_best, rec_ref[v])
        small_ref[v] = jnp.where(better, small_tile, prev)
        return carry

    # fori_loop (not a static Python unroll) keeps per-VAE temporaries' live
    # ranges bounded even for large v_blk.
    lax.fori_loop(0, v_blk, per_vae, 0)


# ----------------------------------------------------------------------------
# Host-side prep (hoisted out of the per-call hot path)
# ----------------------------------------------------------------------------
def prepare_robust_inference(z, dec_w, dec_b, beta):
    """Precompute call-invariant operands.

    z     : (S, L)     latent samples (RobustInference.z, trailing 1x1 dropped)
    dec_w : (V, L, P)  per-VAE linear decoder weights
    dec_b : (V, P)     per-VAE decoder bias
    """
    S, L = z.shape
    V, L2, P = dec_w.shape
    assert L2 == L and dec_b.shape == (V, P)

    P_pad = ((P + 127) // 128) * 128
    SLAB = ((1 + L + 127) // 128) * 128

    z = z.astype(jnp.float32)
    z_mat = jnp.concatenate([z, jnp.ones((S, 1), jnp.float32)], axis=1)
    z_mat = z_mat.astype(jnp.bfloat16)                                # (S, L+1)

    # Fold the bias into an extra weight row; padded output columns get a
    # large negative bias so sigmoid() == 0 there and padding never leaks
    # into the loss.
    w_aug = jnp.concatenate(
        [dec_w.astype(jnp.float32), dec_b.astype(jnp.float32)[:, None, :]],
        axis=1)                                                       # (V,L+1,P)
    if P_pad != P:
        pad = jnp.zeros((V, L + 1, P_pad - P), jnp.float32)
        pad = pad.at[:, L, :].set(-100.0)
        w_aug = jnp.concatenate([w_aug, pad], axis=2)
    w_slab = w_aug.astype(jnp.bfloat16)                               # (V,L+1,P_pad)

    kld = 0.5 * float(beta) * jnp.sum(z * z, axis=1)[None, :]         # (1, S)
    g = jnp.zeros((S, SLAB), jnp.float32).at[:, 1:1 + L].set(z)       # (S, SLAB)

    return dict(z_mat=z_mat, w_slab=w_slab, kld=kld, g=g,
                S=S, L=L, V=V, P=P, P_pad=P_pad, SLAB=SLAB)


def _num_tensorcores():
    """v7x parts have two TensorCores per chip; earlier generations have one."""
    try:
        kind = jax.devices()[0].device_kind.lower()
    except Exception:
        return 1
    return 2 if ("v7" in kind or "7x" in kind) else 1


def _choose_tiles(V, S, B, L, P_pad, SLAB, rec_bytes, v_blk, s_tile):
    # v_blk: one grid step per TensorCore.  Fewer steps amortize the ~0.35us
    # per-step overhead (v5e/v6e -> a single step); >=2 steps lets the second
    # TensorCore of a v7x do work along the "parallel" VAE axis.
    if v_blk is None:
        v_blk = V // 2 if (_num_tensorcores() >= 2 and V % 2 == 0) else V
    assert V % v_blk == 0, "v_blk must divide the number of VAEs"

    # s_tile: bound the per-VAE (s_tile, P_pad) f32 intermediates so they stay
    # comfortably inside VMEM (v7x: 64 MiB physical, 32 MiB default scoped).
    if s_tile is None:
        s_tile = S
        while s_tile * P_pad * 4 > 8 * 2 ** 20 and s_tile % 256 == 0:
            s_tile //= 2
    assert S % s_tile == 0, "s_tile must divide the number of samples"
    assert s_tile == S or s_tile % 128 == 0, \
        "an S tile must be a multiple of 128 (lane granule of the (B, S) loss)"

    def vmem_bytes(vb, st):
        ins = 2 * (st * (L + 1) * 2                 # z tile (bf16), dbl-buffered
                   + B * P_pad * 4                  # x
                   + B * st * 4                     # base tile
                   + st * SLAB * 4                  # mu gather payload
                   + vb * (L + 1) * P_pad * 2)      # weight block (bf16)
        outs = 2 * vb * B * (P_pad + SLAB) * 4      # resident output blocks
        work = 4 * st * P_pad * rec_bytes           # rec + elementwise temps
        return ins + outs + work

    budget = 48 * 2 ** 20
    while vmem_bytes(v_blk, s_tile) > budget:
        if s_tile % 256 == 0:
            s_tile //= 2
        elif v_blk % 2 == 0 and v_blk > 1:
            v_blk //= 2
        else:
            break

    limit = int(min(64 * 2 ** 20,
                    max(32 * 2 ** 20, 1.5 * vmem_bytes(v_blk, s_tile))))
    return v_blk, s_tile, limit


# ----------------------------------------------------------------------------
# Forward
# ----------------------------------------------------------------------------
def robust_inference_forward(x, prepared, *, v_blk=None, s_tile=None,
                             low_precision=False):
    """RobustInference.forward with gradient_descent_iterations == 0.

    Returns (logits, recs, mus, logvars).  `low_precision=True` keeps the
    decoded reconstructions and loss contractions in bf16 (looser numerics).
    """
    B, C, H, W = x.shape
    S, L, V = prepared["S"], prepared["L"], prepared["V"]
    P, P_pad, SLAB = prepared["P"], prepared["P_pad"], prepared["SLAB"]
    assert P == C * H * W

    rec_dtype = jnp.bfloat16 if low_precision else jnp.float32
    rec_bytes = 2 if low_precision else 4
    v_blk, s_tile, vmem_limit = _choose_tiles(
        V, S, B, L, P_pad, SLAB, rec_bytes, v_blk, s_tile)

    x_flat = x.reshape(B, P).astype(jnp.float32)
    if P_pad != P:
        x_flat = jnp.pad(x_flat, ((0, 0), (0, P_pad - P)))
    # v-invariant loss terms, hoisted out of the kernel:
    #   base(b, s) = ||x_b||^2 + 0.5 * beta * ||z_s||^2
    base = jnp.sum(x_flat * x_flat, axis=1, keepdims=True) + prepared["kld"]
    x_in = x_flat.astype(rec_dtype)

    kernel = functools.partial(_robust_inference_kernel, rec_dtype=rec_dtype)
    grid = (V // v_blk, S // s_tile)

    rec_out, small_out = pl.pallas_call(
        kernel,
        out_shape=(
            jax.ShapeDtypeStruct((V, B, P_pad), jnp.float32),
            jax.ShapeDtypeStruct((V, B, SLAB), jnp.float32),
        ),
        grid_spec=pltpu.PrefetchScalarGridSpec(
            num_scalar_prefetch=0,
            grid=grid,
            in_specs=[
                pl.BlockSpec((s_tile, L + 1), lambda v, s: (s, 0)),        # z
                pl.BlockSpec((B, P_pad), lambda v, s: (0, 0)),             # x
                pl.BlockSpec((B, s_tile), lambda v, s: (0, s)),            # base
                pl.BlockSpec((s_tile, SLAB), lambda v, s: (s, 0)),         # g
                pl.BlockSpec((v_blk, L + 1, P_pad), lambda v, s: (v, 0, 0)),  # W
            ],
            out_specs=[
                pl.BlockSpec((v_blk, B, P_pad), lambda v, s: (v, 0, 0)),
                pl.BlockSpec((v_blk, B, SLAB), lambda v, s: (v, 0, 0)),
            ],
        ),
        compiler_params=pltpu.CompilerParams(
            dimension_semantics=("parallel", "arbitrary"),
            vmem_limit_bytes=vmem_limit,
        ),
    )(prepared["z_mat"], x_in, base, prepared["g"], prepared["w_slab"])

    losses = small_out[:, :, 0]                         # (V, B)
    logits = -jnp.transpose(losses)                     # (B, V)
    recs = rec_out[:, :, :P].reshape(V, B, C, H, W)     # (V, B, C, H, W)
    mus = small_out[:, :, 1:1 + L].reshape(V, B, L, 1, 1)
    logvars = jnp.zeros_like(mus)
    return logits, recs, mus, logvars


def draw_random_latents(key, n_samples, n_latents, fraction_to_dismiss):
    """JAX port of RobustInference.draw_random_latents (the trailing (1, 1)
    broadcast dims are dropped)."""
    assert 0 <= fraction_to_dismiss < 1
    n_draw = int(n_samples / (1 - fraction_to_dismiss))
    z = jax.random.normal(key, (n_draw, n_latents), dtype=jnp.float32)
    if n_draw > n_samples:
        d = jnp.sum(z ** 2, axis=1)
        best = jnp.argsort(d)[:n_samples]
        z = z[best]
    return z


if __name__ == "__main__":
    key = jax.random.PRNGKey(0)
    k_z, k_x, k_w, k_b = jax.random.split(key, 4)

    B, C, H, W = 2, 1, 16, 16      # batch, image (NCHW)
    V = 4                          # number of VAEs (classes)
    S = 256                        # n_samples (latent candidates)
    L = 8                          # n_latents
    P = C * H * W
    beta = 1.0

    z = draw_random_latents(k_z, S, L, fraction_to_dismiss=0.5)
    x = jax.random.uniform(k_x, (B, C, H, W), dtype=jnp.float32)
    dec_w = 0.1 * jax.random.normal(k_w, (V, L, P), dtype=jnp.float32)
    dec_b = 0.1 * jax.random.normal(k_b, (V, P), dtype=jnp.float32)

    prepared = prepare_robust_inference(z, dec_w, dec_b, beta)
    # s_tile=128 forces two S tiles so the running-min accumulation along the
    # "arbitrary" sample axis is exercised; v_blk is chosen per generation.
    logits, recs, mus, logvars = jax.block_until_ready(
        robust_inference_forward(x, prepared, s_tile=128))

    # ---- pure-JAX reference of the same forward pass (correctness check) ---
    # The decoder operands see the same bf16 rounding as the kernel.
    z_mat_r = jnp.concatenate([z, jnp.ones((S, 1), jnp.float32)], axis=1)
    z_mat_r = z_mat_r.astype(jnp.bfloat16).astype(jnp.float32)
    w_aug_r = jnp.concatenate([dec_w, dec_b[:, None, :]], axis=1)
    w_aug_r = w_aug_r.astype(jnp.bfloat16).astype(jnp.float32)
    rec_all = jax.nn.sigmoid(jnp.einsum('sl,vlp->vsp', z_mat_r, w_aug_r))
    x_flat_r = x.reshape(B, P)
    l2 = jnp.sum((rec_all[:, None, :, :] - x_flat_r[None, :, None, :]) ** 2,
                 axis=-1)                                            # (V, B, S)
    kld_r = 0.5 * jnp.sum(z ** 2, axis=1)                            # (S,)
    loss_ref = l2 + beta * kld_r[None, None, :]                      # (V, B, S)
    min_loss = jnp.min(loss_ref, axis=-1)                            # (V, B)

    # The kernel uses the expanded quadratic ||x||^2 - 2<x,rec> + ||rec||^2;
    # on near-tied samples its f32 rounding may legitimately pick a different
    # (equally good) sample, so the check is tie-aware: map each selected mu
    # back to its sample and require that sample to be (near-)optimal and
    # consistently reported.
    mus_k = mus.reshape(V, B, L)
    d = jnp.sum((mus_k[:, :, None, :] - z[None, None, :, :]) ** 2, axis=-1)
    idx_k = jnp.argmin(d, axis=-1)                                   # (V, B)
    assert np.all(np.asarray(jnp.min(d, axis=-1)) < 1e-2), \
        "selected mu does not correspond to any latent sample"

    sel_loss = jnp.take_along_axis(loss_ref, idx_k[..., None], axis=-1)[..., 0]
    assert np.allclose(np.asarray(sel_loss), np.asarray(min_loss),
                       rtol=1e-3, atol=1e-2), "selected sample is not optimal"
    assert np.allclose(np.asarray(logits), np.asarray(-sel_loss.T),
                       rtol=1e-3, atol=1e-2), "reported loss mismatch"

    recs_sel = rec_all[jnp.arange(V)[:, None], idx_k]                # (V, B, P)
    assert np.allclose(np.asarray(recs).reshape(V, B, P),
                       np.asarray(recs_sel), rtol=5e-3, atol=5e-3), \
        "reconstruction mismatch"
    assert np.allclose(np.asarray(mus_k), np.asarray(z[idx_k]),
                       rtol=1e-3, atol=1e-3), "mu mismatch"
    assert logvars.shape == mus.shape and not np.any(np.asarray(logvars))

    print("KERNEL_OK")
</pallas_src>

<mosaic_0001>
module attributes {stable_mosaic.version = 11 : i64} {
  func.func @_robust_inference_kernel(%arg0: i32, %arg1: i32, %arg2: memref<128x9xbf16, #tpu.memory_space<vmem>>, %arg3: memref<2x256xf32, #tpu.memory_space<vmem>>, %arg4: memref<2x128xf32, #tpu.memory_space<vmem>>, %arg5: memref<128x128xf32, #tpu.memory_space<vmem>>, %arg6: memref<4x9x256xbf16, #tpu.memory_space<vmem>>, %arg7: memref<4x2x256xf32, #tpu.memory_space<vmem>>, %arg8: memref<4x2x128xf32, #tpu.memory_space<vmem>>) attributes {dimension_semantics = [#tpu.dimension_semantics<parallel>, #tpu.dimension_semantics<arbitrary>], iteration_bounds = array<i64: 1, 2>, scalar_prefetch = 0 : i64, scratch_operands = 0 : i64, tpu.core_type = #tpu.core_type<tc>, window_params = [{transform_indices = @transform_0, window_bounds = array<i64: 128, 9>}, {pipeline_mode = #tpu.pipeline_mode<synchronous>, transform_indices = @transform_1, window_bounds = array<i64: 2, 256>}, {transform_indices = @transform_2, window_bounds = array<i64: 2, 128>}, {transform_indices = @transform_3, window_bounds = array<i64: 128, 128>}, {transform_indices = @transform_4, window_bounds = array<i64: 4, 9, 256>}, {transform_indices = @transform_5, window_bounds = array<i64: 4, 2, 256>}, {transform_indices = @transform_6, window_bounds = array<i64: 4, 2, 128>}]} {
    %c0_i32 = arith.constant 0 : i32
    %0 = arith.cmpi eq, %arg1, %c0_i32 : i32
    %c0 = arith.constant 0 : index
    %c0_0 = arith.constant 0 : index
    %1 = vector.load %arg2[%c0, %c0_0] : memref<128x9xbf16, #tpu.memory_space<vmem>>, vector<128x9xbf16>
    %c0_1 = arith.constant 0 : index
    %c0_2 = arith.constant 0 : index
    %2 = vector.load %arg3[%c0_1, %c0_2] : memref<2x256xf32, #tpu.memory_space<vmem>>, vector<2x256xf32>
    %c0_3 = arith.constant 0 : index
    %c0_4 = arith.constant 0 : index
    %3 = vector.load %arg4[%c0_3, %c0_4] : memref<2x128xf32, #tpu.memory_space<vmem>>, vector<2x128xf32>
    %c0_5 = arith.constant 0 : index
    %c0_6 = arith.constant 0 : index
    %4 = vector.load %arg5[%c0_5, %c0_6] : memref<128x128xf32, #tpu.memory_space<vmem>>, vector<128x128xf32>
    %5 = tpu.iota {dimensions = array<i32: 1>} : vector<2x128xi32>
    %6 = tpu.iota {dimensions = array<i32: 1>} : vector<2x128xi32>
    %c0_i32_7 = arith.constant 0 : i32
    %c4_i32 = arith.constant 4 : i32
    %7 = arith.addi %c0_i32_7, %c4_i32 : i32
    %c1_i32 = arith.constant 1 : i32
    scf.for %arg9 = %c0_i32_7 to %7 step %c1_i32  : i32 {
      %8 = arith.index_cast %arg9 : i32 to index
      %c0_9 = arith.constant 0 : index
      %c0_10 = arith.constant 0 : index
      %9 = vector.load %arg6[%8, %c0_9, %c0_10] : memref<4x9x256xbf16, #tpu.memory_space<vmem>>, vector<1x9x256xbf16>
      %10 = vector.shape_cast %9 : vector<1x9x256xbf16> to vector<9x256xbf16>
      %cst = arith.constant dense<0.000000e+00> : vector<128x256xf32>
      %11 = tpu.matmul %1, %10, %cst {dimension_numbers = #tpu.dot_dimension_numbers<[1], [0], [0], [1], [0, 0, 1, 1], [], []>} : vector<128x9xbf16>, vector<9x256xbf16>, vector<128x256xf32> -> vector<128x256xf32>
      %12 = arith.negf %11 : vector<128x256xf32>
      %13 = math.exp %12 : vector<128x256xf32>
      %cst_11 = arith.constant 1.000000e+00 : f32
      %14 = vector.broadcast %cst_11 : f32 to vector<128x256xf32>
      %15 = arith.addf %14, %13 : vector<128x256xf32>
      %16 = arith.divf %14, %15 : vector<128x256xf32>
      %cst_12 = arith.constant dense<0.000000e+00> : vector<2x128xf32>
      %17 = tpu.matmul %2, %16, %cst_12 {dimension_numbers = #tpu.dot_dimension_numbers<[1], [1], [0], [0], [0, 0, 1, 0], [], []>, precision = #tpu.contract_precision<fp32>} : vector<2x256xf32>, vector<128x256xf32>, vector<2x128xf32> -> vector<2x128xf32>
      %18 = arith.mulf %16, %16 : vector<128x256xf32>
      %cst_13 = arith.constant dense<0.000000e+00> : vector<128xf32>
      %19 = vector.multi_reduction <add>, %18, %cst_13 [1] : vector<128x256xf32> to vector<128xf32>
      %20 = vector.shape_cast %19 : vector<128xf32> to vector<1x128xf32>
      %cst_14 = arith.constant 2.000000e+00 : f32
      %21 = vector.broadcast %cst_14 : f32 to vector<2x128xf32>
      %22 = arith.mulf %21, %17 : vector<2x128xf32>
      %23 = arith.subf %3, %22 : vector<2x128xf32>
      %24 = vector.broadcast %20 : vector<1x128xf32> to vector<2x128xf32>
      %25 = arith.addf %23, %24 : vector<2x128xf32>
      %cst_15 = arith.constant dense<0x7F800000> : vector<2xf32>
      %26 = vector.multi_reduction <minimumf>, %25, %cst_15 [1] : vector<2x128xf32> to vector<2xf32>
      %27 = vector.shape_cast %26 : vector<2xf32> to vector<2x1xf32>
      %28 = vector.broadcast %27 : vector<2x1xf32> to vector<2x128xf32>
      %29 = arith.cmpf ole, %25, %28 : vector<2x128xf32>
      %c128_i32 = arith.constant 128 : i32
      %30 = vector.broadcast %c128_i32 : i32 to vector<2x128xi32>
      %31 = arith.select %29, %5, %30 : vector<2x128xi1>, vector<2x128xi32>
      %cst_16 = arith.constant dense<2147483647> : vector<2xi32>
      %32 = vector.multi_reduction <minsi>, %31, %cst_16 [1] : vector<2x128xi32> to vector<2xi32>
      %33 = vector.shape_cast %32 : vector<2xi32> to vector<2x1xi32>
      %c127_i32 = arith.constant 127 : i32
      %34 = vector.broadcast %c127_i32 : i32 to vector<2x1xi32>
      %35 = arith.minsi %33, %34 : vector<2x1xi32>
      %36 = vector.broadcast %35 : vector<2x1xi32> to vector<2x128xi32>
      %37 = arith.cmpi eq, %5, %36 : vector<2x128xi32>
      %38 = arith.extui %37 : vector<2x128xi1> to vector<2x128xi32>
      %39 = arith.sitofp %38 : vector<2x128xi32> to vector<2x128xf32>
      %cst_17 = arith.constant dense<0.000000e+00> : vector<2x256xf32>
      %40 = tpu.matmul %39, %16, %cst_17 {dimension_numbers = #tpu.dot_dimension_numbers<[1], [0], [0], [1], [0, 0, 1, 1], [], []>, precision = #tpu.contract_precision<fp32>} : vector<2x128xf32>, vector<128x256xf32>, vector<2x256xf32> -> vector<2x256xf32>
      %41 = arith.extui %37 : vector<2x128xi1> to vector<2x128xi32>
      %42 = arith.sitofp %41 : vector<2x128xi32> to vector<2x128xf32>
      %cst_18 = arith.constant dense<0.000000e+00> : vector<2x128xf32>
      %43 = tpu.matmul %42, %4, %cst_18 {dimension_numbers = #tpu.dot_dimension_numbers<[1], [0], [0], [1], [0, 0, 1, 1], [], []>, precision = #tpu.contract_precision<fp32>} : vector<2x128xf32>, vector<128x128xf32>, vector<2x128xf32> -> vector<2x128xf32>
      %c0_i32_19 = arith.constant 0 : i32
      %44 = vector.broadcast %c0_i32_19 : i32 to vector<2x128xi32>
      %45 = arith.cmpi eq, %6, %44 : vector<2x128xi32>
      %46 = vector.shape_cast %27 : vector<2x1xf32> to vector<2x1xf32>
      %47 = vector.broadcast %46 : vector<2x1xf32> to vector<2x128xf32>
      %48 = arith.select %45, %47, %43 : vector<2x128xi1>, vector<2x128xf32>
      %49 = arith.index_cast %arg9 : i32 to index
      %c0_20 = arith.constant 0 : index
      %c0_21 = arith.constant 0 : index
      %50 = vector.load %arg8[%49, %c0_20, %c0_21] : memref<4x2x128xf32, #tpu.memory_space<vmem>>, vector<1x2x128xf32>
      %51 = vector.shape_cast %50 : vector<1x2x128xf32> to vector<2x128xf32>
      %52 = vector.extract_strided_slice %51 {offsets = [0, 0], sizes = [2, 1], strides = [1, 1]} : vector<2x128xf32> to vector<2x1xf32>
      %cst_22 = arith.constant 0x7F800000 : f32
      %53 = vector.broadcast %cst_22 : f32 to vector<2x1xf32>
      %54 = arith.select %0, %53, %52 : vector<2x1xf32>
      %55 = arith.cmpf oge, %27, %54 : vector<2x1xf32>
      %cst_23 = arith.constant dense<true> : vector<2x1xi1>
      %56 = arith.xori %55, %cst_23 : vector<2x1xi1>
      %57 = arith.index_cast %arg9 : i32 to index
      %c0_24 = arith.constant 0 : index
      %c0_25 = arith.constant 0 : index
      %58 = vector.load %arg7[%57, %c0_24, %c0_25] : memref<4x2x256xf32, #tpu.memory_space<vmem>>, vector<1x2x256xf32>
      %59 = vector.shape_cast %58 : vector<1x2x256xf32> to vector<2x256xf32>
      %60 = vector.shape_cast %56 : vector<2x1xi1> to vector<2x1xi1>
      %61 = vector.broadcast %60 : vector<2x1xi1> to vector<2x256xi1>
      %62 = arith.select %61, %40, %59 : vector<2x256xi1>, vector<2x256xf32>
      %63 = arith.index_cast %arg9 : i32 to index
      %c0_26 = arith.constant 0 : index
      %c0_27 = arith.constant 0 : index
      %64 = vector.load %arg7[%63, %c0_26, %c0_27] : memref<4x2x256xf32, #tpu.memory_space<vmem>>, vector<1x2x256xf32>
      %65 = vector.shape_cast %64 : vector<1x2x256xf32> to vector<2x256xf32>
      %66 = vector.shape_cast %62 : vector<2x256xf32> to vector<1x2x256xf32>
      tpu.vector_store %arg7[%63, %c0_26, %c0_27], %66 {strides = array<i32>} : memref<4x2x256xf32, #tpu.memory_space<vmem>>, vector<1x2x256xf32>,
      %67 = vector.shape_cast %56 : vector<2x1xi1> to vector<2x1xi1>
      %68 = vector.broadcast %67 : vector<2x1xi1> to vector<2x128xi1>
      %69 = arith.select %68, %48, %51 : vector<2x128xi1>, vector<2x128xf32>
      %70 = arith.index_cast %arg9 : i32 to index
      %c0_28 = arith.constant 0 : index
      %c0_29 = arith.constant 0 : index
      %71 = vector.load %arg8[%70, %c0_28, %c0_29] : memref<4x2x128xf32, #tpu.memory_space<vmem>>, vector<1x2x128xf32>
      %72 = vector.shape_cast %71 : vector<1x2x128xf32> to vector<2x128xf32>
      %73 = vector.shape_cast %69 : vector<2x128xf32> to vector<1x2x128xf32>
      tpu.vector_store %arg8[%70, %c0_28, %c0_29], %73 {strides = array<i32>} : memref<4x2x128xf32, #tpu.memory_space<vmem>>, vector<1x2x128xf32>,
    }
    %c4_i32_8 = arith.constant 4 : i32
    return
  }
  func.func @transform_0(%arg0: i32, %arg1: i32) -> (i32, i32) {
    %c0_i32 = arith.constant 0 : i32
    %c0_i32_0 = arith.constant 0 : i32
    return %arg1, %c0_i32 : i32, i32
  }
  func.func @transform_1(%arg0: i32, %arg1: i32) -> (i32, i32) {
    %c0_i32 = arith.constant 0 : i32
    %c0_i32_0 = arith.constant 0 : i32
    %c0_i32_1 = arith.constant 0 : i32
    return %c0_i32, %c0_i32_0 : i32, i32
  }
  func.func @transform_2(%arg0: i32, %arg1: i32) -> (i32, i32) {
    %c0_i32 = arith.constant 0 : i32
    %c0_i32_0 = arith.constant 0 : i32
    return %c0_i32, %arg1 : i32, i32
  }
  func.func @transform_3(%arg0: i32, %arg1: i32) -> (i32, i32) {
    %c0_i32 = arith.constant 0 : i32
    %c0_i32_0 = arith.constant 0 : i32
    return %arg1, %c0_i32 : i32, i32
  }
  func.func @transform_4(%arg0: i32, %arg1: i32) -> (i32, i32, i32) {
    %c0_i32 = arith.constant 0 : i32
    %c0_i32_0 = arith.constant 0 : i32
    %c0_i32_1 = arith.constant 0 : i32
    return %arg0, %c0_i32, %c0_i32_0 : i32, i32, i32
  }
  func.func @transform_5(%arg0: i32, %arg1: i32) -> (i32, i32, i32) {
    %c0_i32 = arith.constant 0 : i32
    %c0_i32_0 = arith.constant 0 : i32
    %c0_i32_1 = arith.constant 0 : i32
    return %arg0, %c0_i32, %c0_i32_0 : i32, i32, i32
  }
  func.func @transform_6(%arg0: i32, %arg1: i32) -> (i32, i32, i32) {
    %c0_i32 = arith.constant 0 : i32
    %c0_i32_0 = arith.constant 0 : i32
    %c0_i32_1 = arith.constant 0 : i32
    return %arg0, %c0_i32, %c0_i32_0 : i32, i32, i32
  }
}

</mosaic_0001>

<llo_original>
// kernel: tpu_custom_call.1
$region0: #{tpu_custom_call.1}
  #allocation0 [shape = 'u32[]', space=smem, size = 0x4, offset = 0x4, fixed_abs, tag = 'smem constant byte address 0x4 - core index']
  #allocation1 [shape = 'u32[144,128]{1,0:T(1,128)}', space=vmem, size = 0x12000, scoped, tag = 'internal scratch']
  %s0 = inlined_call_operand.vmem [shape: bf16[256,9], index: 0, kind: input, shape index: {}]
  %s1 = inlined_call_operand.vmem [shape: f32[2,256], index: 1, kind: input, shape index: {}]
  %s2 = inlined_call_operand.vmem [shape: f32[2,256], index: 2, kind: input, shape index: {}]
  %s3 = inlined_call_operand.hbm [shape: f32[256,128], index: 3, kind: input, shape index: {}]
  %s4 = inlined_call_operand.vmem [shape: bf16[4,9,256], index: 4, kind: input, shape index: {}]
  %s5 = inlined_call_operand.hbm [shape: f32[4,2,256], index: 5, kind: output, shape index: {0}]
  %s6 = inlined_call_operand.hbm [shape: f32[4,2,128], index: 6, kind: output, shape index: {1}]
  %7 = xla_tuple %s5, %s6
  %s8 = sld [smem:[#allocation0]]
  $region72: #{tpu_custom_call.1} parent=0
    _
  %s10 = ssub.s32 1, %s8
  %s11 = scalar_select 0, %s10, %s8
  $region1: #{tpu_custom_call.1} parent=0
    #allocation2 [shape = 'u8[131072]{0}', space=vmem, size = 0x20000, scoped, tag = 'input window, operand 3']
    #allocation3 [shape = 's32[2]{0}', space=sflag, size = 0x8, scoped, tag = 'scoped memory for tpu_custom_call.1']
    #allocation4 [shape = 's32[2]{0}', space=sflag, size = 0x8, scoped, tag = 'scoped memory for tpu_custom_call.1']
    #allocation5 [shape = 'u8[8192]{0}', space=vmem, size = 0x2000, scoped, tag = 'output window, operand 0, single buffered']
    #allocation6 [shape = 'u8[4096]{0}', space=vmem, size = 0x1000, scoped, tag = 'output window, operand 1, single buffered']
    #allocation7 [shape = 's32[1]{0}', space=sflag, size = 0x4, scoped, tag = 'scoped memory for tpu_custom_call.1']
    %12 = vsyncpa [#allocation3], 0
    %s13 = scalar_lea.sflag [#allocation3], 1
    %14 = vsyncpa %s13, 0
    %15 = vsyncpa [#allocation4], 0
    %16 = vsyncpa [#allocation7], 0
    loop: start=0, step=1, limit=4
    $region2: #{tpu_custom_call.1} parent=1 // loop_pre_header
      _
    $region3: #{tpu_custom_call.1} parent=1 // loop_header
      %s18 = sphi 0, %s22
      %p19 = scmp.ge.s32.totalorder %s18, 4
      %s25 = sphi 0, %s37
      %s26 = sphi 0, %s33
      %s27 = sphi 0, %s25
      %s28 = sphi 0, %s26
      %s29 = sphi 0, %s27
      %s30 = sphi 0, %s28
      %s40 = sphi 0, %s42
      %s43 = sphi 0, %s40
      %s44 = sphi 0, %s43
      %s60 = sphi 0, %s44
      %s64 = sphi 0, %s64
      %s66 = sphi 0, %s64
      %s67 = sphi 0, %s66
      %s81 = sphi 0, %s67
      %s87 = sphi 0, %s89
      %s90 = sphi 0, %s87
      %s91 = sphi 0, %s90
      %s107 = sphi 0, %s91
      %s113 = sphi 0, %s115
      %s116 = sphi 0, %s113
      %s117 = sphi 0, %s116
      %s133 = sphi 0, %s117
      %s139 = sphi 0, %s141
      %s142 = sphi 0, %s139
      %s143 = sphi 0, %s142
      %s159 = sphi 0, %s143
      %s165 = sphi 0, %s167
      %s168 = sphi 0, %s165
      %s169 = sphi 0, %s168
      %s185 = sphi 0, %s169
      %s191 = sphi 0, %s193
      %s194 = sphi 0, %s191
      %s195 = sphi 0, %s194
      %s211 = sphi 0, %s195
    $region4: #{tpu_custom_call.1} parent=1 // loop_header_branch
      %21 = sbr.rel (%p19) target = $region8
    $region5: #{tpu_custom_call.1} parent=1 // loop_body
      %s23 = ssub.s32 %s18, 1
      %s24 = ssub.s32 %s18, 2
      %s31 = sadd.s32 1, %s26
      %p32 = scmp.ge.s32.totalorder %s31, 2
      %s33 = scalar_select %p32, 0, %s31
      %s34 = sadd.s32 1, %s25
      %s35 = scalar_select %p32, %s34, %s25
      %p36 = scmp.ge.s32.totalorder %s35, 1
      %s37 = scalar_select %p36, 0, %s35
      %s38 = ssub.s32 %s26, %s33
      %p39 = scmp.eq.s32.totalorder %s38, 0
      %s41 = sadd.s32 %s40, 1
      %s42 = scalar_select %p39, %s40, %s41
      %p45 = pneg %p39
      %p46 = scmp.eq.s32.totalorder %s18, 1
      %p47 = por %p45, %p46
      %p48 = scmp.ne.s32.totalorder %s40, %s43
      %p49 = scmp.eq.s32.totalorder %s18, 0
      %p50 = por %p48, %p49
      %p51 = scmp.ne.s32.totalorder %s40, %s43
      %p52 = scmp.eq.s32.totalorder %s23, 1
      %p53 = por %p51, %p52
      %p54 = scmp.ne.s32.totalorder %s43, %s44
      %p55 = scmp.eq.s32.totalorder %s23, 0
      %p56 = por %p54, %p55
      %p57 = scmp.ne.s32.totalorder %s43, %s44
      %p58 = scmp.eq.s32.totalorder %s24, 1
      %p59 = por %p57, %p58
      %p61 = scmp.ne.s32.totalorder %s44, %s60
      %p62 = scmp.eq.s32.totalorder %s24, 0
      %p63 = por %p61, %p62
      %s65 = sadd.s32 %s64, 1
      %p68 = scmp.eq.s32.totalorder %s18, 1
      %p69 = scmp.ne.s32.totalorder %s64, %s66
      %p70 = scmp.eq.s32.totalorder %s18, 0
      %p71 = por %p69, %p70
      %p72 = scmp.ne.s32.totalorder %s64, %s66
      %p73 = scmp.eq.s32.totalorder %s23, 1
      %p74 = por %p72, %p73
      %p75 = scmp.ne.s32.totalorder %s66, %s67
      %p76 = scmp.eq.s32.totalorder %s23, 0
      %p77 = por %p75, %p76
      %p78 = scmp.ne.s32.totalorder %s66, %s67
      %p79 = scmp.eq.s32.totalorder %s24, 1
      %p80 = por %p78, %p79
      %p82 = scmp.ne.s32.totalorder %s67, %s81
      %p83 = scmp.eq.s32.totalorder %s24, 0
      %p84 = por %p82, %p83
      %s85 = ssub.s32 %s26, %s33
      %p86 = scmp.eq.s32.totalorder %s85, 0
      %s88 = sadd.s32 %s87, 1
      %s89 = scalar_select %p86, %s87, %s88
      %p92 = pneg %p86
      %p93 = scmp.eq.s32.totalorder %s18, 1
      %p94 = por %p92, %p93
      %p95 = scmp.ne.s32.totalorder %s87, %s90
      %p96 = scmp.eq.s32.totalorder %s18, 0
      %p97 = por %p95, %p96
      %p98 = scmp.ne.s32.totalorder %s87, %s90
      %p99 = scmp.eq.s32.totalorder %s23, 1
      %p100 = por %p98, %p99
      %p101 = scmp.ne.s32.totalorder %s90, %s91
      %p102 = scmp.eq.s32.totalorder %s23, 0
      %p103 = por %p101, %p102
      %p104 = scmp.ne.s32.totalorder %s90, %s91
      %p105 = scmp.eq.s32.totalorder %s24, 1
      %p106 = por %p104, %p105
      %p108 = scmp.ne.s32.totalorder %s91, %s107
      %p109 = scmp.eq.s32.totalorder %s24, 0
      %p110 = por %p108, %p109
      %s111 = ssub.s32 %s26, %s33
      %p112 = scmp.eq.s32.totalorder %s111, 0
      %s114 = sadd.s32 %s113, 1
      %s115 = scalar_select %p112, %s113, %s114
      %p118 = pneg %p112
      %p119 = scmp.eq.s32.totalorder %s18, 1
      %p120 = por %p118, %p119
      %p121 = scmp.ne.s32.totalorder %s113, %s116
      %p122 = scmp.eq.s32.totalorder %s18, 0
      %p123 = por %p121, %p122
      %p124 = scmp.ne.s32.totalorder %s113, %s116
      %p125 = scmp.eq.s32.totalorder %s23, 1
      %p126 = por %p124, %p125
      %p127 = scmp.ne.s32.totalorder %s116, %s117
      %p128 = scmp.eq.s32.totalorder %s23, 0
      %p129 = por %p127, %p128
      %p130 = scmp.ne.s32.totalorder %s116, %s117
      %p131 = scmp.eq.s32.totalorder %s24, 1
      %p132 = por %p130, %p131
      %p134 = scmp.ne.s32.totalorder %s117, %s133
      %p135 = scmp.eq.s32.totalorder %s24, 0
      %p136 = por %p134, %p135
      %s137 = ssub.s32 %s25, %s37
      %p138 = scmp.eq.s32.totalorder %s137, 0
      %s140 = sadd.s32 %s139, 1
      %s141 = scalar_select %p138, %s139, %s140
      %p144 = pneg %p138
      %p145 = scmp.eq.s32.totalorder %s18, 1
      %p146 = por %p144, %p145
      %p147 = scmp.ne.s32.totalorder %s139, %s142
      %p148 = scmp.eq.s32.totalorder %s18, 0
      %p149 = por %p147, %p148
      %p150 = scmp.ne.s32.totalorder %s139, %s142
      %p151 = scmp.eq.s32.totalorder %s23, 1
      %p152 = por %p150, %p151
      %p153 = scmp.ne.s32.totalorder %s142, %s143
      %p154 = scmp.eq.s32.totalorder %s23, 0
      %p155 = por %p153, %p154
      %p156 = scmp.ne.s32.totalorder %s142, %s143
      %p157 = scmp.eq.s32.totalorder %s24, 1
      %p158 = por %p156, %p157
      %p160 = scmp.ne.s32.totalorder %s143, %s159
      %p161 = scmp.eq.s32.totalorder %s24, 0
      %p162 = por %p160, %p161
      %s163 = ssub.s32 %s25, %s37
      %p164 = scmp.eq.s32.totalorder %s163, 0
      %s166 = sadd.s32 %s165, 1
      %s167 = scalar_select %p164, %s165, %s166
      %p170 = pneg %p164
      %p171 = scmp.eq.s32.totalorder %s18, 1
      %p172 = por %p170, %p171
      %p173 = scmp.ne.s32.totalorder %s165, %s168
      %p174 = scmp.eq.s32.totalorder %s18, 0
      %p175 = por %p173, %p174
      %p176 = scmp.ne.s32.totalorder %s165, %s168
      %p177 = scmp.eq.s32.totalorder %s23, 1
      %p178 = por %p176, %p177
      %p179 = scmp.ne.s32.totalorder %s168, %s169
      %p180 = scmp.eq.s32.totalorder %s23, 0
      %p181 = por %p179, %p180
      %p182 = scmp.ne.s32.totalorder %s168, %s169
      %p183 = scmp.eq.s32.totalorder %s24, 1
      %p184 = por %p182, %p183
      %p186 = scmp.ne.s32.totalorder %s169, %s185
      %p187 = scmp.eq.s32.totalorder %s24, 0
      %p188 = por %p186, %p187
      %s189 = ssub.s32 %s25, %s37
      %p190 = scmp.eq.s32.totalorder %s189, 0
      %s192 = sadd.s32 %s191, 1
      %s193 = scalar_select %p190, %s191, %s192
      %p196 = pneg %p190
      %p197 = scmp.eq.s32.totalorder %s18, 1
      %p198 = por %p196, %p197
      %p199 = scmp.ne.s32.totalorder %s191, %s194
      %p200 = scmp.eq.s32.totalorder %s18, 0
      %p201 = por %p199, %p200
      %p202 = scmp.ne.s32.totalorder %s191, %s194
      %p203 = scmp.eq.s32.totalorder %s23, 1
      %p204 = por %p202, %p203
      %p205 = scmp.ne.s32.totalorder %s194, %s195
      %p206 = scmp.eq.s32.totalorder %s23, 0
      %p207 = por %p205, %p206
      %p208 = scmp.ne.s32.totalorder %s194, %s195
      %p209 = scmp.eq.s32.totalorder %s24, 1
      %p210 = por %p208, %p209
      %p212 = scmp.ne.s32.totalorder %s195, %s211
      %p213 = scmp.eq.s32.totalorder %s24, 0
      %p214 = por %p212, %p213
      %p215 = scmp.le.s32.totalorder 1, %s18
      %p216 = scmp.lt.s32.totalorder %s18, 3
      %p217 = pnand %p215, %p216
      %p218 = pneg %p217
      // Predicated region
      $region9: #{tpu_custom_call.1} parent=5 // pred_check
        _
      $region10: #{tpu_custom_call.1} parent=5 // pred_check_branch
        %220 = sbr.rel (%p217) target = $region12
      $region11: #{tpu_custom_call.1} parent=5 // pred_region
        %s221 = ssub.s32 %s18, 1
        // Predicated region
        $region13: #{tpu_custom_call.1} parent=11 // pred_check
          %p222 = pneg %p77
        $region14: #{tpu_custom_call.1} parent=11 // pred_check_branch
          %224 = sbr.rel (%p222) target = $region16
        $region15: #{tpu_custom_call.1} parent=11 // pred_region
          _
        $region16: #{tpu_custom_call.1} parent=11 // pred_fallthru
          _
        // Predicated region
        $region17: #{tpu_custom_call.1} parent=11 // pred_check
          %p225 = pneg %p155
        $region18: #{tpu_custom_call.1} parent=11 // pred_check_branch
          %227 = sbr.rel (%p225) target = $region20
        $region19: #{tpu_custom_call.1} parent=11 // pred_region
          %s228 = smul.u32 4, %s27
          %p229 = scmp.lt.s32.totalorder %s228, 3
          %s230 = scalar_select %p229, %s228, 3
          %s231 = smul.addr %s230, 4
          %s232 = smul.addr %s231, 4
          %s233 = scalar_lea.vmem %s4, %s232
          %s234 = smul.u32 4, %s27
        $region20: #{tpu_custom_call.1} parent=11 // pred_fallthru
          _
      $region12: #{tpu_custom_call.1} parent=5 // pred_fallthru
        _
      %p235 = scmp.lt.s32.totalorder %s18, 2
      // Predicated region
      $region21: #{tpu_custom_call.1} parent=5 // pred_check
        %p236 = pneg %p235
      $region22: #{tpu_custom_call.1} parent=5 // pred_check_branch
        %238 = sbr.rel (%p236) target = $region24
      $region23: #{tpu_custom_call.1} parent=5 // pred_region
        // Predicated region
        $region25: #{tpu_custom_call.1} parent=23 // pred_check
          %p239 = pneg %p50
        $region26: #{tpu_custom_call.1} parent=23 // pred_check_branch
          %241 = sbr.rel (%p239) target = $region28
        $region27: #{tpu_custom_call.1} parent=23 // pred_region
          %s242 = smul.u32 16, %s26
          %p243 = scmp.lt.s32.totalorder %s242, 31
          %s244 = scalar_select %p243, %s242, 31
          %s245 = smul.addr %s244, 4
          %s246 = scalar_lea.vmem %s0, %s245
          %s247 = smul.u32 16, %s26
        $region28: #{tpu_custom_call.1} parent=23 // pred_fallthru
          _
        // Predicated region
        $region29: #{tpu_custom_call.1} parent=23 // pred_check
          %p248 = pneg %p97
        $region30: #{tpu_custom_call.1} parent=23 // pred_check_branch
          %250 = sbr.rel (%p248) target = $region32
        $region31: #{tpu_custom_call.1} parent=23 // pred_region
          %p251 = scmp.lt.s32.totalorder %s26, 1
          %s252 = scalar_select %p251, %s26, 1
          %s253 = smul.addr %s252, 2
          %s254 = scalar_lea.vmem %s2, %s253
        $region32: #{tpu_custom_call.1} parent=23 // pred_fallthru
          _
        // Predicated region
        $region33: #{tpu_custom_call.1} parent=23 // pred_check
          %p255 = pneg %p123
        $region34: #{tpu_custom_call.1} parent=23 // pred_check_branch
          %257 = sbr.rel (%p255) target = $region36
        $region35: #{tpu_custom_call.1} parent=23 // pred_region
          %s258 = sand.u32 %s113, 1
          %s259 = scalar_lea.sflag [#allocation3], %s258
          %s260 = sand.u32 %s113, 1
          %s261 = smul.addr %s260, 128
          %s262 = scalar_lea.vmem [#allocation2], %s261
          %s263 = smul.u32 16, %s26
          %s265 = ssub.s32 2048, 2048
          %266 = vsyncadd %s259, %s265
          %s267 = smul.addr %s263, 128
          %s268 = scalar_lea.hbm %s3, %s267
          %s269 = sshll.u32 %s262, 4
          %s270 = int_to_ptr.vmem [resolvable:$true] %s269
          %275 = dma.hbm_to_vmem [thread:$0]  %s268, 2048, %s270, %s259, 128, 128, 8
        $region36: #{tpu_custom_call.1} parent=23 // pred_fallthru
          _
      $region24: #{tpu_custom_call.1} parent=5 // pred_fallthru
        _
      %p276 = scmp.le.s32.totalorder 1, %s18
      %p277 = scmp.lt.s32.totalorder %s18, 3
      %p278 = pnand %p276, %p277
      %p279 = pneg %p278
      // Predicated region
      $region37: #{tpu_custom_call.1} parent=5 // pred_check
        _
      $region38: #{tpu_custom_call.1} parent=5 // pred_check_branch
        %281 = sbr.rel (%p278) target = $region40
      $region39: #{tpu_custom_call.1} parent=5 // pred_region
        %s282 = ssub.s32 %s18, 1
        %s283 = sand.u32 %s116, 1
        %s284 = scalar_lea.sflag [#allocation3], %s283
        %s285 = sand.u32 %s116, 1
        %s286 = smul.addr %s285, 128
        %s287 = scalar_lea.vmem [#allocation2], %s286
        // Predicated region
        $region41: #{tpu_custom_call.1} parent=39 // pred_check
          %p288 = pneg %p129
        $region42: #{tpu_custom_call.1} parent=39 // pred_check_branch
          %290 = sbr.rel (%p288) target = $region44
        $region43: #{tpu_custom_call.1} parent=39 // pred_region
          %291 = dma.done %s284, 2048
        $region44: #{tpu_custom_call.1} parent=39 // pred_fallthru
          _
        %s292 = smul.u32 16, %s28
        %p293 = scmp.lt.s32.totalorder %s292, 31
        %s294 = scalar_select %p293, %s292, 31
        %s295 = smul.addr %s294, 4
        %s296 = scalar_lea.vmem %s0, %s295
        %p297 = pneg %p56
        %p298 = pneg %p53
        %p299 = pneg %p77
        %p300 = pneg %p74
        %p301 = scmp.lt.s32.totalorder %s28, 1
        %s302 = scalar_select %p301, %s28, 1
        %s303 = smul.addr %s302, 2
        %s304 = scalar_lea.vmem %s2, %s303
        %p305 = pneg %p103
        %p306 = pneg %p100
        %s307 = sand.u32 %s116, 1
        %s308 = scalar_lea.sflag [#allocation3], %s307
        %s309 = sand.u32 %s116, 1
        %s310 = smul.addr %s309, 128
        %s311 = scalar_lea.vmem [#allocation2], %s310
        %p312 = pneg %p129
        %p313 = pneg %p126
        %s314 = smul.u32 4, %s27
        %p315 = scmp.lt.s32.totalorder %s314, 3
        %s316 = scalar_select %p315, %s314, 3
        %s317 = smul.addr %s316, 4
        %s318 = smul.addr %s317, 4
        %s319 = scalar_lea.vmem %s4, %s318
        %p320 = pneg %p155
        %p321 = pneg %p152
        %p322 = pneg %p181
        %p323 = pneg %p178
        %p324 = pneg %p207
        %p325 = pneg %p204
        %s326 = smul.u32 16, %s28
        %p327 = scmp.lt.s32.totalorder %s326, 31
        %s328 = scalar_select %p327, %s326, 31
        %s329 = smul.addr %s328, 4
        %s330 = scalar_lea.vmem %s0, %s329
        %s331 = smul.u32 16, %s28
        %p332 = scmp.lt.s32.totalorder %s28, 1
        %s333 = scalar_select %p332, %s28, 1
        %s334 = smul.addr %s333, 2
        %s335 = scalar_lea.vmem %s2, %s334
        %s336 = smul.u32 16, %s28
        %s337 = smul.u32 4, %s27
        %p338 = scmp.lt.s32.totalorder %s337, 3
        %s339 = scalar_select %p338, %s337, 3
        %s340 = smul.addr %s339, 4
        %s341 = smul.addr %s340, 4
        %s342 = scalar_lea.vmem %s4, %s341
        %s343 = smul.u32 4, %s27
        %s344 = smul.u32 4, %s27
        %s345 = smul.u32 4, %s27
        %p347 = scmp.eq.s32.totalorder %s28, 0
        %v348 = vld [vmem:[%s330] sm:$0xf]
        %v349 = vld [vmem:[%s330 + $0x4] sm:$0xf]
        %v350 = vld [vmem:[%s330 + $0x8] sm:$0xf]
        %v351 = vld [vmem:[%s330 + $0xc] sm:$0xf]
        %v352 = vld [vmem:[%s330 + $0x10] sm:$0xf]
        %v353 = vld [vmem:[%s330 + $0x14] sm:$0xf]
        %v354 = vld [vmem:[%s330 + $0x18] sm:$0xf]
        %v355 = vld [vmem:[%s330 + $0x1c] sm:$0xf]
        %v356 = vld [vmem:[%s330 + $0x20] sm:$0xf]
        %v357 = vld [vmem:[%s330 + $0x24] sm:$0xf]
        %v358 = vld [vmem:[%s330 + $0x28] sm:$0xf]
        %v359 = vld [vmem:[%s330 + $0x2c] sm:$0xf]
        %v360 = vld [vmem:[%s330 + $0x30] sm:$0xf]
        %v361 = vld [vmem:[%s330 + $0x34] sm:$0xf]
        %v362 = vld [vmem:[%s330 + $0x38] sm:$0xf]
        %v363 = vld [vmem:[%s330 + $0x3c] sm:$0xf]
        %v364 = vld [vmem:[%s1] sm:$0xf]
        %v365 = vld [vmem:[%s335] sm:$0x3]
        %v366 = vld [vmem:[%s287] sm:$0xff]
        %v367 = vld [vmem:[%s287 + $0x8] sm:$0xff]
        %v368 = vld [vmem:[%s287 + $0x10] sm:$0xff]
        %v369 = vld [vmem:[%s287 + $0x18] sm:$0xff]
        %v370 = vld [vmem:[%s287 + $0x20] sm:$0xff]
        %v371 = vld [vmem:[%s287 + $0x28] sm:$0xff]
        %v372 = vld [vmem:[%s287 + $0x30] sm:$0xff]
        %v373 = vld [vmem:[%s287 + $0x38] sm:$0xff]
        %v374 = vld [vmem:[%s287 + $0x40] sm:$0xff]
        %v375 = vld [vmem:[%s287 + $0x48] sm:$0xff]
        %v376 = vld [vmem:[%s287 + $0x50] sm:$0xff]
        %v377 = vld [vmem:[%s287 + $0x58] sm:$0xff]
        %v378 = vld [vmem:[%s287 + $0x60] sm:$0xff]
        %v379 = vld [vmem:[%s287 + $0x68] sm:$0xff]
        %v380 = vld [vmem:[%s287 + $0x70] sm:$0xff]
        %v381 = vld [vmem:[%s287 + $0x78] sm:$0xff]
        %v382 = vlaneseq
        %v383 = vand.u32 %v382, 127
        loop: start=0, step=1, limit=4
        $region45: #{tpu_custom_call.1} parent=39 // loop_pre_header
          _
        $region46: #{tpu_custom_call.1} parent=39 // loop_header
          %s385 = sphi 0, %s389
          %p386 = scmp.ge.s32.totalorder %s385, 4
        $region47: #{tpu_custom_call.1} parent=39 // loop_header_branch
          %388 = sbr.rel (%p386) target = $region51
        $region48: #{tpu_custom_call.1} parent=39 // loop_body
          %s390 = smul.u32 %s385, 4
          %s391 = smul.addr %s390, 4
          %s392 = scalar_lea.vmem %s342, %s391
          %v393 = vld [vmem:[%s392] sm:$0xff]
          %v394 = vld [vmem:[%s392 + $0x8] sm:$0x11]
          %v411 = vunpack.c.l.b16 %v348
          %v412 = vunpack.c.l.b16 %v349
          %v413 = vunpack.c.l.b16 %v350
          %v414 = vunpack.c.l.b16 %v351
          %v415 = vunpack.c.l.b16 %v352
          %v416 = vunpack.c.l.b16 %v353
          %v417 = vunpack.c.l.b16 %v354
          %v418 = vunpack.c.l.b16 %v355
          %v419 = vunpack.c.l.b16 %v356
          %v420 = vunpack.c.l.b16 %v357
          %v421 = vunpack.c.l.b16 %v358
          %v422 = vunpack.c.l.b16 %v359
          %v423 = vunpack.c.l.b16 %v360
          %v424 = vunpack.c.l.b16 %v361
          %v425 = vunpack.c.l.b16 %v362
          %v426 = vunpack.c.l.b16 %v363
          %v427 = vpack.c.b16 %v412, %v411
          %v428 = vpack.c.b16 %v414, %v413
          %v429 = vpack.c.b16 %v416, %v415
          %v430 = vpack.c.b16 %v418, %v417
          %v431 = vpack.c.b16 %v420, %v419
          %v432 = vpack.c.b16 %v422, %v421
          %v433 = vpack.c.b16 %v424, %v423
          %v434 = vpack.c.b16 %v426, %v425
          %v437 = vunpack.c.l.b16 %v393
          %v438 = vunpack.c.h.b16 %v393
          %v439 = vunpack.c.l.b16 %v394
          %v440 = vunpack.c.h.b16 %v394
          %v441 = vpack.c.b16 %v439, %v437
          %v442 = vpack.c.b16 %v440, %v438
          %vm443 = vcmask 72704
          %v445 = vsel %vm443, %v427, 0
          %v448 = vsel %vm443, %v428, 0
          %v451 = vsel %vm443, %v429, 0
          %v454 = vsel %vm443, %v430, 0
          %v457 = vsel %vm443, %v431, 0
          %v460 = vsel %vm443, %v432, 0
          %v463 = vsel %vm443, %v433, 0
          %v466 = vsel %vm443, %v434, 0
          %vm468 = vcmask 1043456
          %vm469 = vcmask 1044480
          %v470 = vsel %vm468, 4294967295, 65535
          %v471 = vsel %vm469, %v470, 0
          %v473 = vand.u32 %v441, %v471
          %v476 = vand.u32 %v442, %v471
          %478 = vmatprep.subr.bf16.mxu0 %v476
          %479 = vmatpush1.bf16.msra.mxu0 %v473
          %480 = vmatprep.subr.bf16.mxu0 0
          %481 = vmatpush1.bf16.msra.mxu0 0
          %482 = vmatprep.subr.bf16.mxu0 0
          %483 = vmatpush1.bf16.msra.mxu0 0
          %484 = vmatprep.subr.bf16.mxu0 0
          %485 = vmatpush1.bf16.msra.mxu0 0
          %486 = vmatprep.subr.bf16.mxu0 0
          %487 = vmatpush1.bf16.msra.mxu0 0
          %488 = vmatprep.subr.bf16.mxu0 0
          %489 = vmatpush1.bf16.msra.mxu0 0
          %490 = vmatprep.subr.bf16.mxu0 0
          %491 = vmatpush1.bf16.msra.mxu0 0
          %492 = vmatprep.subr.bf16.mxu0 0
          %493 = vmatpush1.bf16.msra.mxu0 0
          %494 = vmatprep.subr.bf16.mxu0 0
          %495 = vmatpush1.bf16.msra.mxu0 0
          %496 = vmatprep.subr.bf16.mxu0 0
          %497 = vmatpush1.bf16.msra.mxu0 0
          %498 = vmatprep.subr.bf16.mxu0 0
          %499 = vmatpush1.bf16.msra.mxu0 0
          %500 = vmatprep.subr.bf16.mxu0 0
          %501 = vmatpush1.bf16.msra.mxu0 0
          %502 = vmatprep.subr.bf16.mxu0 0
          %503 = vmatpush1.bf16.msra.mxu0 0
          %504 = vmatprep.subr.bf16.mxu0 0
          %505 = vmatpush1.bf16.msra.mxu0 0
          %506 = vmatprep.subr.bf16.mxu0 0
          %507 = vmatpush1.bf16.msra.mxu0 0
          %508 = vmatprep.subr.bf16.mxu0 0
          %509 = vmatpush1.bf16.msra.mxu0 0
          %510 = vmatprep.mubr.bf16.mxu0 0
          %511 = vmatmul.mubr.bf16.gmra.mrb[0].mxu0 %v445
          %v512 = vpop.f32.mrb[0].mxu0
          %v513 = vadd.f32 0.0, %v512
          %v514 = vpop.f32.mrb[0].mxu0
          %v515 = vadd.f32 0.0, %v514
          %v516 = vpop.f32.mrb[0].mxu0
          %v517 = vadd.f32 0.0, %v516
          %v518 = vpop.f32.mrb[0].mxu0
          %v519 = vadd.f32 0.0, %v518
          %520 = vmatprep.mubr.bf16.mxu0 0
          %521 = vmatmul.mubr.bf16.gmra.mrb[0].mxu0 %v448
          %v522 = vpop.f32.mrb[0].mxu0
          %v523 = vadd.f32 0.0, %v522
          %v524 = vpop.f32.mrb[0].mxu0
          %v525 = vadd.f32 0.0, %v524
          %v526 = vpop.f32.mrb[0].mxu0
          %v527 = vadd.f32 0.0, %v526
          %v528 = vpop.f32.mrb[0].mxu0
          %v529 = vadd.f32 0.0, %v528
          %530 = vmatprep.mubr.bf16.mxu0 0
          %531 = vmatmul.mubr.bf16.gmra.mrb[0].mxu0 %v451
          %v532 = vpop.f32.mrb[0].mxu0
          %v533 = vadd.f32 0.0, %v532
          %v534 = vpop.f32.mrb[0].mxu0
          %v535 = vadd.f32 0.0, %v534
          %v536 = vpop.f32.mrb[0].mxu0
          %v537 = vadd.f32 0.0, %v536
          %v538 = vpop.f32.mrb[0].mxu0
          %v539 = vadd.f32 0.0, %v538
          %540 = vmatprep.mubr.bf16.mxu0 0
          %541 = vmatmul.mubr.bf16.gmra.mrb[0].mxu0 %v454
          %v542 = vpop.f32.mrb[0].mxu0
          %v543 = vadd.f32 0.0, %v542
          %v544 = vpop.f32.mrb[0].mxu0
          %v545 = vadd.f32 0.0, %v544
          %v546 = vpop.f32.mrb[0].mxu0
          %v547 = vadd.f32 0.0, %v546
          %v548 = vpop.f32.mrb[0].mxu0
          %v549 = vadd.f32 0.0, %v548
          %550 = vmatprep.mubr.bf16.mxu0 0
          %551 = vmatmul.mubr.bf16.gmra.mrb[0].mxu0 %v457
          %v552 = vpop.f32.mrb[0].mxu0
          %v553 = vadd.f32 0.0, %v552
          %v554 = vpop.f32.mrb[0].mxu0
          %v555 = vadd.f32 0.0, %v554
          %v556 = vpop.f32.mrb[0].mxu0
          %v557 = vadd.f32 0.0, %v556
          %v558 = vpop.f32.mrb[0].mxu0
          %v559 = vadd.f32 0.0, %v558
          %560 = vmatprep.mubr.bf16.mxu0 0
          %561 = vmatmul.mubr.bf16.gmra.mrb[0].mxu0 %v460
          %v562 = vpop.f32.mrb[0].mxu0
          %v563 = vadd.f32 0.0, %v562
          %v564 = vpop.f32.mrb[0].mxu0
          %v565 = vadd.f32 0.0, %v564
          %v566 = vpop.f32.mrb[0].mxu0
          %v567 = vadd.f32 0.0, %v566
          %v568 = vpop.f32.mrb[0].mxu0
          %v569 = vadd.f32 0.0, %v568
          %570 = vmatprep.mubr.bf16.mxu0 0
          %571 = vmatmul.mubr.bf16.gmra.mrb[0].mxu0 %v463
          %v572 = vpop.f32.mrb[0].mxu0
          %v573 = vadd.f32 0.0, %v572
          %v574 = vpop.f32.mrb[0].mxu0
          %v575 = vadd.f32 0.0, %v574
          %v576 = vpop.f32.mrb[0].mxu0
          %v577 = vadd.f32 0.0, %v576
          %v578 = vpop.f32.mrb[0].mxu0
          %v579 = vadd.f32 0.0, %v578
          %580 = vmatprep.mubr.bf16.mxu0 0
          %581 = vmatmul.mubr.bf16.gmra.mrb[0].mxu0 %v466
          %v582 = vpop.f32.mrb[0].mxu0
          %v583 = vadd.f32 0.0, %v582
          %v584 = vpop.f32.mrb[0].mxu0
          %v585 = vadd.f32 0.0, %v584
          %v586 = vpop.f32.mrb[0].mxu0
          %v587 = vadd.f32 0.0, %v586
          %v588 = vpop.f32.mrb[0].mxu0
          %v589 = vadd.f32 0.0, %v588
          %590 = vdwg.mxu0
          %v591 = vxor.u32 %v513, 2147483648
          %v592 = vxor.u32 %v515, 2147483648
          %v593 = vxor.u32 %v517, 2147483648
          %v594 = vxor.u32 %v519, 2147483648
          %v595 = vxor.u32 %v523, 2147483648
          %v596 = vxor.u32 %v525, 2147483648
          %v597 = vxor.u32 %v527, 2147483648
          %v598 = vxor.u32 %v529, 2147483648
          %v599 = vxor.u32 %v533, 2147483648
          %v600 = vxor.u32 %v535, 2147483648
          %v601 = vxor.u32 %v537, 2147483648
          %v602 = vxor.u32 %v539, 2147483648
          %v603 = vxor.u32 %v543, 2147483648
          %v604 = vxor.u32 %v545, 2147483648
          %v605 = vxor.u32 %v547, 2147483648
          %v606 = vxor.u32 %v549, 2147483648
          %v607 = vxor.u32 %v553, 2147483648
          %v608 = vxor.u32 %v555, 2147483648
          %v609 = vxor.u32 %v557, 2147483648
          %v610 = vxor.u32 %v559, 2147483648
          %v611 = vxor.u32 %v563, 2147483648
          %v612 = vxor.u32 %v565, 2147483648
          %v613 = vxor.u32 %v567, 2147483648
          %v614 = vxor.u32 %v569, 2147483648
          %v615 = vxor.u32 %v573, 2147483648
          %v616 = vxor.u32 %v575, 2147483648
          %v617 = vxor.u32 %v577, 2147483648
          %v618 = vxor.u32 %v579, 2147483648
          %v619 = vxor.u32 %v583, 2147483648
          %v620 = vxor.u32 %v585, 2147483648
          %v621 = vxor.u32 %v587, 2147483648
          %v622 = vxor.u32 %v589, 2147483648
          %v623 = vmul.f32 %v591, 1.442695
          %v624 = vpow.pop %v623
          %v625 = vmul.f32 %v592, 1.442695
          %v626 = vpow.pop %v625
          %v627 = vmul.f32 %v593, 1.442695
          %v628 = vpow.pop %v627
          %v629 = vmul.f32 %v594, 1.442695
          %v630 = vpow.pop %v629
          %v631 = vmul.f32 %v595, 1.442695
          %v632 = vpow.pop %v631
          %v633 = vmul.f32 %v596, 1.442695
          %v634 = vpow.pop %v633
          %v635 = vmul.f32 %v597, 1.442695
          %v636 = vpow.pop %v635
          %v637 = vmul.f32 %v598, 1.442695
          %v638 = vpow.pop %v637
          %v639 = vmul.f32 %v599, 1.442695
          %v640 = vpow.pop %v639
          %v641 = vmul.f32 %v600, 1.442695
          %v642 = vpow.pop %v641
          %v643 = vmul.f32 %v601, 1.442695
          %v644 = vpow.pop %v643
          %v645 = vmul.f32 %v602, 1.442695
          %v646 = vpow.pop %v645
          %v647 = vmul.f32 %v603, 1.442695
          %v648 = vpow.pop %v647
          %v649 = vmul.f32 %v604, 1.442695
          %v650 = vpow.pop %v649
          %v651 = vmul.f32 %v605, 1.442695
          %v652 = vpow.pop %v651
          %v653 = vmul.f32 %v606, 1.442695
          %v654 = vpow.pop %v653
          %v655 = vmul.f32 %v607, 1.442695
          %v656 = vpow.pop %v655
          %v657 = vmul.f32 %v608, 1.442695
          %v658 = vpow.pop %v657
          %v659 = vmul.f32 %v609, 1.442695
          %v660 = vpow.pop %v659
          %v661 = vmul.f32 %v610, 1.442695
          %v662 = vpow.pop %v661
          %v663 = vmul.f32 %v611, 1.442695
          %v664 = vpow.pop %v663
          %v665 = vmul.f32 %v612, 1.442695
          %v666 = vpow.pop %v665
          %v667 = vmul.f32 %v613, 1.442695
          %v668 = vpow.pop %v667
          %v669 = vmul.f32 %v614, 1.442695
          %v670 = vpow.pop %v669
          %v671 = vmul.f32 %v615, 1.442695
          %v672 = vpow.pop %v671
          %v673 = vmul.f32 %v616, 1.442695
          %v674 = vpow.pop %v673
          %v675 = vmul.f32 %v617, 1.442695
          %v676 = vpow.pop %v675
          %v677 = vmul.f32 %v618, 1.442695
          %v678 = vpow.pop %v677
          %v679 = vmul.f32 %v619, 1.442695
          %v680 = vpow.pop %v679
          %v681 = vmul.f32 %v620, 1.442695
          %v682 = vpow.pop %v681
          %v683 = vmul.f32 %v621, 1.442695
          %v684 = vpow.pop %v683
          %v685 = vmul.f32 %v622, 1.442695
          %v686 = vpow.pop %v685
          %v687 = vadd.f32 %v624, 1.0
          %v688 = vadd.f32 %v626, 1.0
          %v689 = vadd.f32 %v628, 1.0
          %v690 = vadd.f32 %v630, 1.0
          %v691 = vadd.f32 %v632, 1.0
          %v692 = vadd.f32 %v634, 1.0
          %v693 = vadd.f32 %v636, 1.0
          %v694 = vadd.f32 %v638, 1.0
          %v695 = vadd.f32 %v640, 1.0
          %v696 = vadd.f32 %v642, 1.0
          %v697 = vadd.f32 %v644, 1.0
          %v698 = vadd.f32 %v646, 1.0
          %v699 = vadd.f32 %v648, 1.0
          %v700 = vadd.f32 %v650, 1.0
          %v701 = vadd.f32 %v652, 1.0
          %v702 = vadd.f32 %v654, 1.0
          %v703 = vadd.f32 %v656, 1.0
          %v704 = vadd.f32 %v658, 1.0
          %v705 = vadd.f32 %v660, 1.0
          %v706 = vadd.f32 %v662, 1.0
          %v707 = vadd.f32 %v664, 1.0
          %v708 = vadd.f32 %v666, 1.0
          %v709 = vadd.f32 %v668, 1.0
          %v710 = vadd.f32 %v670, 1.0
          %v711 = vadd.f32 %v672, 1.0
          %v712 = vadd.f32 %v674, 1.0
          %v713 = vadd.f32 %v676, 1.0
          %v714 = vadd.f32 %v678, 1.0
          %v715 = vadd.f32 %v680, 1.0
          %v716 = vadd.f32 %v682, 1.0
          %v717 = vadd.f32 %v684, 1.0
          %v718 = vadd.f32 %v686, 1.0
          %v719 = vrcp.pop %v687
          %v720 = vmul.f32 1.0, %v719
          %v721 = vrcp.pop %v688
          %v722 = vmul.f32 1.0, %v721
          %v723 = vrcp.pop %v689
          %v724 = vmul.f32 1.0, %v723
          %v725 = vrcp.pop %v690
          %v726 = vmul.f32 1.0, %v725
          %v727 = vrcp.pop %v691
          %v728 = vmul.f32 1.0, %v727
          %v729 = vrcp.pop %v692
          %v730 = vmul.f32 1.0, %v729
          %v731 = vrcp.pop %v693
          %v732 = vmul.f32 1.0, %v731
          %v733 = vrcp.pop %v694
          %v734 = vmul.f32 1.0, %v733
          %v735 = vrcp.pop %v695
          %v736 = vmul.f32 1.0, %v735
          %v737 = vrcp.pop %v696
          %v738 = vmul.f32 1.0, %v737
          %v739 = vrcp.pop %v697
          %v740 = vmul.f32 1.0, %v739
          %v741 = vrcp.pop %v698
          %v742 = vmul.f32 1.0, %v741
          %v743 = vrcp.pop %v699
          %v744 = vmul.f32 1.0, %v743
          %v745 = vrcp.pop %v700
          %v746 = vmul.f32 1.0, %v745
          %v747 = vrcp.pop %v701
          %v748 = vmul.f32 1.0, %v747
          %v749 = vrcp.pop %v702
          %v750 = vmul.f32 1.0, %v749
          %v751 = vrcp.pop %v703
          %v752 = vmul.f32 1.0, %v751
          %v753 = vrcp.pop %v704
          %v754 = vmul.f32 1.0, %v753
          %v755 = vrcp.pop %v705
          %v756 = vmul.f32 1.0, %v755
          %v757 = vrcp.pop %v706
          %v758 = vmul.f32 1.0, %v757
          %v759 = vrcp.pop %v707
          %v760 = vmul.f32 1.0, %v759
          %v761 = vrcp.pop %v708
          %v762 = vmul.f32 1.0, %v761
          %v763 = vrcp.pop %v709
          %v764 = vmul.f32 1.0, %v763
          %v765 = vrcp.pop %v710
          %v766 = vmul.f32 1.0, %v765
          %v767 = vrcp.pop %v711
          %v768 = vmul.f32 1.0, %v767
          %v769 = vrcp.pop %v712
          %v770 = vmul.f32 1.0, %v769
          %v771 = vrcp.pop %v713
          %v772 = vmul.f32 1.0, %v771
          %v773 = vrcp.pop %v714
          %v774 = vmul.f32 1.0, %v773
          %v775 = vrcp.pop %v715
          %v776 = vmul.f32 1.0, %v775
          %v777 = vrcp.pop %v716
          %v778 = vmul.f32 1.0, %v777
          %v779 = vrcp.pop %v717
          %v780 = vmul.f32 1.0, %v779
          %v781 = vrcp.pop %v718
          %v782 = vmul.f32 1.0, %v781
          %v785 = vunpack.c.l.s4 1983009808
          %v786 = vunpack.c.0.s8 %v785
          %v787 = vlaneseq
          %v788 = vshrl.u32 %v787, 7
          %v789 = vsub.s32 %v786, %v788
          %v790 = vrot.slane %v364, %v789
          %v791 = vcombine.high %v790, %v790
          %v794 = vand.u32 %v722, 4294901760
          %795 = vmatprep.subr.mxu0 %v794
          %v796 = vand.u32 %v720, 4294901760
          %797 = vmatpush1.xpose.msra.mxu0 %v796
          %v798 = vand.u32 %v726, 4294901760
          %799 = vmatprep.subr.mxu0 %v798
          %v800 = vand.u32 %v724, 4294901760
          %801 = vmatpush1.xpose.msra.mxu0 %v800
          %v802 = vand.u32 %v730, 4294901760
          %803 = vmatprep.subr.mxu0 %v802
          %v804 = vand.u32 %v728, 4294901760
          %805 = vmatpush1.xpose.msra.mxu0 %v804
          %v806 = vand.u32 %v734, 4294901760
          %807 = vmatprep.subr.mxu0 %v806
          %v808 = vand.u32 %v732, 4294901760
          %809 = vmatpush1.xpose.msra.mxu0 %v808
          %v810 = vand.u32 %v738, 4294901760
          %811 = vmatprep.subr.mxu0 %v810
          %v812 = vand.u32 %v736, 4294901760
          %813 = vmatpush1.xpose.msra.mxu0 %v812
          %v814 = vand.u32 %v742, 4294901760
          %815 = vmatprep.subr.mxu0 %v814
          %v816 = vand.u32 %v740, 4294901760
          %817 = vmatpush1.xpose.msra.mxu0 %v816
          %v818 = vand.u32 %v746, 4294901760
          %819 = vmatprep.subr.mxu0 %v818
          %v820 = vand.u32 %v744, 4294901760
          %821 = vmatpush1.xpose.msra.mxu0 %v820
          %v822 = vand.u32 %v750, 4294901760
          %823 = vmatprep.subr.mxu0 %v822
          %v824 = vand.u32 %v748, 4294901760
          %825 = vmatpush1.xpose.msra.mxu0 %v824
          %v826 = vand.u32 %v754, 4294901760
          %827 = vmatprep.subr.mxu0 %v826
          %v828 = vand.u32 %v752, 4294901760
          %829 = vmatpush1.xpose.msra.mxu0 %v828
          %v830 = vand.u32 %v758, 4294901760
          %831 = vmatprep.subr.mxu0 %v830
          %v832 = vand.u32 %v756, 4294901760
          %833 = vmatpush1.xpose.msra.mxu0 %v832
          %v834 = vand.u32 %v762, 4294901760
          %835 = vmatprep.subr.mxu0 %v834
          %v836 = vand.u32 %v760, 4294901760
          %837 = vmatpush1.xpose.msra.mxu0 %v836
          %v838 = vand.u32 %v766, 4294901760
          %839 = vmatprep.subr.mxu0 %v838
          %v840 = vand.u32 %v764, 4294901760
          %841 = vmatpush1.xpose.msra.mxu0 %v840
          %v842 = vand.u32 %v770, 4294901760
          %843 = vmatprep.subr.mxu0 %v842
          %v844 = vand.u32 %v768, 4294901760
          %845 = vmatpush1.xpose.msra.mxu0 %v844
          %v846 = vand.u32 %v774, 4294901760
          %847 = vmatprep.subr.mxu0 %v846
          %v848 = vand.u32 %v772, 4294901760
          %849 = vmatpush1.xpose.msra.mxu0 %v848
          %v850 = vand.u32 %v778, 4294901760
          %851 = vmatprep.subr.mxu0 %v850
          %v852 = vand.u32 %v776, 4294901760
          %853 = vmatpush1.xpose.msra.mxu0 %v852
          %v854 = vand.u32 %v782, 4294901760
          %855 = vmatprep.subr.mxu0 %v854
          %v856 = vand.u32 %v780, 4294901760
          %857 = vmatpush1.xpose.msra.mxu0 %v856
          %858 = vmatprep.subr.mxu0 0.0
          %859 = vmatpush1.xpose.msra.mxu0 0.0
          %860 = vmatprep.subr.mxu0 0.0
          %861 = vmatpush1.xpose.msra.mxu0 0.0
          %862 = vmatprep.subr.mxu0 0.0
          %863 = vmatpush1.xpose.msra.mxu0 0.0
          %864 = vmatprep.subr.mxu0 0.0
          %865 = vmatpush1.xpose.msra.mxu0 0.0
          %866 = vmatprep.subr.mxu0 0.0
          %867 = vmatpush1.xpose.msra.mxu0 0.0
          %868 = vmatprep.subr.mxu0 0.0
          %869 = vmatpush1.xpose.msra.mxu0 0.0
          %870 = vmatprep.subr.mxu0 0.0
          %871 = vmatpush1.xpose.msra.mxu0 0.0
          %872 = vmatprep.subr.mxu0 0.0
          %873 = vmatpush1.xpose.msra.mxu0 0.0
          %874 = vmatprep.subr.mxu0 0.0
          %875 = vmatpush1.xpose.msra.mxu0 0.0
          %876 = vmatprep.subr.mxu0 0.0
          %877 = vmatpush1.xpose.msra.mxu0 0.0
          %878 = vmatprep.subr.mxu0 0.0
          %879 = vmatpush1.xpose.msra.mxu0 0.0
          %880 = vmatprep.subr.mxu0 0.0
          %881 = vmatpush1.xpose.msra.mxu0 0.0
          %882 = vmatprep.subr.mxu0 0.0
          %883 = vmatpush1.xpose.msra.mxu0 0.0
          %884 = vmatprep.subr.mxu0 0.0
          %885 = vmatpush1.xpose.msra.mxu0 0.0
          %886 = vmatprep.subr.mxu0 0.0
          %887 = vmatpush1.xpose.msra.mxu0 0.0
          %888 = vmatprep.subr.mxu0 0.0
          %889 = vmatpush1.xpose.msra.mxu0 0.0
          %v890 = vand.u32 %v791, 4294901760
          %v891 = vsub.f32 %v791, %v890
          %v892 = vand.u32 %v891, 4294901760
          %v893 = vsub.f32 %v891, %v892
          %v894 = vand.u32 %v893, 4294901760
          %895 = vmatprep.mubr.f32.mxu0 %v894
          %v896 = vand.u32 %v790, 4294901760
          %v897 = vsub.f32 %v790, %v896
          %v898 = vand.u32 %v897, 4294901760
          %v899 = vsub.f32 %v897, %v898
          %v900 = vand.u32 %v899, 4294901760
          %901 = vmatmul.mubr.f32.gmra.mrb[0].mxu0 %v900
          %v902 = vpop.f32.mrb[0].mxu0
          %v903 = vadd.f32 0.0, %v902
          %v904 = vpop.f32.mrb[0].mxu0
          %905 = vdwg.mxu0
          %v906 = vand.u32 %v722, 4294901760
          %v907 = vsub.f32 %v722, %v906
          %v908 = vand.u32 %v907, 4294901760
          %v909 = vsub.f32 %v907, %v908
          %v910 = vand.u32 %v909, 4294901760
          %911 = vmatprep.subr.mxu0 %v910
          %v912 = vand.u32 %v720, 4294901760
          %v913 = vsub.f32 %v720, %v912
          %v914 = vand.u32 %v913, 4294901760
          %v915 = vsub.f32 %v913, %v914
          %v916 = vand.u32 %v915, 4294901760
          %917 = vmatpush1.xpose.msra.mxu0 %v916
          %v918 = vand.u32 %v726, 4294901760
          %v919 = vsub.f32 %v726, %v918
          %v920 = vand.u32 %v919, 4294901760
          %v921 = vsub.f32 %v919, %v920
          %v922 = vand.u32 %v921, 4294901760
          %923 = vmatprep.subr.mxu0 %v922
          %v924 = vand.u32 %v724, 4294901760
          %v925 = vsub.f32 %v724, %v924
          %v926 = vand.u32 %v925, 4294901760
          %v927 = vsub.f32 %v925, %v926
          %v928 = vand.u32 %v927, 4294901760
          %929 = vmatpush1.xpose.msra.mxu0 %v928
          %v930 = vand.u32 %v730, 4294901760
          %v931 = vsub.f32 %v730, %v930
          %v932 = vand.u32 %v931, 4294901760
          %v933 = vsub.f32 %v931, %v932
          %v934 = vand.u32 %v933, 4294901760
          %935 = vmatprep.subr.mxu0 %v934
          %v936 = vand.u32 %v728, 4294901760
          %v937 = vsub.f32 %v728, %v936
          %v938 = vand.u32 %v937, 4294901760
          %v939 = vsub.f32 %v937, %v938
          %v940 = vand.u32 %v939, 4294901760
          %941 = vmatpush1.xpose.msra.mxu0 %v940
          %v942 = vand.u32 %v734, 4294901760
          %v943 = vsub.f32 %v734, %v942
          %v944 = vand.u32 %v943, 4294901760
          %v945 = vsub.f32 %v943, %v944
          %v946 = vand.u32 %v945, 4294901760
          %947 = vmatprep.subr.mxu0 %v946
          %v948 = vand.u32 %v732, 4294901760
          %v949 = vsub.f32 %v732, %v948
          %v950 = vand.u32 %v949, 4294901760
          %v951 = vsub.f32 %v949, %v950
          %v952 = vand.u32 %v951, 4294901760
          %953 = vmatpush1.xpose.msra.mxu0 %v952
          %v954 = vand.u32 %v738, 4294901760
          %v955 = vsub.f32 %v738, %v954
          %v956 = vand.u32 %v955, 4294901760
          %v957 = vsub.f32 %v955, %v956
          %v958 = vand.u32 %v957, 4294901760
          %959 = vmatprep.subr.mxu0 %v958
          %v960 = vand.u32 %v736, 4294901760
          %v961 = vsub.f32 %v736, %v960
          %v962 = vand.u32 %v961, 4294901760
          %v963 = vsub.f32 %v961, %v962
          %v964 = vand.u32 %v963, 4294901760
          %965 = vmatpush1.xpose.msra.mxu0 %v964
          %v966 = vand.u32 %v742, 4294901760
          %v967 = vsub.f32 %v742, %v966
          %v968 = vand.u32 %v967, 4294901760
          %v969 = vsub.f32 %v967, %v968
          %v970 = vand.u32 %v969, 4294901760
          %971 = vmatprep.subr.mxu0 %v970
          %v972 = vand.u32 %v740, 4294901760
          %v973 = vsub.f32 %v740, %v972
          %v974 = vand.u32 %v973, 4294901760
          %v975 = vsub.f32 %v973, %v974
          %v976 = vand.u32 %v975, 4294901760
          %977 = vmatpush1.xpose.msra.mxu0 %v976
          %v978 = vand.u32 %v746, 4294901760
          %v979 = vsub.f32 %v746, %v978
          %v980 = vand.u32 %v979, 4294901760
          %v981 = vsub.f32 %v979, %v980
          %v982 = vand.u32 %v981, 4294901760
          %983 = vmatprep.subr.mxu0 %v982
          %v984 = vand.u32 %v744, 4294901760
          %v985 = vsub.f32 %v744, %v984
          %v986 = vand.u32 %v985, 4294901760
          %v987 = vsub.f32 %v985, %v986
          %v988 = vand.u32 %v987, 4294901760
          %989 = vmatpush1.xpose.msra.mxu0 %v988
          %v990 = vand.u32 %v750, 4294901760
          %v991 = vsub.f32 %v750, %v990
          %v992 = vand.u32 %v991, 4294901760
          %v993 = vsub.f32 %v991, %v992
          %v994 = vand.u32 %v993, 4294901760
          %995 = vmatprep.subr.mxu0 %v994
          %v996 = vand.u32 %v748, 4294901760
          %v997 = vsub.f32 %v748, %v996
          %v998 = vand.u32 %v997, 4294901760
          %v999 = vsub.f32 %v997, %v998
          %v1000 = vand.u32 %v999, 4294901760
          %1001 = vmatpush1.xpose.msra.mxu0 %v1000
          %v1002 = vand.u32 %v754, 4294901760
          %v1003 = vsub.f32 %v754, %v1002
          %v1004 = vand.u32 %v1003, 4294901760
          %v1005 = vsub.f32 %v1003, %v1004
          %v1006 = vand.u32 %v1005, 4294901760
          %1007 = vmatprep.subr.mxu0 %v1006
          %v1008 = vand.u32 %v752, 4294901760
          %v1009 = vsub.f32 %v752, %v1008
          %v1010 = vand.u32 %v1009, 4294901760
          %v1011 = vsub.f32 %v1009, %v1010
          %v1012 = vand.u32 %v1011, 4294901760
          %1013 = vmatpush1.xpose.msra.mxu0 %v1012
          %v1014 = vand.u32 %v758, 4294901760
          %v1015 = vsub.f32 %v758, %v1014
          %v1016 = vand.u32 %v1015, 4294901760
          %v1017 = vsub.f32 %v1015, %v1016
          %v1018 = vand.u32 %v1017, 4294901760
          %1019 = vmatprep.subr.mxu0 %v1018
          %v1020 = vand.u32 %v756, 4294901760
          %v1021 = vsub.f32 %v756, %v1020
          %v1022 = vand.u32 %v1021, 4294901760
          %v1023 = vsub.f32 %v1021, %v1022
          %v1024 = vand.u32 %v1023, 4294901760
          %1025 = vmatpush1.xpose.msra.mxu0 %v1024
          %v1026 = vand.u32 %v762, 4294901760
          %v1027 = vsub.f32 %v762, %v1026
          %v1028 = vand.u32 %v1027, 4294901760
          %v1029 = vsub.f32 %v1027, %v1028
          %v1030 = vand.u32 %v1029, 4294901760
          %1031 = vmatprep.subr.mxu0 %v1030
          %v1032 = vand.u32 %v760, 4294901760
          %v1033 = vsub.f32 %v760, %v1032
          %v1034 = vand.u32 %v1033, 4294901760
          %v1035 = vsub.f32 %v1033, %v1034
          %v1036 = vand.u32 %v1035, 4294901760
          %1037 = vmatpush1.xpose.msra.mxu0 %v1036
          %v1038 = vand.u32 %v766, 4294901760
          %v1039 = vsub.f32 %v766, %v1038
          %v1040 = vand.u32 %v1039, 4294901760
          %v1041 = vsub.f32 %v1039, %v1040
          %v1042 = vand.u32 %v1041, 4294901760
          %1043 = vmatprep.subr.mxu0 %v1042
          %v1044 = vand.u32 %v764, 4294901760
          %v1045 = vsub.f32 %v764, %v1044
          %v1046 = vand.u32 %v1045, 4294901760
          %v1047 = vsub.f32 %v1045, %v1046
          %v1048 = vand.u32 %v1047, 4294901760
          %1049 = vmatpush1.xpose.msra.mxu0 %v1048
          %v1050 = vand.u32 %v770, 4294901760
          %v1051 = vsub.f32 %v770, %v1050
          %v1052 = vand.u32 %v1051, 4294901760
          %v1053 = vsub.f32 %v1051, %v1052
          %v1054 = vand.u32 %v1053, 4294901760
          %1055 = vmatprep.subr.mxu0 %v1054
          %v1056 = vand.u32 %v768, 4294901760
          %v1057 = vsub.f32 %v768, %v1056
          %v1058 = vand.u32 %v1057, 4294901760
          %v1059 = vsub.f32 %v1057, %v1058
          %v1060 = vand.u32 %v1059, 4294901760
          %1061 = vmatpush1.xpose.msra.mxu0 %v1060
          %v1062 = vand.u32 %v774, 4294901760
          %v1063 = vsub.f32 %v774, %v1062
          %v1064 = vand.u32 %v1063, 4294901760
          %v1065 = vsub.f32 %v1063, %v1064
          %v1066 = vand.u32 %v1065, 4294901760
          %1067 = vmatprep.subr.mxu0 %v1066
          %v1068 = vand.u32 %v772, 4294901760
          %v1069 = vsub.f32 %v772, %v1068
          %v1070 = vand.u32 %v1069, 4294901760
          %v1071 = vsub.f32 %v1069, %v1070
          %v1072 = vand.u32 %v1071, 4294901760
          %1073 = vmatpush1.xpose.msra.mxu0 %v1072
          %v1074 = vand.u32 %v778, 4294901760
          %v1075 = vsub.f32 %v778, %v1074
          %v1076 = vand.u32 %v1075, 4294901760
          %v1077 = vsub.f32 %v1075, %v1076
          %v1078 = vand.u32 %v1077, 4294901760
          %1079 = vmatprep.subr.mxu0 %v1078
          %v1080 = vand.u32 %v776, 4294901760
          %v1081 = vsub.f32 %v776, %v1080
          %v1082 = vand.u32 %v1081, 4294901760
          %v1083 = vsub.f32 %v1081, %v1082
          %v1084 = vand.u32 %v1083, 4294901760
          %1085 = vmatpush1.xpose.msra.mxu0 %v1084
          %v1086 = vand.u32 %v782, 4294901760
          %v1087 = vsub.f32 %v782, %v1086
          %v1088 = vand.u32 %v1087, 4294901760
          %v1089 = vsub.f32 %v1087, %v1088
          %v1090 = vand.u32 %v1089, 4294901760
          %1091 = vmatprep.subr.mxu0 %v1090
          %v1092 = vand.u32 %v780, 4294901760
          %v1093 = vsub.f32 %v780, %v1092
          %v1094 = vand.u32 %v1093, 4294901760
          %v1095 = vsub.f32 %v1093, %v1094
          %v1096 = vand.u32 %v1095, 4294901760
          %1097 = vmatpush1.xpose.msra.mxu0 %v1096
          %1098 = vmatprep.subr.mxu0 0.0
          %1099 = vmatpush1.xpose.msra.mxu0 0.0
          %1100 = vmatprep.subr.mxu0 0.0
          %1101 = vmatpush1.xpose.msra.mxu0 0.0
          %1102 = vmatprep.subr.mxu0 0.0
          %1103 = vmatpush1.xpose.msra.mxu0 0.0
          %1104 = vmatprep.subr.mxu0 0.0
          %1105 = vmatpush1.xpose.msra.mxu0 0.0
          %1106 = vmatprep.subr.mxu0 0.0
          %1107 = vmatpush1.xpose.msra.mxu0 0.0
          %1108 = vmatprep.subr.mxu0 0.0
          %1109 = vmatpush1.xpose.msra.mxu0 0.0
          %1110 = vmatprep.subr.mxu0 0.0
          %1111 = vmatpush1.xpose.msra.mxu0 0.0
          %1112 = vmatprep.subr.mxu0 0.0
          %1113 = vmatpush1.xpose.msra.mxu0 0.0
          %1114 = vmatprep.subr.mxu0 0.0
          %1115 = vmatpush1.xpose.msra.mxu0 0.0
          %1116 = vmatprep.subr.mxu0 0.0
          %1117 = vmatpush1.xpose.msra.mxu0 0.0
          %1118 = vmatprep.subr.mxu0 0.0
          %1119 = vmatpush1.xpose.msra.mxu0 0.0
          %1120 = vmatprep.subr.mxu0 0.0
          %1121 = vmatpush1.xpose.msra.mxu0 0.0
          %1122 = vmatprep.subr.mxu0 0.0
          %1123 = vmatpush1.xpose.msra.mxu0 0.0
          %1124 = vmatprep.subr.mxu0 0.0
          %1125 = vmatpush1.xpose.msra.mxu0 0.0
          %1126 = vmatprep.subr.mxu0 0.0
          %1127 = vmatpush1.xpose.msra.mxu0 0.0
          %1128 = vmatprep.subr.mxu0 0.0
          %1129 = vmatpush1.xpose.msra.mxu0 0.0
          %v1130 = vand.u32 %v791, 4294901760
          %1131 = vmatprep.mubr.f32.mxu0 %v1130
          %v1132 = vand.u32 %v790, 4294901760
          %1133 = vmatmul.mubr.f32.gmra.mrb[0].mxu0 %v1132
          %v1134 = vpop.f32.mrb[0].mxu0
          %v1135 = vadd.f32 %v903, %v1134
          %v1136 = vpop.f32.mrb[0].mxu0
          %1137 = vdwg.mxu0
          %v1138 = vand.u32 %v722, 4294901760
          %v1139 = vsub.f32 %v722, %v1138
          %1140 = vmatprep.subr.mxu0 %v1139
          %v1141 = vand.u32 %v720, 4294901760
          %v1142 = vsub.f32 %v720, %v1141
          %1143 = vmatpush1.xpose.msra.mxu0 %v1142
          %v1144 = vand.u32 %v726, 4294901760
          %v1145 = vsub.f32 %v726, %v1144
          %1146 = vmatprep.subr.mxu0 %v1145
          %v1147 = vand.u32 %v724, 4294901760
          %v1148 = vsub.f32 %v724, %v1147
          %1149 = vmatpush1.xpose.msra.mxu0 %v1148
          %v1150 = vand.u32 %v730, 4294901760
          %v1151 = vsub.f32 %v730, %v1150
          %1152 = vmatprep.subr.mxu0 %v1151
          %v1153 = vand.u32 %v728, 4294901760
          %v1154 = vsub.f32 %v728, %v1153
          %1155 = vmatpush1.xpose.msra.mxu0 %v1154
          %v1156 = vand.u32 %v734, 4294901760
          %v1157 = vsub.f32 %v734, %v1156
          %1158 = vmatprep.subr.mxu0 %v1157
          %v1159 = vand.u32 %v732, 4294901760
          %v1160 = vsub.f32 %v732, %v1159
          %1161 = vmatpush1.xpose.msra.mxu0 %v1160
          %v1162 = vand.u32 %v738, 4294901760
          %v1163 = vsub.f32 %v738, %v1162
          %1164 = vmatprep.subr.mxu0 %v1163
          %v1165 = vand.u32 %v736, 4294901760
          %v1166 = vsub.f32 %v736, %v1165
          %1167 = vmatpush1.xpose.msra.mxu0 %v1166
          %v1168 = vand.u32 %v742, 4294901760
          %v1169 = vsub.f32 %v742, %v1168
          %1170 = vmatprep.subr.mxu0 %v1169
          %v1171 = vand.u32 %v740, 4294901760
          %v1172 = vsub.f32 %v740, %v1171
          %1173 = vmatpush1.xpose.msra.mxu0 %v1172
          %v1174 = vand.u32 %v746, 4294901760
          %v1175 = vsub.f32 %v746, %v1174
          %1176 = vmatprep.subr.mxu0 %v1175
          %v1177 = vand.u32 %v744, 4294901760
          %v1178 = vsub.f32 %v744, %v1177
          %1179 = vmatpush1.xpose.msra.mxu0 %v1178
          %v1180 = vand.u32 %v750, 4294901760
          %v1181 = vsub.f32 %v750, %v1180
          %1182 = vmatprep.subr.mxu0 %v1181
          %v1183 = vand.u32 %v748, 4294901760
          %v1184 = vsub.f32 %v748, %v1183
          %1185 = vmatpush1.xpose.msra.mxu0 %v1184
          %v1186 = vand.u32 %v754, 4294901760
          %v1187 = vsub.f32 %v754, %v1186
          %1188 = vmatprep.subr.mxu0 %v1187
          %v1189 = vand.u32 %v752, 4294901760
          %v1190 = vsub.f32 %v752, %v1189
          %1191 = vmatpush1.xpose.msra.mxu0 %v1190
          %v1192 = vand.u32 %v758, 4294901760
          %v1193 = vsub.f32 %v758, %v1192
          %1194 = vmatprep.subr.mxu0 %v1193
          %v1195 = vand.u32 %v756, 4294901760
          %v1196 = vsub.f32 %v756, %v1195
          %1197 = vmatpush1.xpose.msra.mxu0 %v1196
          %v1198 = vand.u32 %v762, 4294901760
          %v1199 = vsub.f32 %v762, %v1198
          %1200 = vmatprep.subr.mxu0 %v1199
          %v1201 = vand.u32 %v760, 4294901760
          %v1202 = vsub.f32 %v760, %v1201
          %1203 = vmatpush1.xpose.msra.mxu0 %v1202
          %v1204 = vand.u32 %v766, 4294901760
          %v1205 = vsub.f32 %v766, %v1204
          %1206 = vmatprep.subr.mxu0 %v1205
          %v1207 = vand.u32 %v764, 4294901760
          %v1208 = vsub.f32 %v764, %v1207
          %1209 = vmatpush1.xpose.msra.mxu0 %v1208
          %v1210 = vand.u32 %v770, 4294901760
          %v1211 = vsub.f32 %v770, %v1210
          %1212 = vmatprep.subr.mxu0 %v1211
          %v1213 = vand.u32 %v768, 4294901760
          %v1214 = vsub.f32 %v768, %v1213
          %1215 = vmatpush1.xpose.msra.mxu0 %v1214
          %v1216 = vand.u32 %v774, 4294901760
          %v1217 = vsub.f32 %v774, %v1216
          %1218 = vmatprep.subr.mxu0 %v1217
          %v1219 = vand.u32 %v772, 4294901760
          %v1220 = vsub.f32 %v772, %v1219
          %1221 = vmatpush1.xpose.msra.mxu0 %v1220
          %v1222 = vand.u32 %v778, 4294901760
          %v1223 = vsub.f32 %v778, %v1222
          %1224 = vmatprep.subr.mxu0 %v1223
          %v1225 = vand.u32 %v776, 4294901760
          %v1226 = vsub.f32 %v776, %v1225
          %1227 = vmatpush1.xpose.msra.mxu0 %v1226
          %v1228 = vand.u32 %v782, 4294901760
          %v1229 = vsub.f32 %v782, %v1228
          %1230 = vmatprep.subr.mxu0 %v1229
          %v1231 = vand.u32 %v780, 4294901760
          %v1232 = vsub.f32 %v780, %v1231
          %1233 = vmatpush1.xpose.msra.mxu0 %v1232
          %1234 = vmatprep.subr.mxu0 0.0
          %1235 = vmatpush1.xpose.msra.mxu0 0.0
          %1236 = vmatprep.subr.mxu0 0.0
          %1237 = vmatpush1.xpose.msra.mxu0 0.0
          %1238 = vmatprep.subr.mxu0 0.0
          %1239 = vmatpush1.xpose.msra.mxu0 0.0
          %1240 = vmatprep.subr.mxu0 0.0
          %1241 = vmatpush1.xpose.msra.mxu0 0.0
          %1242 = vmatprep.subr.mxu0 0.0
          %1243 = vmatpush1.xpose.msra.mxu0 0.0
          %1244 = vmatprep.subr.mxu0 0.0
          %1245 = vmatpush1.xpose.msra.mxu0 0.0
          %1246 = vmatprep.subr.mxu0 0.0
          %1247 = vmatpush1.xpose.msra.mxu0 0.0
          %1248 = vmatprep.subr.mxu0 0.0
          %1249 = vmatpush1.xpose.msra.mxu0 0.0
          %1250 = vmatprep.subr.mxu0 0.0
          %1251 = vmatpush1.xpose.msra.mxu0 0.0
          %1252 = vmatprep.subr.mxu0 0.0
          %1253 = vmatpush1.xpose.msra.mxu0 0.0
          %1254 = vmatprep.subr.mxu0 0.0
          %1255 = vmatpush1.xpose.msra.mxu0 0.0
          %1256 = vmatprep.subr.mxu0 0.0
          %1257 = vmatpush1.xpose.msra.mxu0 0.0
          %1258 = vmatprep.subr.mxu0 0.0
          %1259 = vmatpush1.xpose.msra.mxu0 0.0
          %1260 = vmatprep.subr.mxu0 0.0
          %1261 = vmatpush1.xpose.msra.mxu0 0.0
          %1262 = vmatprep.subr.mxu0 0.0
          %1263 = vmatpush1.xpose.msra.mxu0 0.0
          %1264 = vmatprep.subr.mxu0 0.0
          %1265 = vmatpush1.xpose.msra.mxu0 0.0
          %v1266 = vand.u32 %v791, 4294901760
          %v1267 = vsub.f32 %v791, %v1266
          %1268 = vmatprep.mubr.f32.mxu0 %v1267
          %v1269 = vand.u32 %v790, 4294901760
          %v1270 = vsub.f32 %v790, %v1269
          %1271 = vmatmul.mubr.f32.gmra.mrb[0].mxu0 %v1270
          %v1272 = vpop.f32.mrb[0].mxu0
          %v1273 = vadd.f32 %v1135, %v1272
          %v1274 = vpop.f32.mrb[0].mxu0
          %1275 = vdwg.mxu0
          %v1276 = vand.u32 %v722, 4294901760
          %1277 = vmatprep.subr.mxu0 %v1276
          %v1278 = vand.u32 %v720, 4294901760
          %1279 = vmatpush1.xpose.msra.mxu0 %v1278
          %v1280 = vand.u32 %v726, 4294901760
          %1281 = vmatprep.subr.mxu0 %v1280
          %v1282 = vand.u32 %v724, 4294901760
          %1283 = vmatpush1.xpose.msra.mxu0 %v1282
          %v1284 = vand.u32 %v730, 4294901760
          %1285 = vmatprep.subr.mxu0 %v1284
          %v1286 = vand.u32 %v728, 4294901760
          %1287 = vmatpush1.xpose.msra.mxu0 %v1286
          %v1288 = vand.u32 %v734, 4294901760
          %1289 = vmatprep.subr.mxu0 %v1288
          %v1290 = vand.u32 %v732, 4294901760
          %1291 = vmatpush1.xpose.msra.mxu0 %v1290
          %v1292 = vand.u32 %v738, 4294901760
          %1293 = vmatprep.subr.mxu0 %v1292
          %v1294 = vand.u32 %v736, 4294901760
          %1295 = vmatpush1.xpose.msra.mxu0 %v1294
          %v1296 = vand.u32 %v742, 4294901760
          %1297 = vmatprep.subr.mxu0 %v1296
          %v1298 = vand.u32 %v740, 4294901760
          %1299 = vmatpush1.xpose.msra.mxu0 %v1298
          %v1300 = vand.u32 %v746, 4294901760
          %1301 = vmatprep.subr.mxu0 %v1300
          %v1302 = vand.u32 %v744, 4294901760
          %1303 = vmatpush1.xpose.msra.mxu0 %v1302
          %v1304 = vand.u32 %v750, 4294901760
          %1305 = vmatprep.subr.mxu0 %v1304
          %v1306 = vand.u32 %v748, 4294901760
          %1307 = vmatpush1.xpose.msra.mxu0 %v1306
          %v1308 = vand.u32 %v754, 4294901760
          %1309 = vmatprep.subr.mxu0 %v1308
          %v1310 = vand.u32 %v752, 4294901760
          %1311 = vmatpush1.xpose.msra.mxu0 %v1310
          %v1312 = vand.u32 %v758, 4294901760
          %1313 = vmatprep.subr.mxu0 %v1312
          %v1314 = vand.u32 %v756, 4294901760
          %1315 = vmatpush1.xpose.msra.mxu0 %v1314
          %v1316 = vand.u32 %v762, 4294901760
          %1317 = vmatprep.subr.mxu0 %v1316
          %v1318 = vand.u32 %v760, 4294901760
          %1319 = vmatpush1.xpose.msra.mxu0 %v1318
          %v1320 = vand.u32 %v766, 4294901760
          %1321 = vmatprep.subr.mxu0 %v1320
          %v1322 = vand.u32 %v764, 4294901760
          %1323 = vmatpush1.xpose.msra.mxu0 %v1322
          %v1324 = vand.u32 %v770, 4294901760
          %1325 = vmatprep.subr.mxu0 %v1324
          %v1326 = vand.u32 %v768, 4294901760
          %1327 = vmatpush1.xpose.msra.mxu0 %v1326
          %v1328 = vand.u32 %v774, 4294901760
          %1329 = vmatprep.subr.mxu0 %v1328
          %v1330 = vand.u32 %v772, 4294901760
          %1331 = vmatpush1.xpose.msra.mxu0 %v1330
          %v1332 = vand.u32 %v778, 4294901760
          %1333 = vmatprep.subr.mxu0 %v1332
          %v1334 = vand.u32 %v776, 4294901760
          %1335 = vmatpush1.xpose.msra.mxu0 %v1334
          %v1336 = vand.u32 %v782, 4294901760
          %1337 = vmatprep.subr.mxu0 %v1336
          %v1338 = vand.u32 %v780, 4294901760
          %1339 = vmatpush1.xpose.msra.mxu0 %v1338
          %1340 = vmatprep.subr.mxu0 0.0
          %1341 = vmatpush1.xpose.msra.mxu0 0.0
          %1342 = vmatprep.subr.mxu0 0.0
          %1343 = vmatpush1.xpose.msra.mxu0 0.0
          %1344 = vmatprep.subr.mxu0 0.0
          %1345 = vmatpush1.xpose.msra.mxu0 0.0
          %1346 = vmatprep.subr.mxu0 0.0
          %1347 = vmatpush1.xpose.msra.mxu0 0.0
          %1348 = vmatprep.subr.mxu0 0.0
          %1349 = vmatpush1.xpose.msra.mxu0 0.0
          %1350 = vmatprep.subr.mxu0 0.0
          %1351 = vmatpush1.xpose.msra.mxu0 0.0
          %1352 = vmatprep.subr.mxu0 0.0
          %1353 = vmatpush1.xpose.msra.mxu0 0.0
          %1354 = vmatprep.subr.mxu0 0.0
          %1355 = vmatpush1.xpose.msra.mxu0 0.0
          %1356 = vmatprep.subr.mxu0 0.0
          %1357 = vmatpush1.xpose.msra.mxu0 0.0
          %1358 = vmatprep.subr.mxu0 0.0
          %1359 = vmatpush1.xpose.msra.mxu0 0.0
          %1360 = vmatprep.subr.mxu0 0.0
          %1361 = vmatpush1.xpose.msra.mxu0 0.0
          %1362 = vmatprep.subr.mxu0 0.0
          %1363 = vmatpush1.xpose.msra.mxu0 0.0
          %1364 = vmatprep.subr.mxu0 0.0
          %1365 = vmatpush1.xpose.msra.mxu0 0.0
          %1366 = vmatprep.subr.mxu0 0.0
          %1367 = vmatpush1.xpose.msra.mxu0 0.0
          %1368 = vmatprep.subr.mxu0 0.0
          %1369 = vmatpush1.xpose.msra.mxu0 0.0
          %1370 = vmatprep.subr.mxu0 0.0
          %1371 = vmatpush1.xpose.msra.mxu0 0.0
          %v1372 = vand.u32 %v791, 4294901760
          %v1373 = vsub.f32 %v791, %v1372
          %v1374 = vand.u32 %v1373, 4294901760
          %1375 = vmatprep.mubr.f32.mxu0 %v1374
          %v1376 = vand.u32 %v790, 4294901760
          %v1377 = vsub.f32 %v790, %v1376
          %v1378 = vand.u32 %v1377, 4294901760
          %1379 = vmatmul.mubr.f32.gmra.mrb[0].mxu0 %v1378
          %v1380 = vpop.f32.mrb[0].mxu0
          %v1381 = vadd.f32 %v1273, %v1380
          %v1382 = vpop.f32.mrb[0].mxu0
          %1383 = vdwg.mxu0
          %v1384 = vand.u32 %v722, 4294901760
          %v1385 = vsub.f32 %v722, %v1384
          %v1386 = vand.u32 %v1385, 4294901760
          %1387 = vmatprep.subr.mxu0 %v1386
          %v1388 = vand.u32 %v720, 4294901760
          %v1389 = vsub.f32 %v720, %v1388
          %v1390 = vand.u32 %v1389, 4294901760
          %1391 = vmatpush1.xpose.msra.mxu0 %v1390
          %v1392 = vand.u32 %v726, 4294901760
          %v1393 = vsub.f32 %v726, %v1392
          %v1394 = vand.u32 %v1393, 4294901760
          %1395 = vmatprep.subr.mxu0 %v1394
          %v1396 = vand.u32 %v724, 4294901760
          %v1397 = vsub.f32 %v724, %v1396
          %v1398 = vand.u32 %v1397, 4294901760
          %1399 = vmatpush1.xpose.msra.mxu0 %v1398
          %v1400 = vand.u32 %v730, 4294901760
          %v1401 = vsub.f32 %v730, %v1400
          %v1402 = vand.u32 %v1401, 4294901760
          %1403 = vmatprep.subr.mxu0 %v1402
          %v1404 = vand.u32 %v728, 4294901760
          %v1405 = vsub.f32 %v728, %v1404
          %v1406 = vand.u32 %v1405, 4294901760
          %1407 = vmatpush1.xpose.msra.mxu0 %v1406
          %v1408 = vand.u32 %v734, 4294901760
          %v1409 = vsub.f32 %v734, %v1408
          %v1410 = vand.u32 %v1409, 4294901760
          %1411 = vmatprep.subr.mxu0 %v1410
          %v1412 = vand.u32 %v732, 4294901760
          %v1413 = vsub.f32 %v732, %v1412
          %v1414 = vand.u32 %v1413, 4294901760
          %1415 = vmatpush1.xpose.msra.mxu0 %v1414
          %v1416 = vand.u32 %v738, 4294901760
          %v1417 = vsub.f32 %v738, %v1416
          %v1418 = vand.u32 %v1417, 4294901760
          %1419 = vmatprep.subr.mxu0 %v1418
          %v1420 = vand.u32 %v736, 4294901760
          %v1421 = vsub.f32 %v736, %v1420
          %v1422 = vand.u32 %v1421, 4294901760
          %1423 = vmatpush1.xpose.msra.mxu0 %v1422
          %v1424 = vand.u32 %v742, 4294901760
          %v1425 = vsub.f32 %v742, %v1424
          %v1426 = vand.u32 %v1425, 4294901760
          %1427 = vmatprep.subr.mxu0 %v1426
          %v1428 = vand.u32 %v740, 4294901760
          %v1429 = vsub.f32 %v740, %v1428
          %v1430 = vand.u32 %v1429, 4294901760
          %1431 = vmatpush1.xpose.msra.mxu0 %v1430
          %v1432 = vand.u32 %v746, 4294901760
          %v1433 = vsub.f32 %v746, %v1432
          %v1434 = vand.u32 %v1433, 4294901760
          %1435 = vmatprep.subr.mxu0 %v1434
          %v1436 = vand.u32 %v744, 4294901760
          %v1437 = vsub.f32 %v744, %v1436
          %v1438 = vand.u32 %v1437, 4294901760
          %1439 = vmatpush1.xpose.msra.mxu0 %v1438
          %v1440 = vand.u32 %v750, 4294901760
          %v1441 = vsub.f32 %v750, %v1440
          %v1442 = vand.u32 %v1441, 4294901760
          %1443 = vmatprep.subr.mxu0 %v1442
          %v1444 = vand.u32 %v748, 4294901760
          %v1445 = vsub.f32 %v748, %v1444
          %v1446 = vand.u32 %v1445, 4294901760
          %1447 = vmatpush1.xpose.msra.mxu0 %v1446
          %v1448 = vand.u32 %v754, 4294901760
          %v1449 = vsub.f32 %v754, %v1448
          %v1450 = vand.u32 %v1449, 4294901760
          %1451 = vmatprep.subr.mxu0 %v1450
          %v1452 = vand.u32 %v752, 4294901760
          %v1453 = vsub.f32 %v752, %v1452
          %v1454 = vand.u32 %v1453, 4294901760
          %1455 = vmatpush1.xpose.msra.mxu0 %v1454
          %v1456 = vand.u32 %v758, 4294901760
          %v1457 = vsub.f32 %v758, %v1456
          %v1458 = vand.u32 %v1457, 4294901760
          %1459 = vmatprep.subr.mxu0 %v1458
          %v1460 = vand.u32 %v756, 4294901760
          %v1461 = vsub.f32 %v756, %v1460
          %v1462 = vand.u32 %v1461, 4294901760
          %1463 = vmatpush1.xpose.msra.mxu0 %v1462
          %v1464 = vand.u32 %v762, 4294901760
          %v1465 = vsub.f32 %v762, %v1464
          %v1466 = vand.u32 %v1465, 4294901760
          %1467 = vmatprep.subr.mxu0 %v1466
          %v1468 = vand.u32 %v760, 4294901760
          %v1469 = vsub.f32 %v760, %v1468
          %v1470 = vand.u32 %v1469, 4294901760
          %1471 = vmatpush1.xpose.msra.mxu0 %v1470
          %v1472 = vand.u32 %v766, 4294901760
          %v1473 = vsub.f32 %v766, %v1472
          %v1474 = vand.u32 %v1473, 4294901760
          %1475 = vmatprep.subr.mxu0 %v1474
          %v1476 = vand.u32 %v764, 4294901760
          %v1477 = vsub.f32 %v764, %v1476
          %v1478 = vand.u32 %v1477, 4294901760
          %1479 = vmatpush1.xpose.msra.mxu0 %v1478
          %v1480 = vand.u32 %v770, 4294901760
          %v1481 = vsub.f32 %v770, %v1480
          %v1482 = vand.u32 %v1481, 4294901760
          %1483 = vmatprep.subr.mxu0 %v1482
          %v1484 = vand.u32 %v768, 4294901760
          %v1485 = vsub.f32 %v768, %v1484
          %v1486 = vand.u32 %v1485, 4294901760
          %1487 = vmatpush1.xpose.msra.mxu0 %v1486
          %v1488 = vand.u32 %v774, 4294901760
          %v1489 = vsub.f32 %v774, %v1488
          %v1490 = vand.u32 %v1489, 4294901760
          %1491 = vmatprep.subr.mxu0 %v1490
          %v1492 = vand.u32 %v772, 4294901760
          %v1493 = vsub.f32 %v772, %v1492
          %v1494 = vand.u32 %v1493, 4294901760
          %1495 = vmatpush1.xpose.msra.mxu0 %v1494
          %v1496 = vand.u32 %v778, 4294901760
          %v1497 = vsub.f32 %v778, %v1496
          %v1498 = vand.u32 %v1497, 4294901760
          %1499 = vmatprep.subr.mxu0 %v1498
          %v1500 = vand.u32 %v776, 4294901760
          %v1501 = vsub.f32 %v776, %v1500
          %v1502 = vand.u32 %v1501, 4294901760
          %1503 = vmatpush1.xpose.msra.mxu0 %v1502
          %v1504 = vand.u32 %v782, 4294901760
          %v1505 = vsub.f32 %v782, %v1504
          %v1506 = vand.u32 %v1505, 4294901760
          %1507 = vmatprep.subr.mxu0 %v1506
          %v1508 = vand.u32 %v780, 4294901760
          %v1509 = vsub.f32 %v780, %v1508
          %v1510 = vand.u32 %v1509, 4294901760
          %1511 = vmatpush1.xpose.msra.mxu0 %v1510
          %1512 = vmatprep.subr.mxu0 0.0
          %1513 = vmatpush1.xpose.msra.mxu0 0.0
          %1514 = vmatprep.subr.mxu0 0.0
          %1515 = vmatpush1.xpose.msra.mxu0 0.0
          %1516 = vmatprep.subr.mxu0 0.0
          %1517 = vmatpush1.xpose.msra.mxu0 0.0
          %1518 = vmatprep.subr.mxu0 0.0
          %1519 = vmatpush1.xpose.msra.mxu0 0.0
          %1520 = vmatprep.subr.mxu0 0.0
          %1521 = vmatpush1.xpose.msra.mxu0 0.0
          %1522 = vmatprep.subr.mxu0 0.0
          %1523 = vmatpush1.xpose.msra.mxu0 0.0
          %1524 = vmatprep.subr.mxu0 0.0
          %1525 = vmatpush1.xpose.msra.mxu0 0.0
          %1526 = vmatprep.subr.mxu0 0.0
          %1527 = vmatpush1.xpose.msra.mxu0 0.0
          %1528 = vmatprep.subr.mxu0 0.0
          %1529 = vmatpush1.xpose.msra.mxu0 0.0
          %1530 = vmatprep.subr.mxu0 0.0
          %1531 = vmatpush1.xpose.msra.mxu0 0.0
          %1532 = vmatprep.subr.mxu0 0.0
          %1533 = vmatpush1.xpose.msra.mxu0 0.0
          %1534 = vmatprep.subr.mxu0 0.0
          %1535 = vmatpush1.xpose.msra.mxu0 0.0
          %1536 = vmatprep.subr.mxu0 0.0
          %1537 = vmatpush1.xpose.msra.mxu0 0.0
          %1538 = vmatprep.subr.mxu0 0.0
          %1539 = vmatpush1.xpose.msra.mxu0 0.0
          %1540 = vmatprep.subr.mxu0 0.0
          %1541 = vmatpush1.xpose.msra.mxu0 0.0
          %1542 = vmatprep.subr.mxu0 0.0
          %1543 = vmatpush1.xpose.msra.mxu0 0.0
          %v1544 = vand.u32 %v791, 4294901760
          %1545 = vmatprep.mubr.f32.mxu0 %v1544
          %v1546 = vand.u32 %v790, 4294901760
          %1547 = vmatmul.mubr.f32.gmra.mrb[0].mxu0 %v1546
          %v1548 = vpop.f32.mrb[0].mxu0
          %v1549 = vadd.f32 %v1381, %v1548
          %v1550 = vpop.f32.mrb[0].mxu0
          %1551 = vdwg.mxu0
          %v1552 = vand.u32 %v722, 4294901760
          %1553 = vmatprep.subr.mxu0 %v1552
          %v1554 = vand.u32 %v720, 4294901760
          %1555 = vmatpush1.xpose.msra.mxu0 %v1554
          %v1556 = vand.u32 %v726, 4294901760
          %1557 = vmatprep.subr.mxu0 %v1556
          %v1558 = vand.u32 %v724, 4294901760
          %1559 = vmatpush1.xpose.msra.mxu0 %v1558
          %v1560 = vand.u32 %v730, 4294901760
          %1561 = vmatprep.subr.mxu0 %v1560
          %v1562 = vand.u32 %v728, 4294901760
          %1563 = vmatpush1.xpose.msra.mxu0 %v1562
          %v1564 = vand.u32 %v734, 4294901760
          %1565 = vmatprep.subr.mxu0 %v1564
          %v1566 = vand.u32 %v732, 4294901760
          %1567 = vmatpush1.xpose.msra.mxu0 %v1566
          %v1568 = vand.u32 %v738, 4294901760
          %1569 = vmatprep.subr.mxu0 %v1568
          %v1570 = vand.u32 %v736, 4294901760
          %1571 = vmatpush1.xpose.msra.mxu0 %v1570
          %v1572 = vand.u32 %v742, 4294901760
          %1573 = vmatprep.subr.mxu0 %v1572
          %v1574 = vand.u32 %v740, 4294901760
          %1575 = vmatpush1.xpose.msra.mxu0 %v1574
          %v1576 = vand.u32 %v746, 4294901760
          %1577 = vmatprep.subr.mxu0 %v1576
          %v1578 = vand.u32 %v744, 4294901760
          %1579 = vmatpush1.xpose.msra.mxu0 %v1578
          %v1580 = vand.u32 %v750, 4294901760
          %1581 = vmatprep.subr.mxu0 %v1580
          %v1582 = vand.u32 %v748, 4294901760
          %1583 = vmatpush1.xpose.msra.mxu0 %v1582
          %v1584 = vand.u32 %v754, 4294901760
          %1585 = vmatprep.subr.mxu0 %v1584
          %v1586 = vand.u32 %v752, 4294901760
          %1587 = vmatpush1.xpose.msra.mxu0 %v1586
          %v1588 = vand.u32 %v758, 4294901760
          %1589 = vmatprep.subr.mxu0 %v1588
          %v1590 = vand.u32 %v756, 4294901760
          %1591 = vmatpush1.xpose.msra.mxu0 %v1590
          %v1592 = vand.u32 %v762, 4294901760
          %1593 = vmatprep.subr.mxu0 %v1592
          %v1594 = vand.u32 %v760, 4294901760
          %1595 = vmatpush1.xpose.msra.mxu0 %v1594
          %v1596 = vand.u32 %v766, 4294901760
          %1597 = vmatprep.subr.mxu0 %v1596
          %v1598 = vand.u32 %v764, 4294901760
          %1599 = vmatpush1.xpose.msra.mxu0 %v1598
          %v1600 = vand.u32 %v770, 4294901760
          %1601 = vmatprep.subr.mxu0 %v1600
          %v1602 = vand.u32 %v768, 4294901760
          %1603 = vmatpush1.xpose.msra.mxu0 %v1602
          %v1604 = vand.u32 %v774, 4294901760
          %1605 = vmatprep.subr.mxu0 %v1604
          %v1606 = vand.u32 %v772, 4294901760
          %1607 = vmatpush1.xpose.msra.mxu0 %v1606
          %v1608 = vand.u32 %v778, 4294901760
          %1609 = vmatprep.subr.mxu0 %v1608
          %v1610 = vand.u32 %v776, 4294901760
          %1611 = vmatpush1.xpose.msra.mxu0 %v1610
          %v1612 = vand.u32 %v782, 4294901760
          %1613 = vmatprep.subr.mxu0 %v1612
          %v1614 = vand.u32 %v780, 4294901760
          %1615 = vmatpush1.xpose.msra.mxu0 %v1614
          %1616 = vmatprep.subr.mxu0 0.0
          %1617 = vmatpush1.xpose.msra.mxu0 0.0
          %1618 = vmatprep.subr.mxu0 0.0
          %1619 = vmatpush1.xpose.msra.mxu0 0.0
          %1620 = vmatprep.subr.mxu0 0.0
          %1621 = vmatpush1.xpose.msra.mxu0 0.0
          %1622 = vmatprep.subr.mxu0 0.0
          %1623 = vmatpush1.xpose.msra.mxu0 0.0
          %1624 = vmatprep.subr.mxu0 0.0
          %1625 = vmatpush1.xpose.msra.mxu0 0.0
          %1626 = vmatprep.subr.mxu0 0.0
          %1627 = vmatpush1.xpose.msra.mxu0 0.0
          %1628 = vmatprep.subr.mxu0 0.0
          %1629 = vmatpush1.xpose.msra.mxu0 0.0
          %1630 = vmatprep.subr.mxu0 0.0
          %1631 = vmatpush1.xpose.msra.mxu0 0.0
          %1632 = vmatprep.subr.mxu0 0.0
          %1633 = vmatpush1.xpose.msra.mxu0 0.0
          %1634 = vmatprep.subr.mxu0 0.0
          %1635 = vmatpush1.xpose.msra.mxu0 0.0
          %1636 = vmatprep.subr.mxu0 0.0
          %1637 = vmatpush1.xpose.msra.mxu0 0.0
          %1638 = vmatprep.subr.mxu0 0.0
          %1639 = vmatpush1.xpose.msra.mxu0 0.0
          %1640 = vmatprep.subr.mxu0 0.0
          %1641 = vmatpush1.xpose.msra.mxu0 0.0
          %1642 = vmatprep.subr.mxu0 0.0
          %1643 = vmatpush1.xpose.msra.mxu0 0.0
          %1644 = vmatprep.subr.mxu0 0.0
          %1645 = vmatpush1.xpose.msra.mxu0 0.0
          %1646 = vmatprep.subr.mxu0 0.0
          %1647 = vmatpush1.xpose.msra.mxu0 0.0
          %v1648 = vand.u32 %v791, 4294901760
          %1649 = vmatprep.mubr.f32.mxu0 %v1648
          %v1650 = vand.u32 %v790, 4294901760
          %1651 = vmatmul.mubr.f32.gmra.mrb[0].mxu0 %v1650
          %v1652 = vpop.f32.mrb[0].mxu0
          %v1653 = vadd.f32 %v1549, %v1652
          %v1654 = vpop.f32.mrb[0].mxu0
          %1655 = vdwg.mxu0
          %v1656 = vmul.f32 %v720, %v720
          %v1657 = vmul.f32 %v722, %v722
          %v1658 = vmul.f32 %v724, %v724
          %v1659 = vmul.f32 %v726, %v726
          %v1660 = vmul.f32 %v728, %v728
          %v1661 = vmul.f32 %v730, %v730
          %v1662 = vmul.f32 %v732, %v732
          %v1663 = vmul.f32 %v734, %v734
          %v1664 = vmul.f32 %v736, %v736
          %v1665 = vmul.f32 %v738, %v738
          %v1666 = vmul.f32 %v740, %v740
          %v1667 = vmul.f32 %v742, %v742
          %v1668 = vmul.f32 %v744, %v744
          %v1669 = vmul.f32 %v746, %v746
          %v1670 = vmul.f32 %v748, %v748
          %v1671 = vmul.f32 %v750, %v750
          %v1672 = vmul.f32 %v752, %v752
          %v1673 = vmul.f32 %v754, %v754
          %v1674 = vmul.f32 %v756, %v756
          %v1675 = vmul.f32 %v758, %v758
          %v1676 = vmul.f32 %v760, %v760
          %v1677 = vmul.f32 %v762, %v762
          %v1678 = vmul.f32 %v764, %v764
          %v1679 = vmul.f32 %v766, %v766
          %v1680 = vmul.f32 %v768, %v768
          %v1681 = vmul.f32 %v770, %v770
          %v1682 = vmul.f32 %v772, %v772
          %v1683 = vmul.f32 %v774, %v774
          %v1684 = vmul.f32 %v776, %v776
          %v1685 = vmul.f32 %v778, %v778
          %v1686 = vmul.f32 %v780, %v780
          %v1687 = vmul.f32 %v782, %v782
          %v1688 = vadd.f32 %v1656, %v1657
          %1689 = vadd.xlane.f32.xlu0 %v1688
          %v1690 = vpop.xlane.xlu0 %1689
          %v1691 = vadd.f32 %v1658, %v1659
          %1692 = vadd.xlane.f32.xlu0 %v1691
          %v1693 = vpop.xlane.xlu0 %1692
          %v1694 = vadd.f32 %v1660, %v1661
          %1695 = vadd.xlane.f32.xlu0 %v1694
          %v1696 = vpop.xlane.xlu0 %1695
          %v1697 = vadd.f32 %v1662, %v1663
          %1698 = vadd.xlane.f32.xlu0 %v1697
          %v1699 = vpop.xlane.xlu0 %1698
          %v1700 = vadd.f32 %v1664, %v1665
          %1701 = vadd.xlane.f32.xlu0 %v1700
          %v1702 = vpop.xlane.xlu0 %1701
          %v1703 = vadd.f32 %v1666, %v1667
          %1704 = vadd.xlane.f32.xlu0 %v1703
          %v1705 = vpop.xlane.xlu0 %1704
          %v1706 = vadd.f32 %v1668, %v1669
          %1707 = vadd.xlane.f32.xlu0 %v1706
          %v1708 = vpop.xlane.xlu0 %1707
          %v1709 = vadd.f32 %v1670, %v1671
          %1710 = vadd.xlane.f32.xlu0 %v1709
          %v1711 = vpop.xlane.xlu0 %1710
          %v1712 = vadd.f32 %v1672, %v1673
          %1713 = vadd.xlane.f32.xlu0 %v1712
          %v1714 = vpop.xlane.xlu0 %1713
          %v1715 = vadd.f32 %v1674, %v1675
          %1716 = vadd.xlane.f32.xlu0 %v1715
          %v1717 = vpop.xlane.xlu0 %1716
          %v1718 = vadd.f32 %v1676, %v1677
          %1719 = vadd.xlane.f32.xlu0 %v1718
          %v1720 = vpop.xlane.xlu0 %1719
          %v1721 = vadd.f32 %v1678, %v1679
          %1722 = vadd.xlane.f32.xlu0 %v1721
          %v1723 = vpop.xlane.xlu0 %1722
          %v1724 = vadd.f32 %v1680, %v1681
          %1725 = vadd.xlane.f32.xlu0 %v1724
          %v1726 = vpop.xlane.xlu0 %1725
          %v1727 = vadd.f32 %v1682, %v1683
          %1728 = vadd.xlane.f32.xlu0 %v1727
          %v1729 = vpop.xlane.xlu0 %1728
          %v1730 = vadd.f32 %v1684, %v1685
          %1731 = vadd.xlane.f32.xlu0 %v1730
          %v1732 = vpop.xlane.xlu0 %1731
          %v1733 = vadd.f32 %v1686, %v1687
          %1734 = vadd.xlane.f32.xlu0 %v1733
          %v1735 = vpop.xlane.xlu0 %1734
          %v1736 = vmul.f32 %v1653, 2.0
          %v1737 = vsub.f32 %v365, %v1736
          %v1754 = vlaneseq
          %v1755 = vshrl.u32 %v1754, 7
          %v1756 = vsub.s32 %v383, %v1755
          %v1757 = vrot.slane %v1690, %v1756
          %v1758 = vadd.s32 %v383, 4294967288
          %v1759 = vlaneseq
          %v1760 = vshrl.u32 %v1759, 7
          %v1761 = vsub.s32 %v1758, %v1760
          %v1762 = vrot.slane %v1693, %v1761
          %vm1763 = vcmask 130112
          %v1764 = vsel %vm1763, %v1762, %v1757
          %v1765 = vadd.s32 %v383, 4294967280
          %v1766 = vlaneseq
          %v1767 = vshrl.u32 %v1766, 7
          %v1768 = vsub.s32 %v1765, %v1767
          %v1769 = vrot.slane %v1696, %v1768
          %vm1770 = vcmask 195712
          %v1771 = vsel %vm1770, %v1769, %v1764
          %v1772 = vadd.s32 %v383, 4294967272
          %v1773 = vlaneseq
          %v1774 = vshrl.u32 %v1773, 7
          %v1775 = vsub.s32 %v1772, %v1774
          %v1776 = vrot.slane %v1699, %v1775
          %vm1777 = vcmask 261312
          %v1778 = vsel %vm1777, %v1776, %v1771
          %v1779 = vadd.s32 %v383, 4294967264
          %v1780 = vlaneseq
          %v1781 = vshrl.u32 %v1780, 7
          %v1782 = vsub.s32 %v1779, %v1781
          %v1783 = vrot.slane %v1702, %v1782
          %vm1784 = vcmask 326912
          %v1785 = vsel %vm1784, %v1783, %v1778
          %v1786 = vadd.s32 %v383, 4294967256
          %v1787 = vlaneseq
          %v1788 = vshrl.u32 %v1787, 7
          %v1789 = vsub.s32 %v1786, %v1788
          %v1790 = vrot.slane %v1705, %v1789
          %vm1791 = vcmask 392512
          %v1792 = vsel %vm1791, %v1790, %v1785
          %v1793 = vadd.s32 %v383, 4294967248
          %v1794 = vlaneseq
          %v1795 = vshrl.u32 %v1794, 7
          %v1796 = vsub.s32 %v1793, %v1795
          %v1797 = vrot.slane %v1708, %v1796
          %vm1798 = vcmask 458112
          %v1799 = vsel %vm1798, %v1797, %v1792
          %v1800 = vadd.s32 %v383, 4294967240
          %v1801 = vlaneseq
          %v1802 = vshrl.u32 %v1801, 7
          %v1803 = vsub.s32 %v1800, %v1802
          %v1804 = vrot.slane %v1711, %v1803
          %vm1805 = vcmask 523712
          %v1806 = vsel %vm1805, %v1804, %v1799
          %v1807 = vadd.s32 %v383, 4294967232
          %v1808 = vlaneseq
          %v1809 = vshrl.u32 %v1808, 7
          %v1810 = vsub.s32 %v1807, %v1809
          %v1811 = vrot.slane %v1714, %v1810
          %vm1812 = vcmask 589312
          %v1813 = vsel %vm1812, %v1811, %v1806
          %v1814 = vadd.s32 %v383, 4294967224
          %v1815 = vlaneseq
          %v1816 = vshrl.u32 %v1815, 7
          %v1817 = vsub.s32 %v1814, %v1816
          %v1818 = vrot.slane %v1717, %v1817
          %vm1819 = vcmask 654912
          %v1820 = vsel %vm1819, %v1818, %v1813
          %v1821 = vadd.s32 %v383, 4294967216
          %v1822 = vlaneseq
          %v1823 = vshrl.u32 %v1822, 7
          %v1824 = vsub.s32 %v1821, %v1823
          %v1825 = vrot.slane %v1720, %v1824
          %vm1826 = vcmask 720512
          %v1827 = vsel %vm1826, %v1825, %v1820
          %v1828 = vadd.s32 %v383, 4294967208
          %v1829 = vlaneseq
          %v1830 = vshrl.u32 %v1829, 7
          %v1831 = vsub.s32 %v1828, %v1830
          %v1832 = vrot.slane %v1723, %v1831
          %vm1833 = vcmask 786112
          %v1834 = vsel %vm1833, %v1832, %v1827
          %v1835 = vadd.s32 %v383, 4294967200
          %v1836 = vlaneseq
          %v1837 = vshrl.u32 %v1836, 7
          %v1838 = vsub.s32 %v1835, %v1837
          %v1839 = vrot.slane %v1726, %v1838
          %vm1840 = vcmask 851712
          %v1841 = vsel %vm1840, %v1839, %v1834
          %v1842 = vadd.s32 %v383, 4294967192
          %v1843 = vlaneseq
          %v1844 = vshrl.u32 %v1843, 7
          %v1845 = vsub.s32 %v1842, %v1844
          %v1846 = vrot.slane %v1729, %v1845
          %vm1847 = vcmask 917312
          %v1848 = vsel %vm1847, %v1846, %v1841
          %v1849 = vadd.s32 %v383, 4294967184
          %v1850 = vlaneseq
          %v1851 = vshrl.u32 %v1850, 7
          %v1852 = vsub.s32 %v1849, %v1851
          %v1853 = vrot.slane %v1732, %v1852
          %vm1854 = vcmask 982912
          %v1855 = vsel %vm1854, %v1853, %v1848
          %v1856 = vadd.s32 %v383, 4294967176
          %v1857 = vlaneseq
          %v1858 = vshrl.u32 %v1857, 7
          %v1859 = vsub.s32 %v1856, %v1858
          %v1860 = vrot.slane %v1735, %v1859
          %vm1861 = vcmask 1048512
          %v1862 = vsel %vm1861, %v1860, %v1855
          %v1864 = vadd.f32 %v1737, %v1862
          %vm1865 = vcmask 1041408
          %v1866 = vsel %vm1865, %v1864, inf
          %1867 = vmin.xlane.f32.xlu0 %v1866
          %v1868 = vpop.xlane.xlu0 %1867
          %vm1869 = vcmp.le.f32.partialorder %v1864, %v1868
          %v1870 = vsel %vm1869, %v383, 128
          %v1871 = vsel %vm1865, %v1870, 2147483647
          %v1872 = vand.u32 %v1871, 65535
          %v1873 = vshra.s32 %v1871, 16
          %v1874 = vcvt.s32.f32 %v1872
          %v1875 = vcvt.s32.f32 %v1873
          %1876 = vmin.xlane.f32.xlu0 %v1875
          %v1877 = vpop.xlane.xlu0 %1876
          %vm1878 = vcmp.eq.f32.partialorder %v1875, %v1877
          %v1879 = vsel %vm1878, %v1874, inf
          %1880 = vmin.xlane.f32.xlu0 %v1879
          %v1881 = vpop.xlane.xlu0 %1880
          %v1882 = vcvt.f32.s32 %v1881
          %v1883 = vcvt.f32.s32 %v1877
          %v1884 = vshll.u32 %v1883, 16
          %v1885 = vadd.s32 %v1884, %v1882
          %vm1886 = vcmp.lt.s32.totalorder %v1885, 127
          %v1887 = vsel %vm1886, %v1885, 127
          %vm1888 = vcmp.eq.s32.totalorder %v383, %v1887
          %v1889 = vsel %vm1888, 1, 0
          %v1890 = vcvt.s32.f32 %v1889
          %v1891 = vand.u32 %v722, 4294901760
          %1892 = vmatprep.subr.mxu0 %v1891
          %v1893 = vand.u32 %v720, 4294901760
          %1894 = vmatpush1.msra.mxu0 %v1893
          %v1895 = vand.u32 %v726, 4294901760
          %1896 = vmatprep.subr.mxu0 %v1895
          %v1897 = vand.u32 %v724, 4294901760
          %1898 = vmatpush1.msra.mxu0 %v1897
          %v1899 = vand.u32 %v730, 4294901760
          %1900 = vmatprep.subr.mxu0 %v1899
          %v1901 = vand.u32 %v728, 4294901760
          %1902 = vmatpush1.msra.mxu0 %v1901
          %v1903 = vand.u32 %v734, 4294901760
          %1904 = vmatprep.subr.mxu0 %v1903
          %v1905 = vand.u32 %v732, 4294901760
          %1906 = vmatpush1.msra.mxu0 %v1905
          %v1907 = vand.u32 %v738, 4294901760
          %1908 = vmatprep.subr.mxu0 %v1907
          %v1909 = vand.u32 %v736, 4294901760
          %1910 = vmatpush1.msra.mxu0 %v1909
          %v1911 = vand.u32 %v742, 4294901760
          %1912 = vmatprep.subr.mxu0 %v1911
          %v1913 = vand.u32 %v740, 4294901760
          %1914 = vmatpush1.msra.mxu0 %v1913
          %v1915 = vand.u32 %v746, 4294901760
          %1916 = vmatprep.subr.mxu0 %v1915
          %v1917 = vand.u32 %v744, 4294901760
          %1918 = vmatpush1.msra.mxu0 %v1917
          %v1919 = vand.u32 %v750, 4294901760
          %1920 = vmatprep.subr.mxu0 %v1919
          %v1921 = vand.u32 %v748, 4294901760
          %1922 = vmatpush1.msra.mxu0 %v1921
          %v1923 = vand.u32 %v754, 4294901760
          %1924 = vmatprep.subr.mxu0 %v1923
          %v1925 = vand.u32 %v752, 4294901760
          %1926 = vmatpush1.msra.mxu0 %v1925
          %v1927 = vand.u32 %v758, 4294901760
          %1928 = vmatprep.subr.mxu0 %v1927
          %v1929 = vand.u32 %v756, 4294901760
          %1930 = vmatpush1.msra.mxu0 %v1929
          %v1931 = vand.u32 %v762, 4294901760
          %1932 = vmatprep.subr.mxu0 %v1931
          %v1933 = vand.u32 %v760, 4294901760
          %1934 = vmatpush1.msra.mxu0 %v1933
          %v1935 = vand.u32 %v766, 4294901760
          %1936 = vmatprep.subr.mxu0 %v1935
          %v1937 = vand.u32 %v764, 4294901760
          %1938 = vmatpush1.msra.mxu0 %v1937
          %v1939 = vand.u32 %v770, 4294901760
          %1940 = vmatprep.subr.mxu0 %v1939
          %v1941 = vand.u32 %v768, 4294901760
          %1942 = vmatpush1.msra.mxu0 %v1941
          %v1943 = vand.u32 %v774, 4294901760
          %1944 = vmatprep.subr.mxu0 %v1943
          %v1945 = vand.u32 %v772, 4294901760
          %1946 = vmatpush1.msra.mxu0 %v1945
          %v1947 = vand.u32 %v778, 4294901760
          %1948 = vmatprep.subr.mxu0 %v1947
          %v1949 = vand.u32 %v776, 4294901760
          %1950 = vmatpush1.msra.mxu0 %v1949
          %v1951 = vand.u32 %v782, 4294901760
          %1952 = vmatprep.subr.mxu0 %v1951
          %v1953 = vand.u32 %v780, 4294901760
          %1954 = vmatpush1.msra.mxu0 %v1953
          %1955 = vmatprep.subr.mxu0 0.0
          %1956 = vmatpush1.msra.mxu0 0.0
          %1957 = vmatprep.subr.mxu0 0.0
          %1958 = vmatpush1.msra.mxu0 0.0
          %1959 = vmatprep.subr.mxu0 0.0
          %1960 = vmatpush1.msra.mxu0 0.0
          %1961 = vmatprep.subr.mxu0 0.0
          %1962 = vmatpush1.msra.mxu0 0.0
          %1963 = vmatprep.subr.mxu0 0.0
          %1964 = vmatpush1.msra.mxu0 0.0
          %1965 = vmatprep.subr.mxu0 0.0
          %1966 = vmatpush1.msra.mxu0 0.0
          %1967 = vmatprep.subr.mxu0 0.0
          %1968 = vmatpush1.msra.mxu0 0.0
          %1969 = vmatprep.subr.mxu0 0.0
          %1970 = vmatpush1.msra.mxu0 0.0
          %1971 = vmatprep.subr.mxu0 0.0
          %1972 = vmatpush1.msra.mxu0 0.0
          %1973 = vmatprep.subr.mxu0 0.0
          %1974 = vmatpush1.msra.mxu0 0.0
          %1975 = vmatprep.subr.mxu0 0.0
          %1976 = vmatpush1.msra.mxu0 0.0
          %1977 = vmatprep.subr.mxu0 0.0
          %1978 = vmatpush1.msra.mxu0 0.0
          %1979 = vmatprep.subr.mxu0 0.0
          %1980 = vmatpush1.msra.mxu0 0.0
          %1981 = vmatprep.subr.mxu0 0.0
          %1982 = vmatpush1.msra.mxu0 0.0
          %1983 = vmatprep.subr.mxu0 0.0
          %1984 = vmatpush1.msra.mxu0 0.0
          %1985 = vmatprep.subr.mxu0 0.0
          %1986 = vmatpush1.msra.mxu0 0.0
          %1987 = vmatprep.mubr.f32.mxu0 0.0
          %v1988 = vand.u32 %v1890, 4294901760
          %v1989 = vsub.f32 %v1890, %v1988
          %v1990 = vand.u32 %v1989, 4294901760
          %v1991 = vsub.f32 %v1989, %v1990
          %v1992 = vand.u32 %v1991, 4294901760
          %1993 = vmatmul.mubr.f32.gmra.mrb[0].mxu0 %v1992
          %v1994 = vpop.f32.mrb[0].mxu0
          %v1995 = vadd.f32 0.0, %v1994
          %v1996 = vpop.f32.mrb[0].mxu0
          %v1997 = vadd.f32 0.0, %v1996
          %1998 = vdwg.mxu0
          %v1999 = vand.u32 %v722, 4294901760
          %v2000 = vsub.f32 %v722, %v1999
          %v2001 = vand.u32 %v2000, 4294901760
          %v2002 = vsub.f32 %v2000, %v2001
          %v2003 = vand.u32 %v2002, 4294901760
          %2004 = vmatprep.subr.mxu0 %v2003
          %v2005 = vand.u32 %v720, 4294901760
          %v2006 = vsub.f32 %v720, %v2005
          %v2007 = vand.u32 %v2006, 4294901760
          %v2008 = vsub.f32 %v2006, %v2007
          %v2009 = vand.u32 %v2008, 4294901760
          %2010 = vmatpush1.msra.mxu0 %v2009
          %v2011 = vand.u32 %v726, 4294901760
          %v2012 = vsub.f32 %v726, %v2011
          %v2013 = vand.u32 %v2012, 4294901760
          %v2014 = vsub.f32 %v2012, %v2013
          %v2015 = vand.u32 %v2014, 4294901760
          %2016 = vmatprep.subr.mxu0 %v2015
          %v2017 = vand.u32 %v724, 4294901760
          %v2018 = vsub.f32 %v724, %v2017
          %v2019 = vand.u32 %v2018, 4294901760
          %v2020 = vsub.f32 %v2018, %v2019
          %v2021 = vand.u32 %v2020, 4294901760
          %2022 = vmatpush1.msra.mxu0 %v2021
          %v2023 = vand.u32 %v730, 4294901760
          %v2024 = vsub.f32 %v730, %v2023
          %v2025 = vand.u32 %v2024, 4294901760
          %v2026 = vsub.f32 %v2024, %v2025
          %v2027 = vand.u32 %v2026, 4294901760
          %2028 = vmatprep.subr.mxu0 %v2027
          %v2029 = vand.u32 %v728, 4294901760
          %v2030 = vsub.f32 %v728, %v2029
          %v2031 = vand.u32 %v2030, 4294901760
          %v2032 = vsub.f32 %v2030, %v2031
          %v2033 = vand.u32 %v2032, 4294901760
          %2034 = vmatpush1.msra.mxu0 %v2033
          %v2035 = vand.u32 %v734, 4294901760
          %v2036 = vsub.f32 %v734, %v2035
          %v2037 = vand.u32 %v2036, 4294901760
          %v2038 = vsub.f32 %v2036, %v2037
          %v2039 = vand.u32 %v2038, 4294901760
          %2040 = vmatprep.subr.mxu0 %v2039
          %v2041 = vand.u32 %v732, 4294901760
          %v2042 = vsub.f32 %v732, %v2041
          %v2043 = vand.u32 %v2042, 4294901760
          %v2044 = vsub.f32 %v2042, %v2043
          %v2045 = vand.u32 %v2044, 4294901760
          %2046 = vmatpush1.msra.mxu0 %v2045
          %v2047 = vand.u32 %v738, 4294901760
          %v2048 = vsub.f32 %v738, %v2047
          %v2049 = vand.u32 %v2048, 4294901760
          %v2050 = vsub.f32 %v2048, %v2049
          %v2051 = vand.u32 %v2050, 4294901760
          %2052 = vmatprep.subr.mxu0 %v2051
          %v2053 = vand.u32 %v736, 4294901760
          %v2054 = vsub.f32 %v736, %v2053
          %v2055 = vand.u32 %v2054, 4294901760
          %v2056 = vsub.f32 %v2054, %v2055
          %v2057 = vand.u32 %v2056, 4294901760
          %2058 = vmatpush1.msra.mxu0 %v2057
          %v2059 = vand.u32 %v742, 4294901760
          %v2060 = vsub.f32 %v742, %v2059
          %v2061 = vand.u32 %v2060, 4294901760
          %v2062 = vsub.f32 %v2060, %v2061
          %v2063 = vand.u32 %v2062, 4294901760
          %2064 = vmatprep.subr.mxu0 %v2063
          %v2065 = vand.u32 %v740, 4294901760
          %v2066 = vsub.f32 %v740, %v2065
          %v2067 = vand.u32 %v2066, 4294901760
          %v2068 = vsub.f32 %v2066, %v2067
          %v2069 = vand.u32 %v2068, 4294901760
          %2070 = vmatpush1.msra.mxu0 %v2069
          %v2071 = vand.u32 %v746, 4294901760
          %v2072 = vsub.f32 %v746, %v2071
          %v2073 = vand.u32 %v2072, 4294901760
          %v2074 = vsub.f32 %v2072, %v2073
          %v2075 = vand.u32 %v2074, 4294901760
          %2076 = vmatprep.subr.mxu0 %v2075
          %v2077 = vand.u32 %v744, 4294901760
          %v2078 = vsub.f32 %v744, %v2077
          %v2079 = vand.u32 %v2078, 4294901760
          %v2080 = vsub.f32 %v2078, %v2079
          %v2081 = vand.u32 %v2080, 4294901760
          %2082 = vmatpush1.msra.mxu0 %v2081
          %v2083 = vand.u32 %v750, 4294901760
          %v2084 = vsub.f32 %v750, %v2083
          %v2085 = vand.u32 %v2084, 4294901760
          %v2086 = vsub.f32 %v2084, %v2085
          %v2087 = vand.u32 %v2086, 4294901760
          %2088 = vmatprep.subr.mxu0 %v2087
          %v2089 = vand.u32 %v748, 4294901760
          %v2090 = vsub.f32 %v748, %v2089
          %v2091 = vand.u32 %v2090, 4294901760
          %v2092 = vsub.f32 %v2090, %v2091
          %v2093 = vand.u32 %v2092, 4294901760
          %2094 = vmatpush1.msra.mxu0 %v2093
          %v2095 = vand.u32 %v754, 4294901760
          %v2096 = vsub.f32 %v754, %v2095
          %v2097 = vand.u32 %v2096, 4294901760
          %v2098 = vsub.f32 %v2096, %v2097
          %v2099 = vand.u32 %v2098, 4294901760
          %2100 = vmatprep.subr.mxu0 %v2099
          %v2101 = vand.u32 %v752, 4294901760
          %v2102 = vsub.f32 %v752, %v2101
          %v2103 = vand.u32 %v2102, 4294901760
          %v2104 = vsub.f32 %v2102, %v2103
          %v2105 = vand.u32 %v2104, 4294901760
          %2106 = vmatpush1.msra.mxu0 %v2105
          %v2107 = vand.u32 %v758, 4294901760
          %v2108 = vsub.f32 %v758, %v2107
          %v2109 = vand.u32 %v2108, 4294901760
          %v2110 = vsub.f32 %v2108, %v2109
          %v2111 = vand.u32 %v2110, 4294901760
          %2112 = vmatprep.subr.mxu0 %v2111
          %v2113 = vand.u32 %v756, 4294901760
          %v2114 = vsub.f32 %v756, %v2113
          %v2115 = vand.u32 %v2114, 4294901760
          %v2116 = vsub.f32 %v2114, %v2115
          %v2117 = vand.u32 %v2116, 4294901760
          %2118 = vmatpush1.msra.mxu0 %v2117
          %v2119 = vand.u32 %v762, 4294901760
          %v2120 = vsub.f32 %v762, %v2119
          %v2121 = vand.u32 %v2120, 4294901760
          %v2122 = vsub.f32 %v2120, %v2121
          %v2123 = vand.u32 %v2122, 4294901760
          %2124 = vmatprep.subr.mxu0 %v2123
          %v2125 = vand.u32 %v760, 4294901760
          %v2126 = vsub.f32 %v760, %v2125
          %v2127 = vand.u32 %v2126, 4294901760
          %v2128 = vsub.f32 %v2126, %v2127
          %v2129 = vand.u32 %v2128, 4294901760
          %2130 = vmatpush1.msra.mxu0 %v2129
          %v2131 = vand.u32 %v766, 4294901760
          %v2132 = vsub.f32 %v766, %v2131
          %v2133 = vand.u32 %v2132, 4294901760
          %v2134 = vsub.f32 %v2132, %v2133
          %v2135 = vand.u32 %v2134, 4294901760
          %2136 = vmatprep.subr.mxu0 %v2135
          %v2137 = vand.u32 %v764, 4294901760
          %v2138 = vsub.f32 %v764, %v2137
          %v2139 = vand.u32 %v2138, 4294901760
          %v2140 = vsub.f32 %v2138, %v2139
          %v2141 = vand.u32 %v2140, 4294901760
          %2142 = vmatpush1.msra.mxu0 %v2141
          %v2143 = vand.u32 %v770, 4294901760
          %v2144 = vsub.f32 %v770, %v2143
          %v2145 = vand.u32 %v2144, 4294901760
          %v2146 = vsub.f32 %v2144, %v2145
          %v2147 = vand.u32 %v2146, 4294901760
          %2148 = vmatprep.subr.mxu0 %v2147
          %v2149 = vand.u32 %v768, 4294901760
          %v2150 = vsub.f32 %v768, %v2149
          %v2151 = vand.u32 %v2150, 4294901760
          %v2152 = vsub.f32 %v2150, %v2151
          %v2153 = vand.u32 %v2152, 4294901760
          %2154 = vmatpush1.msra.mxu0 %v2153
          %v2155 = vand.u32 %v774, 4294901760
          %v2156 = vsub.f32 %v774, %v2155
          %v2157 = vand.u32 %v2156, 4294901760
          %v2158 = vsub.f32 %v2156, %v2157
          %v2159 = vand.u32 %v2158, 4294901760
          %2160 = vmatprep.subr.mxu0 %v2159
          %v2161 = vand.u32 %v772, 4294901760
          %v2162 = vsub.f32 %v772, %v2161
          %v2163 = vand.u32 %v2162, 4294901760
          %v2164 = vsub.f32 %v2162, %v2163
          %v2165 = vand.u32 %v2164, 4294901760
          %2166 = vmatpush1.msra.mxu0 %v2165
          %v2167 = vand.u32 %v778, 4294901760
          %v2168 = vsub.f32 %v778, %v2167
          %v2169 = vand.u32 %v2168, 4294901760
          %v2170 = vsub.f32 %v2168, %v2169
          %v2171 = vand.u32 %v2170, 4294901760
          %2172 = vmatprep.subr.mxu0 %v2171
          %v2173 = vand.u32 %v776, 4294901760
          %v2174 = vsub.f32 %v776, %v2173
          %v2175 = vand.u32 %v2174, 4294901760
          %v2176 = vsub.f32 %v2174, %v2175
          %v2177 = vand.u32 %v2176, 4294901760
          %2178 = vmatpush1.msra.mxu0 %v2177
          %v2179 = vand.u32 %v782, 4294901760
          %v2180 = vsub.f32 %v782, %v2179
          %v2181 = vand.u32 %v2180, 4294901760
          %v2182 = vsub.f32 %v2180, %v2181
          %v2183 = vand.u32 %v2182, 4294901760
          %2184 = vmatprep.subr.mxu0 %v2183
          %v2185 = vand.u32 %v780, 4294901760
          %v2186 = vsub.f32 %v780, %v2185
          %v2187 = vand.u32 %v2186, 4294901760
          %v2188 = vsub.f32 %v2186, %v2187
          %v2189 = vand.u32 %v2188, 4294901760
          %2190 = vmatpush1.msra.mxu0 %v2189
          %2191 = vmatprep.subr.mxu0 0.0
          %2192 = vmatpush1.msra.mxu0 0.0
          %2193 = vmatprep.subr.mxu0 0.0
          %2194 = vmatpush1.msra.mxu0 0.0
          %2195 = vmatprep.subr.mxu0 0.0
          %2196 = vmatpush1.msra.mxu0 0.0
          %2197 = vmatprep.subr.mxu0 0.0
          %2198 = vmatpush1.msra.mxu0 0.0
          %2199 = vmatprep.subr.mxu0 0.0
          %2200 = vmatpush1.msra.mxu0 0.0
          %2201 = vmatprep.subr.mxu0 0.0
          %2202 = vmatpush1.msra.mxu0 0.0
          %2203 = vmatprep.subr.mxu0 0.0
          %2204 = vmatpush1.msra.mxu0 0.0
          %2205 = vmatprep.subr.mxu0 0.0
          %2206 = vmatpush1.msra.mxu0 0.0
          %2207 = vmatprep.subr.mxu0 0.0
          %2208 = vmatpush1.msra.mxu0 0.0
          %2209 = vmatprep.subr.mxu0 0.0
          %2210 = vmatpush1.msra.mxu0 0.0
          %2211 = vmatprep.subr.mxu0 0.0
          %2212 = vmatpush1.msra.mxu0 0.0
          %2213 = vmatprep.subr.mxu0 0.0
          %2214 = vmatpush1.msra.mxu0 0.0
          %2215 = vmatprep.subr.mxu0 0.0
          %2216 = vmatpush1.msra.mxu0 0.0
          %2217 = vmatprep.subr.mxu0 0.0
          %2218 = vmatpush1.msra.mxu0 0.0
          %2219 = vmatprep.subr.mxu0 0.0
          %2220 = vmatpush1.msra.mxu0 0.0
          %2221 = vmatprep.subr.mxu0 0.0
          %2222 = vmatpush1.msra.mxu0 0.0
          %2223 = vmatprep.mubr.f32.mxu0 0.0
          %v2224 = vand.u32 %v1890, 4294901760
          %2225 = vmatmul.mubr.f32.gmra.mrb[0].mxu0 %v2224
          %v2226 = vpop.f32.mrb[0].mxu0
          %v2227 = vadd.f32 %v1995, %v2226
          %v2228 = vpop.f32.mrb[0].mxu0
          %v2229 = vadd.f32 %v1997, %v2228
          %2230 = vdwg.mxu0
          %v2231 = vand.u32 %v722, 4294901760
          %v2232 = vsub.f32 %v722, %v2231
          %2233 = vmatprep.subr.mxu0 %v2232
          %v2234 = vand.u32 %v720, 4294901760
          %v2235 = vsub.f32 %v720, %v2234
          %2236 = vmatpush1.msra.mxu0 %v2235
          %v2237 = vand.u32 %v726, 4294901760
          %v2238 = vsub.f32 %v726, %v2237
          %2239 = vmatprep.subr.mxu0 %v2238
          %v2240 = vand.u32 %v724, 4294901760
          %v2241 = vsub.f32 %v724, %v2240
          %2242 = vmatpush1.msra.mxu0 %v2241
          %v2243 = vand.u32 %v730, 4294901760
          %v2244 = vsub.f32 %v730, %v2243
          %2245 = vmatprep.subr.mxu0 %v2244
          %v2246 = vand.u32 %v728, 4294901760
          %v2247 = vsub.f32 %v728, %v2246
          %2248 = vmatpush1.msra.mxu0 %v2247
          %v2249 = vand.u32 %v734, 4294901760
          %v2250 = vsub.f32 %v734, %v2249
          %2251 = vmatprep.subr.mxu0 %v2250
          %v2252 = vand.u32 %v732, 4294901760
          %v2253 = vsub.f32 %v732, %v2252
          %2254 = vmatpush1.msra.mxu0 %v2253
          %v2255 = vand.u32 %v738, 4294901760
          %v2256 = vsub.f32 %v738, %v2255
          %2257 = vmatprep.subr.mxu0 %v2256
          %v2258 = vand.u32 %v736, 4294901760
          %v2259 = vsub.f32 %v736, %v2258
          %2260 = vmatpush1.msra.mxu0 %v2259
          %v2261 = vand.u32 %v742, 4294901760
          %v2262 = vsub.f32 %v742, %v2261
          %2263 = vmatprep.subr.mxu0 %v2262
          %v2264 = vand.u32 %v740, 4294901760
          %v2265 = vsub.f32 %v740, %v2264
          %2266 = vmatpush1.msra.mxu0 %v2265
          %v2267 = vand.u32 %v746, 4294901760
          %v2268 = vsub.f32 %v746, %v2267
          %2269 = vmatprep.subr.mxu0 %v2268
          %v2270 = vand.u32 %v744, 4294901760
          %v2271 = vsub.f32 %v744, %v2270
          %2272 = vmatpush1.msra.mxu0 %v2271
          %v2273 = vand.u32 %v750, 4294901760
          %v2274 = vsub.f32 %v750, %v2273
          %2275 = vmatprep.subr.mxu0 %v2274
          %v2276 = vand.u32 %v748, 4294901760
          %v2277 = vsub.f32 %v748, %v2276
          %2278 = vmatpush1.msra.mxu0 %v2277
          %v2279 = vand.u32 %v754, 4294901760
          %v2280 = vsub.f32 %v754, %v2279
          %2281 = vmatprep.subr.mxu0 %v2280
          %v2282 = vand.u32 %v752, 4294901760
          %v2283 = vsub.f32 %v752, %v2282
          %2284 = vmatpush1.msra.mxu0 %v2283
          %v2285 = vand.u32 %v758, 4294901760
          %v2286 = vsub.f32 %v758, %v2285
          %2287 = vmatprep.subr.mxu0 %v2286
          %v2288 = vand.u32 %v756, 4294901760
          %v2289 = vsub.f32 %v756, %v2288
          %2290 = vmatpush1.msra.mxu0 %v2289
          %v2291 = vand.u32 %v762, 4294901760
          %v2292 = vsub.f32 %v762, %v2291
          %2293 = vmatprep.subr.mxu0 %v2292
          %v2294 = vand.u32 %v760, 4294901760
          %v2295 = vsub.f32 %v760, %v2294
          %2296 = vmatpush1.msra.mxu0 %v2295
          %v2297 = vand.u32 %v766, 4294901760
          %v2298 = vsub.f32 %v766, %v2297
          %2299 = vmatprep.subr.mxu0 %v2298
          %v2300 = vand.u32 %v764, 4294901760
          %v2301 = vsub.f32 %v764, %v2300
          %2302 = vmatpush1.msra.mxu0 %v2301
          %v2303 = vand.u32 %v770, 4294901760
          %v2304 = vsub.f32 %v770, %v2303
          %2305 = vmatprep.subr.mxu0 %v2304
          %v2306 = vand.u32 %v768, 4294901760
          %v2307 = vsub.f32 %v768, %v2306
          %2308 = vmatpush1.msra.mxu0 %v2307
          %v2309 = vand.u32 %v774, 4294901760
          %v2310 = vsub.f32 %v774, %v2309
          %2311 = vmatprep.subr.mxu0 %v2310
          %v2312 = vand.u32 %v772, 4294901760
          %v2313 = vsub.f32 %v772, %v2312
          %2314 = vmatpush1.msra.mxu0 %v2313
          %v2315 = vand.u32 %v778, 4294901760
          %v2316 = vsub.f32 %v778, %v2315
          %2317 = vmatprep.subr.mxu0 %v2316
          %v2318 = vand.u32 %v776, 4294901760
          %v2319 = vsub.f32 %v776, %v2318
          %2320 = vmatpush1.msra.mxu0 %v2319
          %v2321 = vand.u32 %v782, 4294901760
          %v2322 = vsub.f32 %v782, %v2321
          %2323 = vmatprep.subr.mxu0 %v2322
          %v2324 = vand.u32 %v780, 4294901760
          %v2325 = vsub.f32 %v780, %v2324
          %2326 = vmatpush1.msra.mxu0 %v2325
          %2327 = vmatprep.subr.mxu0 0.0
          %2328 = vmatpush1.msra.mxu0 0.0
          %2329 = vmatprep.subr.mxu0 0.0
          %2330 = vmatpush1.msra.mxu0 0.0
          %2331 = vmatprep.subr.mxu0 0.0
          %2332 = vmatpush1.msra.mxu0 0.0
          %2333 = vmatprep.subr.mxu0 0.0
          %2334 = vmatpush1.msra.mxu0 0.0
          %2335 = vmatprep.subr.mxu0 0.0
          %2336 = vmatpush1.msra.mxu0 0.0
          %2337 = vmatprep.subr.mxu0 0.0
          %2338 = vmatpush1.msra.mxu0 0.0
          %2339 = vmatprep.subr.mxu0 0.0
          %2340 = vmatpush1.msra.mxu0 0.0
          %2341 = vmatprep.subr.mxu0 0.0
          %2342 = vmatpush1.msra.mxu0 0.0
          %2343 = vmatprep.subr.mxu0 0.0
          %2344 = vmatpush1.msra.mxu0 0.0
          %2345 = vmatprep.subr.mxu0 0.0
          %2346 = vmatpush1.msra.mxu0 0.0
          %2347 = vmatprep.subr.mxu0 0.0
          %2348 = vmatpush1.msra.mxu0 0.0
          %2349 = vmatprep.subr.mxu0 0.0
          %2350 = vmatpush1.msra.mxu0 0.0
          %2351 = vmatprep.subr.mxu0 0.0
          %2352 = vmatpush1.msra.mxu0 0.0
          %2353 = vmatprep.subr.mxu0 0.0
          %2354 = vmatpush1.msra.mxu0 0.0
          %2355 = vmatprep.subr.mxu0 0.0
          %2356 = vmatpush1.msra.mxu0 0.0
          %2357 = vmatprep.subr.mxu0 0.0
          %2358 = vmatpush1.msra.mxu0 0.0
          %2359 = vmatprep.mubr.f32.mxu0 0.0
          %v2360 = vand.u32 %v1890, 4294901760
          %v2361 = vsub.f32 %v1890, %v2360
          %2362 = vmatmul.mubr.f32.gmra.mrb[0].mxu0 %v2361
          %v2363 = vpop.f32.mrb[0].mxu0
          %v2364 = vadd.f32 %v2227, %v2363
          %v2365 = vpop.f32.mrb[0].mxu0
          %v2366 = vadd.f32 %v2229, %v2365
          %2367 = vdwg.mxu0
          %v2368 = vand.u32 %v722, 4294901760
          %2369 = vmatprep.subr.mxu0 %v2368
          %v2370 = vand.u32 %v720, 4294901760
          %2371 = vmatpush1.msra.mxu0 %v2370
          %v2372 = vand.u32 %v726, 4294901760
          %2373 = vmatprep.subr.mxu0 %v2372
          %v2374 = vand.u32 %v724, 4294901760
          %2375 = vmatpush1.msra.mxu0 %v2374
          %v2376 = vand.u32 %v730, 4294901760
          %2377 = vmatprep.subr.mxu0 %v2376
          %v2378 = vand.u32 %v728, 4294901760
          %2379 = vmatpush1.msra.mxu0 %v2378
          %v2380 = vand.u32 %v734, 4294901760
          %2381 = vmatprep.subr.mxu0 %v2380
          %v2382 = vand.u32 %v732, 4294901760
          %2383 = vmatpush1.msra.mxu0 %v2382
          %v2384 = vand.u32 %v738, 4294901760
          %2385 = vmatprep.subr.mxu0 %v2384
          %v2386 = vand.u32 %v736, 4294901760
          %2387 = vmatpush1.msra.mxu0 %v2386
          %v2388 = vand.u32 %v742, 4294901760
          %2389 = vmatprep.subr.mxu0 %v2388
          %v2390 = vand.u32 %v740, 4294901760
          %2391 = vmatpush1.msra.mxu0 %v2390
          %v2392 = vand.u32 %v746, 4294901760
          %2393 = vmatprep.subr.mxu0 %v2392
          %v2394 = vand.u32 %v744, 4294901760
          %2395 = vmatpush1.msra.mxu0 %v2394
          %v2396 = vand.u32 %v750, 4294901760
          %2397 = vmatprep.subr.mxu0 %v2396
          %v2398 = vand.u32 %v748, 4294901760
          %2399 = vmatpush1.msra.mxu0 %v2398
          %v2400 = vand.u32 %v754, 4294901760
          %2401 = vmatprep.subr.mxu0 %v2400
          %v2402 = vand.u32 %v752, 4294901760
          %2403 = vmatpush1.msra.mxu0 %v2402
          %v2404 = vand.u32 %v758, 4294901760
          %2405 = vmatprep.subr.mxu0 %v2404
          %v2406 = vand.u32 %v756, 4294901760
          %2407 = vmatpush1.msra.mxu0 %v2406
          %v2408 = vand.u32 %v762, 4294901760
          %2409 = vmatprep.subr.mxu0 %v2408
          %v2410 = vand.u32 %v760, 4294901760
          %2411 = vmatpush1.msra.mxu0 %v2410
          %v2412 = vand.u32 %v766, 4294901760
          %2413 = vmatprep.subr.mxu0 %v2412
          %v2414 = vand.u32 %v764, 4294901760
          %2415 = vmatpush1.msra.mxu0 %v2414
          %v2416 = vand.u32 %v770, 4294901760
          %2417 = vmatprep.subr.mxu0 %v2416
          %v2418 = vand.u32 %v768, 4294901760
          %2419 = vmatpush1.msra.mxu0 %v2418
          %v2420 = vand.u32 %v774, 4294901760
          %2421 = vmatprep.subr.mxu0 %v2420
          %v2422 = vand.u32 %v772, 4294901760
          %2423 = vmatpush1.msra.mxu0 %v2422
          %v2424 = vand.u32 %v778, 4294901760
          %2425 = vmatprep.subr.mxu0 %v2424
          %v2426 = vand.u32 %v776, 4294901760
          %2427 = vmatpush1.msra.mxu0 %v2426
          %v2428 = vand.u32 %v782, 4294901760
          %2429 = vmatprep.subr.mxu0 %v2428
          %v2430 = vand.u32 %v780, 4294901760
          %2431 = vmatpush1.msra.mxu0 %v2430
          %2432 = vmatprep.subr.mxu0 0.0
          %2433 = vmatpush1.msra.mxu0 0.0
          %2434 = vmatprep.subr.mxu0 0.0
          %2435 = vmatpush1.msra.mxu0 0.0
          %2436 = vmatprep.subr.mxu0 0.0
          %2437 = vmatpush1.msra.mxu0 0.0
          %2438 = vmatprep.subr.mxu0 0.0
          %2439 = vmatpush1.msra.mxu0 0.0
          %2440 = vmatprep.subr.mxu0 0.0
          %2441 = vmatpush1.msra.mxu0 0.0
          %2442 = vmatprep.subr.mxu0 0.0
          %2443 = vmatpush1.msra.mxu0 0.0
          %2444 = vmatprep.subr.mxu0 0.0
          %2445 = vmatpush1.msra.mxu0 0.0
          %2446 = vmatprep.subr.mxu0 0.0
          %2447 = vmatpush1.msra.mxu0 0.0
          %2448 = vmatprep.subr.mxu0 0.0
          %2449 = vmatpush1.msra.mxu0 0.0
          %2450 = vmatprep.subr.mxu0 0.0
          %2451 = vmatpush1.msra.mxu0 0.0
          %2452 = vmatprep.subr.mxu0 0.0
          %2453 = vmatpush1.msra.mxu0 0.0
          %2454 = vmatprep.subr.mxu0 0.0
          %2455 = vmatpush1.msra.mxu0 0.0
          %2456 = vmatprep.subr.mxu0 0.0
          %2457 = vmatpush1.msra.mxu0 0.0
          %2458 = vmatprep.subr.mxu0 0.0
          %2459 = vmatpush1.msra.mxu0 0.0
          %2460 = vmatprep.subr.mxu0 0.0
          %2461 = vmatpush1.msra.mxu0 0.0
          %2462 = vmatprep.subr.mxu0 0.0
          %2463 = vmatpush1.msra.mxu0 0.0
          %2464 = vmatprep.mubr.f32.mxu0 0.0
          %v2465 = vand.u32 %v1890, 4294901760
          %v2466 = vsub.f32 %v1890, %v2465
          %v2467 = vand.u32 %v2466, 4294901760
          %2468 = vmatmul.mubr.f32.gmra.mrb[0].mxu0 %v2467
          %v2469 = vpop.f32.mrb[0].mxu0
          %v2470 = vadd.f32 %v2364, %v2469
          %v2471 = vpop.f32.mrb[0].mxu0
          %v2472 = vadd.f32 %v2366, %v2471
          %2473 = vdwg.mxu0
          %v2474 = vand.u32 %v722, 4294901760
          %v2475 = vsub.f32 %v722, %v2474
          %v2476 = vand.u32 %v2475, 4294901760
          %2477 = vmatprep.subr.mxu0 %v2476
          %v2478 = vand.u32 %v720, 4294901760
          %v2479 = vsub.f32 %v720, %v2478
          %v2480 = vand.u32 %v2479, 4294901760
          %2481 = vmatpush1.msra.mxu0 %v2480
          %v2482 = vand.u32 %v726, 4294901760
          %v2483 = vsub.f32 %v726, %v2482
          %v2484 = vand.u32 %v2483, 4294901760
          %2485 = vmatprep.subr.mxu0 %v2484
          %v2486 = vand.u32 %v724, 4294901760
          %v2487 = vsub.f32 %v724, %v2486
          %v2488 = vand.u32 %v2487, 4294901760
          %2489 = vmatpush1.msra.mxu0 %v2488
          %v2490 = vand.u32 %v730, 4294901760
          %v2491 = vsub.f32 %v730, %v2490
          %v2492 = vand.u32 %v2491, 4294901760
          %2493 = vmatprep.subr.mxu0 %v2492
          %v2494 = vand.u32 %v728, 4294901760
          %v2495 = vsub.f32 %v728, %v2494
          %v2496 = vand.u32 %v2495, 4294901760
          %2497 = vmatpush1.msra.mxu0 %v2496
          %v2498 = vand.u32 %v734, 4294901760
          %v2499 = vsub.f32 %v734, %v2498
          %v2500 = vand.u32 %v2499, 4294901760
          %2501 = vmatprep.subr.mxu0 %v2500
          %v2502 = vand.u32 %v732, 4294901760
          %v2503 = vsub.f32 %v732, %v2502
          %v2504 = vand.u32 %v2503, 4294901760
          %2505 = vmatpush1.msra.mxu0 %v2504
          %v2506 = vand.u32 %v738, 4294901760
          %v2507 = vsub.f32 %v738, %v2506
          %v2508 = vand.u32 %v2507, 4294901760
          %2509 = vmatprep.subr.mxu0 %v2508
          %v2510 = vand.u32 %v736, 4294901760
          %v2511 = vsub.f32 %v736, %v2510
          %v2512 = vand.u32 %v2511, 4294901760
          %2513 = vmatpush1.msra.mxu0 %v2512
          %v2514 = vand.u32 %v742, 4294901760
          %v2515 = vsub.f32 %v742, %v2514
          %v2516 = vand.u32 %v2515, 4294901760
          %2517 = vmatprep.subr.mxu0 %v2516
          %v2518 = vand.u32 %v740, 4294901760
          %v2519 = vsub.f32 %v740, %v2518
          %v2520 = vand.u32 %v2519, 4294901760
          %2521 = vmatpush1.msra.mxu0 %v2520
          %v2522 = vand.u32 %v746, 4294901760
          %v2523 = vsub.f32 %v746, %v2522
          %v2524 = vand.u32 %v2523, 4294901760
          %2525 = vmatprep.subr.mxu0 %v2524
          %v2526 = vand.u32 %v744, 4294901760
          %v2527 = vsub.f32 %v744, %v2526
          %v2528 = vand.u32 %v2527, 4294901760
          %2529 = vmatpush1.msra.mxu0 %v2528
          %v2530 = vand.u32 %v750, 4294901760
          %v2531 = vsub.f32 %v750, %v2530
          %v2532 = vand.u32 %v2531, 4294901760
          %2533 = vmatprep.subr.mxu0 %v2532
          %v2534 = vand.u32 %v748, 4294901760
          %v2535 = vsub.f32 %v748, %v2534
          %v2536 = vand.u32 %v2535, 4294901760
          %2537 = vmatpush1.msra.mxu0 %v2536
          %v2538 = vand.u32 %v754, 4294901760
          %v2539 = vsub.f32 %v754, %v2538
          %v2540 = vand.u32 %v2539, 4294901760
          %2541 = vmatprep.subr.mxu0 %v2540
          %v2542 = vand.u32 %v752, 4294901760
          %v2543 = vsub.f32 %v752, %v2542
          %v2544 = vand.u32 %v2543, 4294901760
          %2545 = vmatpush1.msra.mxu0 %v2544
          %v2546 = vand.u32 %v758, 4294901760
          %v2547 = vsub.f32 %v758, %v2546
          %v2548 = vand.u32 %v2547, 4294901760
          %2549 = vmatprep.subr.mxu0 %v2548
          %v2550 = vand.u32 %v756, 4294901760
          %v2551 = vsub.f32 %v756, %v2550
          %v2552 = vand.u32 %v2551, 4294901760
          %2553 = vmatpush1.msra.mxu0 %v2552
          %v2554 = vand.u32 %v762, 4294901760
          %v2555 = vsub.f32 %v762, %v2554
          %v2556 = vand.u32 %v2555, 4294901760
          %2557 = vmatprep.subr.mxu0 %v2556
          %v2558 = vand.u32 %v760, 4294901760
          %v2559 = vsub.f32 %v760, %v2558
          %v2560 = vand.u32 %v2559, 4294901760
          %2561 = vmatpush1.msra.mxu0 %v2560
          %v2562 = vand.u32 %v766, 4294901760
          %v2563 = vsub.f32 %v766, %v2562
          %v2564 = vand.u32 %v2563, 4294901760
          %2565 = vmatprep.subr.mxu0 %v2564
          %v2566 = vand.u32 %v764, 4294901760
          %v2567 = vsub.f32 %v764, %v2566
          %v2568 = vand.u32 %v2567, 4294901760
          %2569 = vmatpush1.msra.mxu0 %v2568
          %v2570 = vand.u32 %v770, 4294901760
          %v2571 = vsub.f32 %v770, %v2570
          %v2572 = vand.u32 %v2571, 4294901760
          %2573 = vmatprep.subr.mxu0 %v2572
          %v2574 = vand.u32 %v768, 4294901760
          %v2575 = vsub.f32 %v768, %v2574
          %v2576 = vand.u32 %v2575, 4294901760
          %2577 = vmatpush1.msra.mxu0 %v2576
          %v2578 = vand.u32 %v774, 4294901760
          %v2579 = vsub.f32 %v774, %v2578
          %v2580 = vand.u32 %v2579, 4294901760
          %2581 = vmatprep.subr.mxu0 %v2580
          %v2582 = vand.u32 %v772, 4294901760
          %v2583 = vsub.f32 %v772, %v2582
          %v2584 = vand.u32 %v2583, 4294901760
          %2585 = vmatpush1.msra.mxu0 %v2584
          %v2586 = vand.u32 %v778, 4294901760
          %v2587 = vsub.f32 %v778, %v2586
          %v2588 = vand.u32 %v2587, 4294901760
          %2589 = vmatprep.subr.mxu0 %v2588
          %v2590 = vand.u32 %v776, 4294901760
          %v2591 = vsub.f32 %v776, %v2590
          %v2592 = vand.u32 %v2591, 4294901760
          %2593 = vmatpush1.msra.mxu0 %v2592
          %v2594 = vand.u32 %v782, 4294901760
          %v2595 = vsub.f32 %v782, %v2594
          %v2596 = vand.u32 %v2595, 4294901760
          %2597 = vmatprep.subr.mxu0 %v2596
          %v2598 = vand.u32 %v780, 4294901760
          %v2599 = vsub.f32 %v780, %v2598
          %v2600 = vand.u32 %v2599, 4294901760
          %2601 = vmatpush1.msra.mxu0 %v2600
          %2602 = vmatprep.subr.mxu0 0.0
          %2603 = vmatpush1.msra.mxu0 0.0
          %2604 = vmatprep.subr.mxu0 0.0
          %2605 = vmatpush1.msra.mxu0 0.0
          %2606 = vmatprep.subr.mxu0 0.0
          %2607 = vmatpush1.msra.mxu0 0.0
          %2608 = vmatprep.subr.mxu0 0.0
          %2609 = vmatpush1.msra.mxu0 0.0
          %2610 = vmatprep.subr.mxu0 0.0
          %2611 = vmatpush1.msra.mxu0 0.0
          %2612 = vmatprep.subr.mxu0 0.0
          %2613 = vmatpush1.msra.mxu0 0.0
          %2614 = vmatprep.subr.mxu0 0.0
          %2615 = vmatpush1.msra.mxu0 0.0
          %2616 = vmatprep.subr.mxu0 0.0
          %2617 = vmatpush1.msra.mxu0 0.0
          %2618 = vmatprep.subr.mxu0 0.0
          %2619 = vmatpush1.msra.mxu0 0.0
          %2620 = vmatprep.subr.mxu0 0.0
          %2621 = vmatpush1.msra.mxu0 0.0
          %2622 = vmatprep.subr.mxu0 0.0
          %2623 = vmatpush1.msra.mxu0 0.0
          %2624 = vmatprep.subr.mxu0 0.0
          %2625 = vmatpush1.msra.mxu0 0.0
          %2626 = vmatprep.subr.mxu0 0.0
          %2627 = vmatpush1.msra.mxu0 0.0
          %2628 = vmatprep.subr.mxu0 0.0
          %2629 = vmatpush1.msra.mxu0 0.0
          %2630 = vmatprep.subr.mxu0 0.0
          %2631 = vmatpush1.msra.mxu0 0.0
          %2632 = vmatprep.subr.mxu0 0.0
          %2633 = vmatpush1.msra.mxu0 0.0
          %2634 = vmatprep.mubr.f32.mxu0 0.0
          %v2635 = vand.u32 %v1890, 4294901760
          %2636 = vmatmul.mubr.f32.gmra.mrb[0].mxu0 %v2635
          %v2637 = vpop.f32.mrb[0].mxu0
          %v2638 = vadd.f32 %v2470, %v2637
          %v2639 = vpop.f32.mrb[0].mxu0
          %v2640 = vadd.f32 %v2472, %v2639
          %2641 = vdwg.mxu0
          %v2642 = vand.u32 %v722, 4294901760
          %2643 = vmatprep.subr.mxu0 %v2642
          %v2644 = vand.u32 %v720, 4294901760
          %2645 = vmatpush1.msra.mxu0 %v2644
          %v2646 = vand.u32 %v726, 4294901760
          %2647 = vmatprep.subr.mxu0 %v2646
          %v2648 = vand.u32 %v724, 4294901760
          %2649 = vmatpush1.msra.mxu0 %v2648
          %v2650 = vand.u32 %v730, 4294901760
          %2651 = vmatprep.subr.mxu0 %v2650
          %v2652 = vand.u32 %v728, 4294901760
          %2653 = vmatpush1.msra.mxu0 %v2652
          %v2654 = vand.u32 %v734, 4294901760
          %2655 = vmatprep.subr.mxu0 %v2654
          %v2656 = vand.u32 %v732, 4294901760
          %2657 = vmatpush1.msra.mxu0 %v2656
          %v2658 = vand.u32 %v738, 4294901760
          %2659 = vmatprep.subr.mxu0 %v2658
          %v2660 = vand.u32 %v736, 4294901760
          %2661 = vmatpush1.msra.mxu0 %v2660
          %v2662 = vand.u32 %v742, 4294901760
          %2663 = vmatprep.subr.mxu0 %v2662
          %v2664 = vand.u32 %v740, 4294901760
          %2665 = vmatpush1.msra.mxu0 %v2664
          %v2666 = vand.u32 %v746, 4294901760
          %2667 = vmatprep.subr.mxu0 %v2666
          %v2668 = vand.u32 %v744, 4294901760
          %2669 = vmatpush1.msra.mxu0 %v2668
          %v2670 = vand.u32 %v750, 4294901760
          %2671 = vmatprep.subr.mxu0 %v2670
          %v2672 = vand.u32 %v748, 4294901760
          %2673 = vmatpush1.msra.mxu0 %v2672
          %v2674 = vand.u32 %v754, 4294901760
          %2675 = vmatprep.subr.mxu0 %v2674
          %v2676 = vand.u32 %v752, 4294901760
          %2677 = vmatpush1.msra.mxu0 %v2676
          %v2678 = vand.u32 %v758, 4294901760
          %2679 = vmatprep.subr.mxu0 %v2678
          %v2680 = vand.u32 %v756, 4294901760
          %2681 = vmatpush1.msra.mxu0 %v2680
          %v2682 = vand.u32 %v762, 4294901760
          %2683 = vmatprep.subr.mxu0 %v2682
          %v2684 = vand.u32 %v760, 4294901760
          %2685 = vmatpush1.msra.mxu0 %v2684
          %v2686 = vand.u32 %v766, 4294901760
          %2687 = vmatprep.subr.mxu0 %v2686
          %v2688 = vand.u32 %v764, 4294901760
          %2689 = vmatpush1.msra.mxu0 %v2688
          %v2690 = vand.u32 %v770, 4294901760
          %2691 = vmatprep.subr.mxu0 %v2690
          %v2692 = vand.u32 %v768, 4294901760
          %2693 = vmatpush1.msra.mxu0 %v2692
          %v2694 = vand.u32 %v774, 4294901760
          %2695 = vmatprep.subr.mxu0 %v2694
          %v2696 = vand.u32 %v772, 4294901760
          %2697 = vmatpush1.msra.mxu0 %v2696
          %v2698 = vand.u32 %v778, 4294901760
          %2699 = vmatprep.subr.mxu0 %v2698
          %v2700 = vand.u32 %v776, 4294901760
          %2701 = vmatpush1.msra.mxu0 %v2700
          %v2702 = vand.u32 %v782, 4294901760
          %2703 = vmatprep.subr.mxu0 %v2702
          %v2704 = vand.u32 %v780, 4294901760
          %2705 = vmatpush1.msra.mxu0 %v2704
          %2706 = vmatprep.subr.mxu0 0.0
          %2707 = vmatpush1.msra.mxu0 0.0
          %2708 = vmatprep.subr.mxu0 0.0
          %2709 = vmatpush1.msra.mxu0 0.0
          %2710 = vmatprep.subr.mxu0 0.0
          %2711 = vmatpush1.msra.mxu0 0.0
          %2712 = vmatprep.subr.mxu0 0.0
          %2713 = vmatpush1.msra.mxu0 0.0
          %2714 = vmatprep.subr.mxu0 0.0
          %2715 = vmatpush1.msra.mxu0 0.0
          %2716 = vmatprep.subr.mxu0 0.0
          %2717 = vmatpush1.msra.mxu0 0.0
          %2718 = vmatprep.subr.mxu0 0.0
          %2719 = vmatpush1.msra.mxu0 0.0
          %2720 = vmatprep.subr.mxu0 0.0
          %2721 = vmatpush1.msra.mxu0 0.0
          %2722 = vmatprep.subr.mxu0 0.0
          %2723 = vmatpush1.msra.mxu0 0.0
          %2724 = vmatprep.subr.mxu0 0.0
          %2725 = vmatpush1.msra.mxu0 0.0
          %2726 = vmatprep.subr.mxu0 0.0
          %2727 = vmatpush1.msra.mxu0 0.0
          %2728 = vmatprep.subr.mxu0 0.0
          %2729 = vmatpush1.msra.mxu0 0.0
          %2730 = vmatprep.subr.mxu0 0.0
          %2731 = vmatpush1.msra.mxu0 0.0
          %2732 = vmatprep.subr.mxu0 0.0
          %2733 = vmatpush1.msra.mxu0 0.0
          %2734 = vmatprep.subr.mxu0 0.0
          %2735 = vmatpush1.msra.mxu0 0.0
          %2736 = vmatprep.subr.mxu0 0.0
          %2737 = vmatpush1.msra.mxu0 0.0
          %2738 = vmatprep.mubr.f32.mxu0 0.0
          %v2739 = vand.u32 %v1890, 4294901760
          %2740 = vmatmul.mubr.f32.gmra.mrb[0].mxu0 %v2739
          %v2741 = vpop.f32.mrb[0].mxu0
          %v2742 = vadd.f32 %v2638, %v2741
          %v2743 = vpop.f32.mrb[0].mxu0
          %v2744 = vadd.f32 %v2640, %v2743
          %2745 = vdwg.mxu0
          %2746 = vmatprep.subr.mxu0 0.0
          %v2747 = vand.u32 %v366, 4294901760
          %2748 = vmatpush1.msra.mxu0 %v2747
          %2749 = vmatprep.subr.mxu0 0.0
          %v2750 = vand.u32 %v367, 4294901760
          %2751 = vmatpush1.msra.mxu0 %v2750
          %2752 = vmatprep.subr.mxu0 0.0
          %v2753 = vand.u32 %v368, 4294901760
          %2754 = vmatpush1.msra.mxu0 %v2753
          %2755 = vmatprep.subr.mxu0 0.0
          %v2756 = vand.u32 %v369, 4294901760
          %2757 = vmatpush1.msra.mxu0 %v2756
          %2758 = vmatprep.subr.mxu0 0.0
          %v2759 = vand.u32 %v370, 4294901760
          %2760 = vmatpush1.msra.mxu0 %v2759
          %2761 = vmatprep.subr.mxu0 0.0
          %v2762 = vand.u32 %v371, 4294901760
          %2763 = vmatpush1.msra.mxu0 %v2762
          %2764 = vmatprep.subr.mxu0 0.0
          %v2765 = vand.u32 %v372, 4294901760
          %2766 = vmatpush1.msra.mxu0 %v2765
          %2767 = vmatprep.subr.mxu0 0.0
          %v2768 = vand.u32 %v373, 4294901760
          %2769 = vmatpush1.msra.mxu0 %v2768
          %2770 = vmatprep.subr.mxu0 0.0
          %v2771 = vand.u32 %v374, 4294901760
          %2772 = vmatpush1.msra.mxu0 %v2771
          %2773 = vmatprep.subr.mxu0 0.0
          %v2774 = vand.u32 %v375, 4294901760
          %2775 = vmatpush1.msra.mxu0 %v2774
          %2776 = vmatprep.subr.mxu0 0.0
          %v2777 = vand.u32 %v376, 4294901760
          %2778 = vmatpush1.msra.mxu0 %v2777
          %2779 = vmatprep.subr.mxu0 0.0
          %v2780 = vand.u32 %v377, 4294901760
          %2781 = vmatpush1.msra.mxu0 %v2780
          %2782 = vmatprep.subr.mxu0 0.0
          %v2783 = vand.u32 %v378, 4294901760
          %2784 = vmatpush1.msra.mxu0 %v2783
          %2785 = vmatprep.subr.mxu0 0.0
          %v2786 = vand.u32 %v379, 4294901760
          %2787 = vmatpush1.msra.mxu0 %v2786
          %2788 = vmatprep.subr.mxu0 0.0
          %v2789 = vand.u32 %v380, 4294901760
          %2790 = vmatpush1.msra.mxu0 %v2789
          %2791 = vmatprep.subr.mxu0 0.0
          %v2792 = vand.u32 %v381, 4294901760
          %2793 = vmatpush1.msra.mxu0 %v2792
          %2794 = vmatprep.subr.mxu0 0.0
          %2795 = vmatpush1.msra.mxu0 0.0
          %2796 = vmatprep.subr.mxu0 0.0
          %2797 = vmatpush1.msra.mxu0 0.0
          %2798 = vmatprep.subr.mxu0 0.0
          %2799 = vmatpush1.msra.mxu0 0.0
          %2800 = vmatprep.subr.mxu0 0.0
          %2801 = vmatpush1.msra.mxu0 0.0
          %2802 = vmatprep.subr.mxu0 0.0
          %2803 = vmatpush1.msra.mxu0 0.0
          %2804 = vmatprep.subr.mxu0 0.0
          %2805 = vmatpush1.msra.mxu0 0.0
          %2806 = vmatprep.subr.mxu0 0.0
          %2807 = vmatpush1.msra.mxu0 0.0
          %2808 = vmatprep.subr.mxu0 0.0
          %2809 = vmatpush1.msra.mxu0 0.0
          %2810 = vmatprep.subr.mxu0 0.0
          %2811 = vmatpush1.msra.mxu0 0.0
          %2812 = vmatprep.subr.mxu0 0.0
          %2813 = vmatpush1.msra.mxu0 0.0
          %2814 = vmatprep.subr.mxu0 0.0
          %2815 = vmatpush1.msra.mxu0 0.0
          %2816 = vmatprep.subr.mxu0 0.0
          %2817 = vmatpush1.msra.mxu0 0.0
          %2818 = vmatprep.subr.mxu0 0.0
          %2819 = vmatpush1.msra.mxu0 0.0
          %2820 = vmatprep.subr.mxu0 0.0
          %2821 = vmatpush1.msra.mxu0 0.0
          %2822 = vmatprep.subr.mxu0 0.0
          %2823 = vmatpush1.msra.mxu0 0.0
          %2824 = vmatprep.subr.mxu0 0.0
          %2825 = vmatpush1.msra.mxu0 0.0
          %2826 = vmatprep.mubr.f32.mxu0 0.0
          %v2827 = vand.u32 %v1890, 4294901760
          %v2828 = vsub.f32 %v1890, %v2827
          %v2829 = vand.u32 %v2828, 4294901760
          %v2830 = vsub.f32 %v2828, %v2829
          %v2831 = vand.u32 %v2830, 4294901760
          %2832 = vmatmul.mubr.f32.gmra.mrb[0].mxu0 %v2831
          %v2833 = vpop.f32.mrb[0].mxu0
          %v2834 = vadd.f32 0.0, %v2833
          %v2835 = vpop.f32.mrb[0].mxu0
          %2836 = vdwg.mxu0
          %2837 = vmatprep.subr.mxu0 0.0
          %v2838 = vand.u32 %v366, 4294901760
          %v2839 = vsub.f32 %v366, %v2838
          %v2840 = vand.u32 %v2839, 4294901760
          %v2841 = vsub.f32 %v2839, %v2840
          %v2842 = vand.u32 %v2841, 4294901760
          %2843 = vmatpush1.msra.mxu0 %v2842
          %2844 = vmatprep.subr.mxu0 0.0
          %v2845 = vand.u32 %v367, 4294901760
          %v2846 = vsub.f32 %v367, %v2845
          %v2847 = vand.u32 %v2846, 4294901760
          %v2848 = vsub.f32 %v2846, %v2847
          %v2849 = vand.u32 %v2848, 4294901760
          %2850 = vmatpush1.msra.mxu0 %v2849
          %2851 = vmatprep.subr.mxu0 0.0
          %v2852 = vand.u32 %v368, 4294901760
          %v2853 = vsub.f32 %v368, %v2852
          %v2854 = vand.u32 %v2853, 4294901760
          %v2855 = vsub.f32 %v2853, %v2854
          %v2856 = vand.u32 %v2855, 4294901760
          %2857 = vmatpush1.msra.mxu0 %v2856
          %2858 = vmatprep.subr.mxu0 0.0
          %v2859 = vand.u32 %v369, 4294901760
          %v2860 = vsub.f32 %v369, %v2859
          %v2861 = vand.u32 %v2860, 4294901760
          %v2862 = vsub.f32 %v2860, %v2861
          %v2863 = vand.u32 %v2862, 4294901760
          %2864 = vmatpush1.msra.mxu0 %v2863
          %2865 = vmatprep.subr.mxu0 0.0
          %v2866 = vand.u32 %v370, 4294901760
          %v2867 = vsub.f32 %v370, %v2866
          %v2868 = vand.u32 %v2867, 4294901760
          %v2869 = vsub.f32 %v2867, %v2868
          %v2870 = vand.u32 %v2869, 4294901760
          %2871 = vmatpush1.msra.mxu0 %v2870
          %2872 = vmatprep.subr.mxu0 0.0
          %v2873 = vand.u32 %v371, 4294901760
          %v2874 = vsub.f32 %v371, %v2873
          %v2875 = vand.u32 %v2874, 4294901760
          %v2876 = vsub.f32 %v2874, %v2875
          %v2877 = vand.u32 %v2876, 4294901760
          %2878 = vmatpush1.msra.mxu0 %v2877
          %2879 = vmatprep.subr.mxu0 0.0
          %v2880 = vand.u32 %v372, 4294901760
          %v2881 = vsub.f32 %v372, %v2880
          %v2882 = vand.u32 %v2881, 4294901760
          %v2883 = vsub.f32 %v2881, %v2882
          %v2884 = vand.u32 %v2883, 4294901760
          %2885 = vmatpush1.msra.mxu0 %v2884
          %2886 = vmatprep.subr.mxu0 0.0
          %v2887 = vand.u32 %v373, 4294901760
          %v2888 = vsub.f32 %v373, %v2887
          %v2889 = vand.u32 %v2888, 4294901760
          %v2890 = vsub.f32 %v2888, %v2889
          %v2891 = vand.u32 %v2890, 4294901760
          %2892 = vmatpush1.msra.mxu0 %v2891
          %2893 = vmatprep.subr.mxu0 0.0
          %v2894 = vand.u32 %v374, 4294901760
          %v2895 = vsub.f32 %v374, %v2894
          %v2896 = vand.u32 %v2895, 4294901760
          %v2897 = vsub.f32 %v2895, %v2896
          %v2898 = vand.u32 %v2897, 4294901760
          %2899 = vmatpush1.msra.mxu0 %v2898
          %2900 = vmatprep.subr.mxu0 0.0
          %v2901 = vand.u32 %v375, 4294901760
          %v2902 = vsub.f32 %v375, %v2901
          %v2903 = vand.u32 %v2902, 4294901760
          %v2904 = vsub.f32 %v2902, %v2903
          %v2905 = vand.u32 %v2904, 4294901760
          %2906 = vmatpush1.msra.mxu0 %v2905
          %2907 = vmatprep.subr.mxu0 0.0
          %v2908 = vand.u32 %v376, 4294901760
          %v2909 = vsub.f32 %v376, %v2908
          %v2910 = vand.u32 %v2909, 4294901760
          %v2911 = vsub.f32 %v2909, %v2910
          %v2912 = vand.u32 %v2911, 4294901760
          %2913 = vmatpush1.msra.mxu0 %v2912
          %2914 = vmatprep.subr.mxu0 0.0
          %v2915 = vand.u32 %v377, 4294901760
          %v2916 = vsub.f32 %v377, %v2915
          %v2917 = vand.u32 %v2916, 4294901760
          %v2918 = vsub.f32 %v2916, %v2917
          %v2919 = vand.u32 %v2918, 4294901760
          %2920 = vmatpush1.msra.mxu0 %v2919
          %2921 = vmatprep.subr.mxu0 0.0
          %v2922 = vand.u32 %v378, 4294901760
          %v2923 = vsub.f32 %v378, %v2922
          %v2924 = vand.u32 %v2923, 4294901760
          %v2925 = vsub.f32 %v2923, %v2924
          %v2926 = vand.u32 %v2925, 4294901760
          %2927 = vmatpush1.msra.mxu0 %v2926
          %2928 = vmatprep.subr.mxu0 0.0
          %v2929 = vand.u32 %v379, 4294901760
          %v2930 = vsub.f32 %v379, %v2929
          %v2931 = vand.u32 %v2930, 4294901760
          %v2932 = vsub.f32 %v2930, %v2931
          %v2933 = vand.u32 %v2932, 4294901760
          %2934 = vmatpush1.msra.mxu0 %v2933
          %2935 = vmatprep.subr.mxu0 0.0
          %v2936 = vand.u32 %v380, 4294901760
          %v2937 = vsub.f32 %v380, %v2936
          %v2938 = vand.u32 %v2937, 4294901760
          %v2939 = vsub.f32 %v2937, %v2938
          %v2940 = vand.u32 %v2939, 4294901760
          %2941 = vmatpush1.msra.mxu0 %v2940
          %2942 = vmatprep.subr.mxu0 0.0
          %v2943 = vand.u32 %v381, 4294901760
          %v2944 = vsub.f32 %v381, %v2943
          %v2945 = vand.u32 %v2944, 4294901760
          %v2946 = vsub.f32 %v2944, %v2945
          %v2947 = vand.u32 %v2946, 4294901760
          %2948 = vmatpush1.msra.mxu0 %v2947
          %2949 = vmatprep.subr.mxu0 0.0
          %2950 = vmatpush1.msra.mxu0 0.0
          %2951 = vmatprep.subr.mxu0 0.0
          %2952 = vmatpush1.msra.mxu0 0.0
          %2953 = vmatprep.subr.mxu0 0.0
          %2954 = vmatpush1.msra.mxu0 0.0
          %2955 = vmatprep.subr.mxu0 0.0
          %2956 = vmatpush1.msra.mxu0 0.0
          %2957 = vmatprep.subr.mxu0 0.0
          %2958 = vmatpush1.msra.mxu0 0.0
          %2959 = vmatprep.subr.mxu0 0.0
          %2960 = vmatpush1.msra.mxu0 0.0
          %2961 = vmatprep.subr.mxu0 0.0
          %2962 = vmatpush1.msra.mxu0 0.0
          %2963 = vmatprep.subr.mxu0 0.0
          %2964 = vmatpush1.msra.mxu0 0.0
          %2965 = vmatprep.subr.mxu0 0.0
          %2966 = vmatpush1.msra.mxu0 0.0
          %2967 = vmatprep.subr.mxu0 0.0
          %2968 = vmatpush1.msra.mxu0 0.0
          %2969 = vmatprep.subr.mxu0 0.0
          %2970 = vmatpush1.msra.mxu0 0.0
          %2971 = vmatprep.subr.mxu0 0.0
          %2972 = vmatpush1.msra.mxu0 0.0
          %2973 = vmatprep.subr.mxu0 0.0
          %2974 = vmatpush1.msra.mxu0 0.0
          %2975 = vmatprep.subr.mxu0 0.0
          %2976 = vmatpush1.msra.mxu0 0.0
          %2977 = vmatprep.subr.mxu0 0.0
          %2978 = vmatpush1.msra.mxu0 0.0
          %2979 = vmatprep.subr.mxu0 0.0
          %2980 = vmatpush1.msra.mxu0 0.0
          %2981 = vmatprep.mubr.f32.mxu0 0.0
          %v2982 = vand.u32 %v1890, 4294901760
          %2983 = vmatmul.mubr.f32.gmra.mrb[0].mxu0 %v2982
          %v2984 = vpop.f32.mrb[0].mxu0
          %v2985 = vadd.f32 %v2834, %v2984
          %v2986 = vpop.f32.mrb[0].mxu0
          %2987 = vdwg.mxu0
          %2988 = vmatprep.subr.mxu0 0.0
          %v2989 = vand.u32 %v366, 4294901760
          %v2990 = vsub.f32 %v366, %v2989
          %2991 = vmatpush1.msra.mxu0 %v2990
          %2992 = vmatprep.subr.mxu0 0.0
          %v2993 = vand.u32 %v367, 4294901760
          %v2994 = vsub.f32 %v367, %v2993
          %2995 = vmatpush1.msra.mxu0 %v2994
          %2996 = vmatprep.subr.mxu0 0.0
          %v2997 = vand.u32 %v368, 4294901760
          %v2998 = vsub.f32 %v368, %v2997
          %2999 = vmatpush1.msra.mxu0 %v2998
          %3000 = vmatprep.subr.mxu0 0.0
          %v3001 = vand.u32 %v369, 4294901760
          %v3002 = vsub.f32 %v369, %v3001
          %3003 = vmatpush1.msra.mxu0 %v3002
          %3004 = vmatprep.subr.mxu0 0.0
          %v3005 = vand.u32 %v370, 4294901760
          %v3006 = vsub.f32 %v370, %v3005
          %3007 = vmatpush1.msra.mxu0 %v3006
          %3008 = vmatprep.subr.mxu0 0.0
          %v3009 = vand.u32 %v371, 4294901760
          %v3010 = vsub.f32 %v371, %v3009
          %3011 = vmatpush1.msra.mxu0 %v3010
          %3012 = vmatprep.subr.mxu0 0.0
          %v3013 = vand.u32 %v372, 4294901760
          %v3014 = vsub.f32 %v372, %v3013
          %3015 = vmatpush1.msra.mxu0 %v3014
          %3016 = vmatprep.subr.mxu0 0.0
          %v3017 = vand.u32 %v373, 4294901760
          %v3018 = vsub.f32 %v373, %v3017
          %3019 = vmatpush1.msra.mxu0 %v3018
          %3020 = vmatprep.subr.mxu0 0.0
          %v3021 = vand.u32 %v374, 4294901760
          %v3022 = vsub.f32 %v374, %v3021
          %3023 = vmatpush1.msra.mxu0 %v3022
          %3024 = vmatprep.subr.mxu0 0.0
          %v3025 = vand.u32 %v375, 4294901760
          %v3026 = vsub.f32 %v375, %v3025
          %3027 = vmatpush1.msra.mxu0 %v3026
          %3028 = vmatprep.subr.mxu0 0.0
          %v3029 = vand.u32 %v376, 4294901760
          %v3030 = vsub.f32 %v376, %v3029
          %3031 = vmatpush1.msra.mxu0 %v3030
          %3032 = vmatprep.subr.mxu0 0.0
          %v3033 = vand.u32 %v377, 4294901760
          %v3034 = vsub.f32 %v377, %v3033
          %3035 = vmatpush1.msra.mxu0 %v3034
          %3036 = vmatprep.subr.mxu0 0.0
          %v3037 = vand.u32 %v378, 4294901760
          %v3038 = vsub.f32 %v378, %v3037
          %3039 = vmatpush1.msra.mxu0 %v3038
          %3040 = vmatprep.subr.mxu0 0.0
          %v3041 = vand.u32 %v379, 4294901760
          %v3042 = vsub.f32 %v379, %v3041
          %3043 = vmatpush1.msra.mxu0 %v3042
          %3044 = vmatprep.subr.mxu0 0.0
          %v3045 = vand.u32 %v380, 4294901760
          %v3046 = vsub.f32 %v380, %v3045
          %3047 = vmatpush1.msra.mxu0 %v3046
          %3048 = vmatprep.subr.mxu0 0.0
          %v3049 = vand.u32 %v381, 4294901760
          %v3050 = vsub.f32 %v381, %v3049
          %3051 = vmatpush1.msra.mxu0 %v3050
          %3052 = vmatprep.subr.mxu0 0.0
          %3053 = vmatpush1.msra.mxu0 0.0
          %3054 = vmatprep.subr.mxu0 0.0
          %3055 = vmatpush1.msra.mxu0 0.0
          %3056 = vmatprep.subr.mxu0 0.0
          %3057 = vmatpush1.msra.mxu0 0.0
          %3058 = vmatprep.subr.mxu0 0.0
          %3059 = vmatpush1.msra.mxu0 0.0
          %3060 = vmatprep.subr.mxu0 0.0
          %3061 = vmatpush1.msra.mxu0 0.0
          %3062 = vmatprep.subr.mxu0 0.0
          %3063 = vmatpush1.msra.mxu0 0.0
          %3064 = vmatprep.subr.mxu0 0.0
          %3065 = vmatpush1.msra.mxu0 0.0
          %3066 = vmatprep.subr.mxu0 0.0
          %3067 = vmatpush1.msra.mxu0 0.0
          %3068 = vmatprep.subr.mxu0 0.0
          %3069 = vmatpush1.msra.mxu0 0.0
          %3070 = vmatprep.subr.mxu0 0.0
          %3071 = vmatpush1.msra.mxu0 0.0
          %3072 = vmatprep.subr.mxu0 0.0
          %3073 = vmatpush1.msra.mxu0 0.0
          %3074 = vmatprep.subr.mxu0 0.0
          %3075 = vmatpush1.msra.mxu0 0.0
          %3076 = vmatprep.subr.mxu0 0.0
          %3077 = vmatpush1.msra.mxu0 0.0
          %3078 = vmatprep.subr.mxu0 0.0
          %3079 = vmatpush1.msra.mxu0 0.0
          %3080 = vmatprep.subr.mxu0 0.0
          %3081 = vmatpush1.msra.mxu0 0.0
          %3082 = vmatprep.subr.mxu0 0.0
          %3083 = vmatpush1.msra.mxu0 0.0
          %3084 = vmatprep.mubr.f32.mxu0 0.0
          %v3085 = vand.u32 %v1890, 4294901760
          %v3086 = vsub.f32 %v1890, %v3085
          %3087 = vmatmul.mubr.f32.gmra.mrb[0].mxu0 %v3086
          %v3088 = vpop.f32.mrb[0].mxu0
          %v3089 = vadd.f32 %v2985, %v3088
          %v3090 = vpop.f32.mrb[0].mxu0
          %3091 = vdwg.mxu0
          %3092 = vmatprep.subr.mxu0 0.0
          %v3093 = vand.u32 %v366, 4294901760
          %3094 = vmatpush1.msra.mxu0 %v3093
          %3095 = vmatprep.subr.mxu0 0.0
          %v3096 = vand.u32 %v367, 4294901760
          %3097 = vmatpush1.msra.mxu0 %v3096
          %3098 = vmatprep.subr.mxu0 0.0
          %v3099 = vand.u32 %v368, 4294901760
          %3100 = vmatpush1.msra.mxu0 %v3099
          %3101 = vmatprep.subr.mxu0 0.0
          %v3102 = vand.u32 %v369, 4294901760
          %3103 = vmatpush1.msra.mxu0 %v3102
          %3104 = vmatprep.subr.mxu0 0.0
          %v3105 = vand.u32 %v370, 4294901760
          %3106 = vmatpush1.msra.mxu0 %v3105
          %3107 = vmatprep.subr.mxu0 0.0
          %v3108 = vand.u32 %v371, 4294901760
          %3109 = vmatpush1.msra.mxu0 %v3108
          %3110 = vmatprep.subr.mxu0 0.0
          %v3111 = vand.u32 %v372, 4294901760
          %3112 = vmatpush1.msra.mxu0 %v3111
          %3113 = vmatprep.subr.mxu0 0.0
          %v3114 = vand.u32 %v373, 4294901760
          %3115 = vmatpush1.msra.mxu0 %v3114
          %3116 = vmatprep.subr.mxu0 0.0
          %v3117 = vand.u32 %v374, 4294901760
          %3118 = vmatpush1.msra.mxu0 %v3117
          %3119 = vmatprep.subr.mxu0 0.0
          %v3120 = vand.u32 %v375, 4294901760
          %3121 = vmatpush1.msra.mxu0 %v3120
          %3122 = vmatprep.subr.mxu0 0.0
          %v3123 = vand.u32 %v376, 4294901760
          %3124 = vmatpush1.msra.mxu0 %v3123
          %3125 = vmatprep.subr.mxu0 0.0
          %v3126 = vand.u32 %v377, 4294901760
          %3127 = vmatpush1.msra.mxu0 %v3126
          %3128 = vmatprep.subr.mxu0 0.0
          %v3129 = vand.u32 %v378, 4294901760
          %3130 = vmatpush1.msra.mxu0 %v3129
          %3131 = vmatprep.subr.mxu0 0.0
          %v3132 = vand.u32 %v379, 4294901760
          %3133 = vmatpush1.msra.mxu0 %v3132
          %3134 = vmatprep.subr.mxu0 0.0
          %v3135 = vand.u32 %v380, 4294901760
          %3136 = vmatpush1.msra.mxu0 %v3135
          %3137 = vmatprep.subr.mxu0 0.0
          %v3138 = vand.u32 %v381, 4294901760
          %3139 = vmatpush1.msra.mxu0 %v3138
          %3140 = vmatprep.subr.mxu0 0.0
          %3141 = vmatpush1.msra.mxu0 0.0
          %3142 = vmatprep.subr.mxu0 0.0
          %3143 = vmatpush1.msra.mxu0 0.0
          %3144 = vmatprep.subr.mxu0 0.0
          %3145 = vmatpush1.msra.mxu0 0.0
          %3146 = vmatprep.subr.mxu0 0.0
          %3147 = vmatpush1.msra.mxu0 0.0
          %3148 = vmatprep.subr.mxu0 0.0
          %3149 = vmatpush1.msra.mxu0 0.0
          %3150 = vmatprep.subr.mxu0 0.0
          %3151 = vmatpush1.msra.mxu0 0.0
          %3152 = vmatprep.subr.mxu0 0.0
          %3153 = vmatpush1.msra.mxu0 0.0
          %3154 = vmatprep.subr.mxu0 0.0
          %3155 = vmatpush1.msra.mxu0 0.0
          %3156 = vmatprep.subr.mxu0 0.0
          %3157 = vmatpush1.msra.mxu0 0.0
          %3158 = vmatprep.subr.mxu0 0.0
          %3159 = vmatpush1.msra.mxu0 0.0
          %3160 = vmatprep.subr.mxu0 0.0
          %3161 = vmatpush1.msra.mxu0 0.0
          %3162 = vmatprep.subr.mxu0 0.0
          %3163 = vmatpush1.msra.mxu0 0.0
          %3164 = vmatprep.subr.mxu0 0.0
          %3165 = vmatpush1.msra.mxu0 0.0
          %3166 = vmatprep.subr.mxu0 0.0
          %3167 = vmatpush1.msra.mxu0 0.0
          %3168 = vmatprep.subr.mxu0 0.0
          %3169 = vmatpush1.msra.mxu0 0.0
          %3170 = vmatprep.subr.mxu0 0.0
          %3171 = vmatpush1.msra.mxu0 0.0
          %3172 = vmatprep.mubr.f32.mxu0 0.0
          %v3173 = vand.u32 %v1890, 4294901760
          %v3174 = vsub.f32 %v1890, %v3173
          %v3175 = vand.u32 %v3174, 4294901760
          %3176 = vmatmul.mubr.f32.gmra.mrb[0].mxu0 %v3175
          %v3177 = vpop.f32.mrb[0].mxu0
          %v3178 = vadd.f32 %v3089, %v3177
          %v3179 = vpop.f32.mrb[0].mxu0
          %3180 = vdwg.mxu0
          %3181 = vmatprep.subr.mxu0 0.0
          %v3182 = vand.u32 %v366, 4294901760
          %v3183 = vsub.f32 %v366, %v3182
          %v3184 = vand.u32 %v3183, 4294901760
          %3185 = vmatpush1.msra.mxu0 %v3184
          %3186 = vmatprep.subr.mxu0 0.0
          %v3187 = vand.u32 %v367, 4294901760
          %v3188 = vsub.f32 %v367, %v3187
          %v3189 = vand.u32 %v3188, 4294901760
          %3190 = vmatpush1.msra.mxu0 %v3189
          %3191 = vmatprep.subr.mxu0 0.0
          %v3192 = vand.u32 %v368, 4294901760
          %v3193 = vsub.f32 %v368, %v3192
          %v3194 = vand.u32 %v3193, 4294901760
          %3195 = vmatpush1.msra.mxu0 %v3194
          %3196 = vmatprep.subr.mxu0 0.0
          %v3197 = vand.u32 %v369, 4294901760
          %v3198 = vsub.f32 %v369, %v3197
          %v3199 = vand.u32 %v3198, 4294901760
          %3200 = vmatpush1.msra.mxu0 %v3199
          %3201 = vmatprep.subr.mxu0 0.0
          %v3202 = vand.u32 %v370, 4294901760
          %v3203 = vsub.f32 %v370, %v3202
          %v3204 = vand.u32 %v3203, 4294901760
          %3205 = vmatpush1.msra.mxu0 %v3204
          %3206 = vmatprep.subr.mxu0 0.0
          %v3207 = vand.u32 %v371, 4294901760
          %v3208 = vsub.f32 %v371, %v3207
          %v3209 = vand.u32 %v3208, 4294901760
          %3210 = vmatpush1.msra.mxu0 %v3209
          %3211 = vmatprep.subr.mxu0 0.0
          %v3212 = vand.u32 %v372, 4294901760
          %v3213 = vsub.f32 %v372, %v3212
          %v3214 = vand.u32 %v3213, 4294901760
          %3215 = vmatpush1.msra.mxu0 %v3214
          %3216 = vmatprep.subr.mxu0 0.0
          %v3217 = vand.u32 %v373, 4294901760
          %v3218 = vsub.f32 %v373, %v3217
          %v3219 = vand.u32 %v3218, 4294901760
          %3220 = vmatpush1.msra.mxu0 %v3219
          %3221 = vmatprep.subr.mxu0 0.0
          %v3222 = vand.u32 %v374, 4294901760
          %v3223 = vsub.f32 %v374, %v3222
          %v3224 = vand.u32 %v3223, 4294901760
          %3225 = vmatpush1.msra.mxu0 %v3224
          %3226 = vmatprep.subr.mxu0 0.0
          %v3227 = vand.u32 %v375, 4294901760
          %v3228 = vsub.f32 %v375, %v3227
          %v3229 = vand.u32 %v3228, 4294901760
          %3230 = vmatpush1.msra.mxu0 %v3229
          %3231 = vmatprep.subr.mxu0 0.0
          %v3232 = vand.u32 %v376, 4294901760
          %v3233 = vsub.f32 %v376, %v3232
          %v3234 = vand.u32 %v3233, 4294901760
          %3235 = vmatpush1.msra.mxu0 %v3234
          %3236 = vmatprep.subr.mxu0 0.0
          %v3237 = vand.u32 %v377, 4294901760
          %v3238 = vsub.f32 %v377, %v3237
          %v3239 = vand.u32 %v3238, 4294901760
          %3240 = vmatpush1.msra.mxu0 %v3239
          %3241 = vmatprep.subr.mxu0 0.0
          %v3242 = vand.u32 %v378, 4294901760
          %v3243 = vsub.f32 %v378, %v3242
          %v3244 = vand.u32 %v3243, 4294901760
          %3245 = vmatpush1.msra.mxu0 %v3244
          %3246 = vmatprep.subr.mxu0 0.0
          %v3247 = vand.u32 %v379, 4294901760
          %v3248 = vsub.f32 %v379, %v3247
          %v3249 = vand.u32 %v3248, 4294901760
          %3250 = vmatpush1.msra.mxu0 %v3249
          %3251 = vmatprep.subr.mxu0 0.0
          %v3252 = vand.u32 %v380, 4294901760
          %v3253 = vsub.f32 %v380, %v3252
          %v3254 = vand.u32 %v3253, 4294901760
          %3255 = vmatpush1.msra.mxu0 %v3254
          %3256 = vmatprep.subr.mxu0 0.0
          %v3257 = vand.u32 %v381, 4294901760
          %v3258 = vsub.f32 %v381, %v3257
          %v3259 = vand.u32 %v3258, 4294901760
          %3260 = vmatpush1.msra.mxu0 %v3259
          %3261 = vmatprep.subr.mxu0 0.0
          %3262 = vmatpush1.msra.mxu0 0.0
          %3263 = vmatprep.subr.mxu0 0.0
          %3264 = vmatpush1.msra.mxu0 0.0
          %3265 = vmatprep.subr.mxu0 0.0
          %3266 = vmatpush1.msra.mxu0 0.0
          %3267 = vmatprep.subr.mxu0 0.0
          %3268 = vmatpush1.msra.mxu0 0.0
          %3269 = vmatprep.subr.mxu0 0.0
          %3270 = vmatpush1.msra.mxu0 0.0
          %3271 = vmatprep.subr.mxu0 0.0
          %3272 = vmatpush1.msra.mxu0 0.0
          %3273 = vmatprep.subr.mxu0 0.0
          %3274 = vmatpush1.msra.mxu0 0.0
          %3275 = vmatprep.subr.mxu0 0.0
          %3276 = vmatpush1.msra.mxu0 0.0
          %3277 = vmatprep.subr.mxu0 0.0
          %3278 = vmatpush1.msra.mxu0 0.0
          %3279 = vmatprep.subr.mxu0 0.0
          %3280 = vmatpush1.msra.mxu0 0.0
          %3281 = vmatprep.subr.mxu0 0.0
          %3282 = vmatpush1.msra.mxu0 0.0
          %3283 = vmatprep.subr.mxu0 0.0
          %3284 = vmatpush1.msra.mxu0 0.0
          %3285 = vmatprep.subr.mxu0 0.0
          %3286 = vmatpush1.msra.mxu0 0.0
          %3287 = vmatprep.subr.mxu0 0.0
          %3288 = vmatpush1.msra.mxu0 0.0
          %3289 = vmatprep.subr.mxu0 0.0
          %3290 = vmatpush1.msra.mxu0 0.0
          %3291 = vmatprep.subr.mxu0 0.0
          %3292 = vmatpush1.msra.mxu0 0.0
          %3293 = vmatprep.mubr.f32.mxu0 0.0
          %v3294 = vand.u32 %v1890, 4294901760
          %3295 = vmatmul.mubr.f32.gmra.mrb[0].mxu0 %v3294
          %v3296 = vpop.f32.mrb[0].mxu0
          %v3297 = vadd.f32 %v3178, %v3296
          %v3298 = vpop.f32.mrb[0].mxu0
          %3299 = vdwg.mxu0
          %3300 = vmatprep.subr.mxu0 0.0
          %v3301 = vand.u32 %v366, 4294901760
          %3302 = vmatpush1.msra.mxu0 %v3301
          %3303 = vmatprep.subr.mxu0 0.0
          %v3304 = vand.u32 %v367, 4294901760
          %3305 = vmatpush1.msra.mxu0 %v3304
          %3306 = vmatprep.subr.mxu0 0.0
          %v3307 = vand.u32 %v368, 4294901760
          %3308 = vmatpush1.msra.mxu0 %v3307
          %3309 = vmatprep.subr.mxu0 0.0
          %v3310 = vand.u32 %v369, 4294901760
          %3311 = vmatpush1.msra.mxu0 %v3310
          %3312 = vmatprep.subr.mxu0 0.0
          %v3313 = vand.u32 %v370, 4294901760
          %3314 = vmatpush1.msra.mxu0 %v3313
          %3315 = vmatprep.subr.mxu0 0.0
          %v3316 = vand.u32 %v371, 4294901760
          %3317 = vmatpush1.msra.mxu0 %v3316
          %3318 = vmatprep.subr.mxu0 0.0
          %v3319 = vand.u32 %v372, 4294901760
          %3320 = vmatpush1.msra.mxu0 %v3319
          %3321 = vmatprep.subr.mxu0 0.0
          %v3322 = vand.u32 %v373, 4294901760
          %3323 = vmatpush1.msra.mxu0 %v3322
          %3324 = vmatprep.subr.mxu0 0.0
          %v3325 = vand.u32 %v374, 4294901760
          %3326 = vmatpush1.msra.mxu0 %v3325
          %3327 = vmatprep.subr.mxu0 0.0
          %v3328 = vand.u32 %v375, 4294901760
          %3329 = vmatpush1.msra.mxu0 %v3328
          %3330 = vmatprep.subr.mxu0 0.0
          %v3331 = vand.u32 %v376, 4294901760
          %3332 = vmatpush1.msra.mxu0 %v3331
          %3333 = vmatprep.subr.mxu0 0.0
          %v3334 = vand.u32 %v377, 4294901760
          %3335 = vmatpush1.msra.mxu0 %v3334
          %3336 = vmatprep.subr.mxu0 0.0
          %v3337 = vand.u32 %v378, 4294901760
          %3338 = vmatpush1.msra.mxu0 %v3337
          %3339 = vmatprep.subr.mxu0 0.0
          %v3340 = vand.u32 %v379, 4294901760
          %3341 = vmatpush1.msra.mxu0 %v3340
          %3342 = vmatprep.subr.mxu0 0.0
          %v3343 = vand.u32 %v380, 4294901760
          %3344 = vmatpush1.msra.mxu0 %v3343
          %3345 = vmatprep.subr.mxu0 0.0
          %v3346 = vand.u32 %v381, 4294901760
          %3347 = vmatpush1.msra.mxu0 %v3346
          %3348 = vmatprep.subr.mxu0 0.0
          %3349 = vmatpush1.msra.mxu0 0.0
          %3350 = vmatprep.subr.mxu0 0.0
          %3351 = vmatpush1.msra.mxu0 0.0
          %3352 = vmatprep.subr.mxu0 0.0
          %3353 = vmatpush1.msra.mxu0 0.0
          %3354 = vmatprep.subr.mxu0 0.0
          %3355 = vmatpush1.msra.mxu0 0.0
          %3356 = vmatprep.subr.mxu0 0.0
          %3357 = vmatpush1.msra.mxu0 0.0
          %3358 = vmatprep.subr.mxu0 0.0
          %3359 = vmatpush1.msra.mxu0 0.0
          %3360 = vmatprep.subr.mxu0 0.0
          %3361 = vmatpush1.msra.mxu0 0.0
          %3362 = vmatprep.subr.mxu0 0.0
          %3363 = vmatpush1.msra.mxu0 0.0
          %3364 = vmatprep.subr.mxu0 0.0
          %3365 = vmatpush1.msra.mxu0 0.0
          %3366 = vmatprep.subr.mxu0 0.0
          %3367 = vmatpush1.msra.mxu0 0.0
          %3368 = vmatprep.subr.mxu0 0.0
          %3369 = vmatpush1.msra.mxu0 0.0
          %3370 = vmatprep.subr.mxu0 0.0
          %3371 = vmatpush1.msra.mxu0 0.0
          %3372 = vmatprep.subr.mxu0 0.0
          %3373 = vmatpush1.msra.mxu0 0.0
          %3374 = vmatprep.subr.mxu0 0.0
          %3375 = vmatpush1.msra.mxu0 0.0
          %3376 = vmatprep.subr.mxu0 0.0
          %3377 = vmatpush1.msra.mxu0 0.0
          %3378 = vmatprep.subr.mxu0 0.0
          %3379 = vmatpush1.msra.mxu0 0.0
          %3380 = vmatprep.mubr.f32.mxu0 0.0
          %v3381 = vand.u32 %v1890, 4294901760
          %3382 = vmatmul.mubr.f32.gmra.mrb[0].mxu0 %v3381
          %v3383 = vpop.f32.mrb[0].mxu0
          %v3384 = vadd.f32 %v3297, %v3383
          %v3385 = vpop.f32.mrb[0].mxu0
          %3386 = vdwg.mxu0
          %vm3387 = vcmp.eq.s32.totalorder %v383, 0
          %v3388 = vsel %vm3387, %v1868, %v3384
          %s3389 = smul.u32 %s385, 2
          %s3390 = scalar_lea.vmem [#allocation6], %s3389
          %v3391 = vld [vmem:[%s3390] sm:$0x3]
          %s3392 = scalar_select %p347, 1, 0
          %v3393 = vstv %s3392
          %vm3394 = vcmp.eq.s32.totalorder %v3393, 1
          %v3395 = vsel %vm3394, inf, %v3391
          %vm3396 = vcmp.ge.f32.partialorder %v1868, %v3395
          %vm3397 = vmxor %vm3396, 1
          %s3398 = smul.addr %s3389, 2
          %s3399 = scalar_lea.vmem [#allocation5], %s3398
          %v3400 = vld [vmem:[%s3399] sm:$0xf]
          %v3401 = vsel %vm3397, 1, 0
          %3402 = vset.pattern.permute.xlu0 0
          %3403 = vperm.xlu0 %3402, %v3401
          %v3404 = vpop.permute.xlu0 %3403
          %vm3405 = vcmp.eq.s32.totalorder %v3404, 1
          %v3408 = vunpack.c.l.s4 1983009808
          %v3409 = vunpack.c.0.s8 %v3408
          %v3410 = vlaneseq
          %v3411 = vshrl.u32 %v3410, 7
          %v3412 = vsub.s32 %v3409, %v3411
          %v3413 = vrot.slane %v3400, %v3412
          %v3414 = vcombine.high %v3413, %v3413
          %v3417 = vsel %vm3405, %v2742, %v3413
          %v3418 = vsel %vm3405, %v2744, %v3414
          %v3421 = vcombine.low %v3417, %v3418
          %v3423 = vunpack.c.l.s4 1983009808
          %v3424 = vunpack.c.0.s8 %v3423
          %v3425 = vlaneseq
          %v3426 = vshrl.u32 %v3425, 7
          %v3427 = vsub.s32 %v3424, %v3426
          %v3428 = vrot.slane %v3421, %v3427
          %3430 = vst [vmem:[%s3399] sm:$0xf] %v3428
          %v3431 = vsel %vm3405, %v3388, %v3391
          %3432 = vst [vmem:[%s3390] sm:$0x3] %v3431
        $region49: #{tpu_custom_call.1} parent=39 // loop_footer
          %s389 = sadd.s32 1, %s385
        $region50: #{tpu_custom_call.1} parent=39 // loop_footer_branch
          %384 = sbr.rel target = $region46
        $region51: #{tpu_custom_call.1} parent=39 // loop_exit
          _
        // Predicated region
        $region52: #{tpu_custom_call.1} parent=39 // pred_check
          %p3433 = pneg %p178
        $region53: #{tpu_custom_call.1} parent=39 // pred_check_branch
          %3435 = sbr.rel (%p3433) target = $region55
        $region54: #{tpu_custom_call.1} parent=39 // pred_region
          %s3436 = smul.u32 4, %s27
          %s3438 = ssub.s32 256, 256
          %3439 = vsyncadd [#allocation4], %s3438
          %s3440 = smul.addr %s3436, 2
          %s3441 = smul.addr %s3440, 32
          %s3442 = scalar_lea.hbm %s5, %s3441
          %s3443 = sshll.u32 [#allocation5], 4
          %s3444 = int_to_ptr.vmem [resolvable:$true] %s3443
          %3449 = dma.vmem_to_hbm [thread:$0]  %s3444, 256, %s3442, [#allocation4], 64, 64, 4
        $region55: #{tpu_custom_call.1} parent=39 // pred_fallthru
          _
        // Predicated region
        $region56: #{tpu_custom_call.1} parent=39 // pred_check
          %p3450 = pneg %p204
        $region57: #{tpu_custom_call.1} parent=39 // pred_check_branch
          %3452 = sbr.rel (%p3450) target = $region59
        $region58: #{tpu_custom_call.1} parent=39 // pred_region
          %s3453 = smul.u32 4, %s27
          %s3455 = ssub.s32 128, 128
          %3456 = vsyncadd [#allocation7], %s3455
          %s3457 = smul.addr %s3453, 32
          %s3458 = scalar_lea.hbm %s6, %s3457
          %s3459 = sshll.u32 [#allocation6], 4
          %s3460 = int_to_ptr.vmem [resolvable:$true] %s3459
          %3465 = dma.vmem_to_hbm [thread:$0]  %s3460, 128, %s3458, [#allocation7], 32, 32, 2
        $region59: #{tpu_custom_call.1} parent=39 // pred_fallthru
          _
        // Predicated region
        $region60: #{tpu_custom_call.1} parent=39 // pred_check
          %p3466 = pneg %p178
        $region61: #{tpu_custom_call.1} parent=39 // pred_check_branch
          %3468 = sbr.rel (%p3466) target = $region63
        $region62: #{tpu_custom_call.1} parent=39 // pred_region
          %3469 = dma.done [#allocation4], 256
        $region63: #{tpu_custom_call.1} parent=39 // pred_fallthru
          _
        // Predicated region
        $region64: #{tpu_custom_call.1} parent=39 // pred_check
          %p3470 = pneg %p204
        $region65: #{tpu_custom_call.1} parent=39 // pred_check_branch
          %3472 = sbr.rel (%p3470) target = $region67
        $region66: #{tpu_custom_call.1} parent=39 // pred_region
          %3473 = dma.done [#allocation7], 128
        $region67: #{tpu_custom_call.1} parent=39 // pred_fallthru
          _
      $region40: #{tpu_custom_call.1} parent=5 // pred_fallthru
        _
      %p3474 = scmp.le.s32.totalorder 2, %s18
      // Predicated region
      $region68: #{tpu_custom_call.1} parent=5 // pred_check
        %p3475 = pneg %p3474
      $region69: #{tpu_custom_call.1} parent=5 // pred_check_branch
        %3477 = sbr.rel (%p3475) target = $region71
      $region70: #{tpu_custom_call.1} parent=5 // pred_region
        %s3478 = ssub.s32 %s18, 2
      $region71: #{tpu_custom_call.1} parent=5 // pred_fallthru
        _
    $region6: #{tpu_custom_call.1} parent=1 // loop_footer
      %s22 = sadd.s32 1, %s18
    $region7: #{tpu_custom_call.1} parent=1 // loop_footer_branch
      %17 = sbr.rel target = $region3
    $region8: #{tpu_custom_call.1} parent=1 // loop_exit
      _
    %3479 = vsyncpa [#allocation3], 1
    %s3480 = scalar_lea.sflag [#allocation3], 1
    %3481 = vsyncpa %s3480, 1
    %3482 = vsyncpa [#allocation4], 1
    %s3483 = scalar_lea.sflag [#allocation4], 1
    %3484 = vsyncpa %s3483, 1
    %3485 = vsyncpa [#allocation7], 1

</llo_original>
